<compile_context>
chip_gen: v7x
topology: tpu7x:2x2x1
jax: 0.10.0
libtpu: 0.0.40
codegen_flags: <defaults>
</compile_context>

<pallas_src>
import functools

import numpy as np

import jax
import jax.numpy as jnp
from jax.experimental import pallas as pl
from jax.experimental.pallas import tpu as pltpu

BN_EPS = 1e-5
LEAKY_SLOPE = 0.01  # PyTorch nn.LeakyReLU default


def _leaky_relu(x):
    return jnp.where(x >= 0, x, LEAKY_SLOPE * x)


# --------------------------------------------------------------------------
# Kernel 1/2: two fused 3x3 convs (one over (H,W), one over (D,W)) + LeakyReLU
#             + per-block BN partial statistics.
# Block layout: (1, Dt, C, H*W) -- channels on sublanes, voxels on lanes.
# --------------------------------------------------------------------------
def _dual_conv_kernel(*refs, shared, apply_affine, dt, width):
    it = iter(refs)
    hw_c_ref = next(it)                                # (1, Dt, Ca, HW)
    dw_c_ref = hw_c_ref if shared else next(it)        # (1, Dt, Cb, HW)
    dw_m_ref = next(it)                                 # (1, 1, Cb, HW) slice d0-1
    dw_p_ref = next(it)                                 # (1, 1, Cb, HW) slice d0+Dt
    w_hw_ref = next(it)                                 # (Cout, 9*Ca)
    w_dw_ref = next(it)                                 # (Cout, 9*Cb)
    aff_ref = next(it) if apply_affine else None        # (Cb|Ca, 4)
    mask_ref = next(it)                                 # (4, HW)
    y_hw_ref = next(it)                                 # (1, Dt, Cout, HW)
    y_dw_ref = next(it)                                 # (1, Dt, Cout, HW)
    stats_ref = next(it)                                # (1, 1, Cout, 4)

    hw = hw_c_ref.shape[3]
    cout = y_hw_ref.shape[2]

    # Boundary masks for the +-1 (W) and +-width (H) lane shifts.
    mask_wp = mask_ref[0:1, :]   # reading x[p+1]     valid (col != W-1)
    mask_wm = mask_ref[1:2, :]   # reading x[p-1]     valid (col != 0)
    mask_hp = mask_ref[2:3, :]   # reading x[p+width] valid (row != H-1)
    mask_hm = mask_ref[3:4, :]   # reading x[p-width] valid (row != 0)

    def shift(x, off, mask):
        # result[:, p] = x[:, p + off], zeroed where the read leaves the valid
        # range.  pltpu.roll runs on the XLU slot; the mask is one VPU mul.
        return pltpu.roll(x, (-off) % hw, axis=1) * mask

    w_hw_mat = w_hw_ref[...]
    w_dw_mat = w_dw_ref[...]

    def conv9(planes, w_mat):
        # planes: three (C, HW) operands for outer-tap offsets (-1, 0, +1).
        # w_mat : (Cout, 9*C) with K ordered (outer tap, W tap, channel).
        op = jnp.concatenate(
            [t for p in planes
             for t in (shift(p, -1, mask_wm), p, shift(p, 1, mask_wp))],
            axis=0)
        return jnp.dot(w_mat, op, preferred_element_type=jnp.float32)

    if apply_affine:
        sc_a, sh_a = aff_ref[:, 0:1], aff_ref[:, 1:2]
        sc_b, sh_b = aff_ref[:, 2:3], aff_ref[:, 3:4]
    else:
        sc_a = sh_a = sc_b = sh_b = None

    def load(ref, j, sc, sh):
        x = ref[0, j].astype(jnp.float32)
        if sc is not None:
            x = x * sc + sh
        return x

    # Branch inputs for every depth slice of this block (affine folded once).
    a_in = [load(hw_c_ref, j, sc_a, sh_a) for j in range(dt)]
    b_in = a_in if shared else [load(dw_c_ref, j, sc_b, sh_b) for j in range(dt)]

    # D-halo slices; block-boundary validity is folded into the per-channel
    # scale/shift (or a single scalar), not full-plane masks.
    dblk = pl.program_id(1)
    vm = (dblk > 0).astype(jnp.float32)
    vp = (dblk < pl.num_programs(1) - 1).astype(jnp.float32)
    if apply_affine:
        b_m = dw_m_ref[0, 0].astype(jnp.float32) * (sc_b * vm) + sh_b * vm
        b_p = dw_p_ref[0, 0].astype(jnp.float32) * (sc_b * vp) + sh_b * vp
    else:
        b_m = dw_m_ref[0, 0].astype(jnp.float32) * vm
        b_p = dw_p_ref[0, 0].astype(jnp.float32) * vp

    s_hw = jnp.zeros((cout, 1), jnp.float32)
    q_hw = jnp.zeros((cout, 1), jnp.float32)
    s_dw = jnp.zeros((cout, 1), jnp.float32)
    q_dw = jnp.zeros((cout, 1), jnp.float32)

    for j in range(dt):
        # ---- branch A: 3x3 conv over (H, W) (kernel (1,3,3)) --------------
        xc = a_in[j]
        y = _leaky_relu(conv9(
            [shift(xc, -width, mask_hm), xc, shift(xc, width, mask_hp)],
            w_hw_mat))
        y_hw_ref[0, j] = y.astype(y_hw_ref.dtype)
        s_hw += jnp.sum(y, axis=1, keepdims=True)
        q_hw += jnp.sum(y * y, axis=1, keepdims=True)

        # ---- branch B: 3x3 conv over (D, W) (kernel (3,1,3)) --------------
        xm = b_in[j - 1] if j > 0 else b_m
        xp = b_in[j + 1] if j < dt - 1 else b_p
        y2 = _leaky_relu(conv9([xm, b_in[j], xp], w_dw_mat))
        y_dw_ref[0, j] = y2.astype(y_dw_ref.dtype)
        s_dw += jnp.sum(y2, axis=1, keepdims=True)
        q_dw += jnp.sum(y2 * y2, axis=1, keepdims=True)

    # BN partials for both branches: columns [sum_hw, sq_hw, sum_dw, sq_dw].
    stats_ref[0, 0] = jnp.concatenate([s_hw, q_hw, s_dw, q_dw], axis=1)


def _dual_conv(hw_in, dw_in, w_hw, w_dw, aff, masks, *, width, dt, act_dtype):
    """Run the dual-conv kernel over a (B, D//dt) grid of depth blocks.

    hw_in : (B, D, Ca, HW) input of the (H,W)-conv branch.
    dw_in : (B, D, Cb, HW) input of the (D,W)-conv branch, or None to share
            hw_in (the center block is then DMA'd only once).
    aff   : (C, 4) per-channel [sc_a, sh_a, sc_b, sh_b] input affine, or None.
    """
    shared = dw_in is None
    if shared:
        assert aff is None, "shared input implies no per-branch affine"
    dw_src = hw_in if shared else dw_in
    apply_affine = aff is not None

    B, D, ca, hw = hw_in.shape
    cb = dw_src.shape[2]
    cout = w_hw.shape[0]
    nblk = D // dt

    center_a = pl.BlockSpec((1, dt, ca, hw), lambda b, d: (b, d, 0, 0))
    center_b = pl.BlockSpec((1, dt, cb, hw), lambda b, d: (b, d, 0, 0))
    # One-slice D halos, clamped; out-of-range halos are zeroed in-kernel.
    halo_m = pl.BlockSpec(
        (1, 1, cb, hw), lambda b, d: (b, jnp.maximum(d * dt - 1, 0), 0, 0))
    halo_p = pl.BlockSpec(
        (1, 1, cb, hw), lambda b, d: (b, jnp.minimum((d + 1) * dt, D - 1), 0, 0))

    def full2(shape):
        return pl.BlockSpec(shape, lambda b, d: (0, 0))

    operands = [hw_in]
    in_specs = [center_a]
    if not shared:
        operands.append(dw_in)
        in_specs.append(center_b)
    operands += [dw_src, dw_src, w_hw, w_dw]
    in_specs += [halo_m, halo_p, full2(w_hw.shape), full2(w_dw.shape)]
    if apply_affine:
        operands.append(aff)
        in_specs.append(full2(aff.shape))
    operands.append(masks)
    in_specs.append(full2(masks.shape))

    kernel = functools.partial(_dual_conv_kernel, shared=shared,
                               apply_affine=apply_affine, dt=dt, width=width)
    out_block = pl.BlockSpec((1, dt, cout, hw), lambda b, d: (b, d, 0, 0))
    stat_block = pl.BlockSpec((1, 1, cout, 4), lambda b, d: (b, d, 0, 0))

    y_hw, y_dw, stats = pl.pallas_call(
        kernel,
        grid=(B, nblk),
        in_specs=in_specs,
        out_specs=[out_block, out_block, stat_block],
        out_shape=[jax.ShapeDtypeStruct((B, D, cout, hw), act_dtype),
                   jax.ShapeDtypeStruct((B, D, cout, hw), act_dtype),
                   jax.ShapeDtypeStruct((B, nblk, cout, 4), jnp.float32)],
        compiler_params=pltpu.CompilerParams(
            dimension_semantics=("parallel", "parallel")),
    )(*operands)
    return y_hw, y_dw, stats


# --------------------------------------------------------------------------
# Kernel 3: out = BN_a(z_a) + BN_b(z_b) with BN folded into per-channel affine
# --------------------------------------------------------------------------
def _combine_kernel(z_a_ref, z_b_ref, aff_ref, out_ref, *, dt):
    sa, ta = aff_ref[:, 0:1], aff_ref[:, 1:2]
    sb, tb = aff_ref[:, 2:3], aff_ref[:, 3:4]
    bias = ta + tb
    for j in range(dt):
        za = z_a_ref[0, j].astype(jnp.float32)
        zb = z_b_ref[0, j].astype(jnp.float32)
        out_ref[0, j] = (za * sa + zb * sb + bias).astype(out_ref.dtype)


def _combine(z_a, z_b, aff, *, dt, out_dtype):
    B, D, cout, hw = z_a.shape
    blk = pl.BlockSpec((1, dt, cout, hw), lambda b, d: (b, d, 0, 0))
    full2 = pl.BlockSpec(aff.shape, lambda b, d: (0, 0))
    return pl.pallas_call(
        functools.partial(_combine_kernel, dt=dt),
        grid=(B, D // dt),
        in_specs=[blk, blk, full2],
        out_specs=blk,
        out_shape=jax.ShapeDtypeStruct((B, D, cout, hw), out_dtype),
        compiler_params=pltpu.CompilerParams(
            dimension_semantics=("parallel", "parallel")),
    )(z_a, z_b, aff)


# --------------------------------------------------------------------------
# Host-side glue
# --------------------------------------------------------------------------
def _bn_affine(s, ss, n, gamma, beta):
    """Fold training-mode BatchNorm1d into per-channel (scale, shift)."""
    mean = s / n
    var = jnp.maximum(ss / n - mean * mean, 0.0)   # biased var, clamped
    scale = gamma * jax.lax.rsqrt(var + BN_EPS)
    shift = beta - mean * scale
    return scale, shift


def _stack_w9(w):
    """(3, 3, Cin, Cout) -> (Cout, 9*Cin): K ordered (outer tap, W tap, cin)."""
    k1, k2, cin, cout = w.shape
    return jnp.transpose(w.reshape(k1 * k2 * cin, cout))


def _pick_dt(D, cout, hw, bytes_per_elem=4, target_bytes=2 << 20, max_dt=8):
    """Largest divisor of D (<= max_dt) keeping one output block <= ~2 MiB.

    ~1-2 MiB blocks fit comfortably under the scoped-VMEM default on all of
    v5e/v6e/v7x while being large enough to approach the HBM roofline.
    """
    best = 1
    for cand in range(1, min(D, max_dt) + 1):
        if D % cand == 0 and cand * cout * hw * bytes_per_elem <= target_bytes:
            best = cand
    return best


def res_context_block(x, w1, w1_2, w2, w3,
                      g0, b0, g0_2, b0_2, g1, b1, g2, b2,
                      *, act_dtype=jnp.float32, dt=None):
    """Dense-grid ResContextBlock forward.

    x        : (B, D, Cin, H, W) channels-first dense voxel grid (float32).
    w1, w3   : (3, 3, Cin|Cout, Cout) (1,3,3)-conv weights (taps over H, W).
    w2, w1_2 : (3, 3, Cin|Cout, Cout) (3,1,3)-conv weights (taps over D, W).
    g*/b*    : (Cout,) BatchNorm1d affine params for bn0, bn0_2, bn1, bn2.
    act_dtype: storage dtype of the intermediate activations (bf16 halves the
               HBM traffic of the dominant tensors on v6e/v7x).
    Returns  : (B, D, Cout, H, W) in x.dtype.
    """
    B, D, cin, H, W = x.shape
    cout = w1.shape[-1]
    hw = H * W
    assert hw % 128 == 0, "H*W must be a multiple of 128 (lane-dense layout)"
    assert cin % 8 == 0 and cout % 8 == 0, "channels must be sublane-aligned"
    n_vox = B * D * hw
    if dt is None:
        dt = _pick_dt(D, cout, hw)

    xf = x.reshape(B, D, cin, hw)
    w1s, w2s = _stack_w9(w1), _stack_w9(w2)
    w12s, w3s = _stack_w9(w1_2), _stack_w9(w3)

    # Boundary masks for the four lane shifts of the flattened (H*W) axis.
    col = np.arange(hw) % W
    row = np.arange(hw) // W
    masks = jnp.asarray(
        np.stack([col != W - 1,    # +1 (W) shift valid
                  col != 0,        # -1 (W) shift valid
                  row != H - 1,    # +W (H) shift valid
                  row != 0]),      # -W (H) shift valid
        dtype=jnp.float32)

    # Stage 1: y1 = LReLU(conv1(x)) [H,W conv], y2 = LReLU(conv2(x)) [D,W conv]
    # Shared input (single center DMA), no input affine (identity skipped).
    y1, y2, st1 = _dual_conv(xf, None, w1s, w2s, None, masks,
                             width=W, dt=dt, act_dtype=act_dtype)
    st1 = jnp.sum(st1, axis=(0, 1))                                   # (Cout, 4)
    scale0, shift0 = _bn_affine(st1[:, 0], st1[:, 1], n_vox, g0, b0)  # bn0 on y1
    scale1, shift1 = _bn_affine(st1[:, 2], st1[:, 3], n_vox, g1, b1)  # bn1 on y2

    # Stage 2: z2 = LReLU(conv3(bn1(y2))) [H,W], z1 = LReLU(conv1_2(bn0(y1))) [D,W]
    aff2 = jnp.stack([scale1, shift1, scale0, shift0], axis=1).astype(jnp.float32)
    z2, z1, st2 = _dual_conv(y2, y1, w3s, w12s, aff2, masks,
                             width=W, dt=dt, act_dtype=act_dtype)
    st2 = jnp.sum(st2, axis=(0, 1))
    scale2, shift2 = _bn_affine(st2[:, 0], st2[:, 1], n_vox, g2, b2)        # bn2 on z2
    scale02, shift02 = _bn_affine(st2[:, 2], st2[:, 3], n_vox, g0_2, b0_2)  # bn0_2 on z1

    # Stage 3: out = bn0_2(z1) + bn2(z2)
    aff3 = jnp.stack([scale02, shift02, scale2, shift2], axis=1).astype(jnp.float32)
    out = _combine(z1, z2, aff3, dt=dt, out_dtype=x.dtype)
    return out.reshape(B, D, cout, H, W)


# --------------------------------------------------------------------------
# Pure-JAX reference (identical math, independent implementation)
# --------------------------------------------------------------------------
def _conv_hw_ref(x, w):
    B, D, C, H, W = x.shape
    xp = jnp.pad(x, ((0, 0), (0, 0), (0, 0), (1, 1), (1, 1)))
    out = 0.0
    for kh in range(3):
        for kw in range(3):
            sl = xp[:, :, :, kh:kh + H, kw:kw + W]
            out = out + jnp.einsum('bdchw,co->bdohw', sl, w[kh, kw],
                                   precision=jax.lax.Precision.HIGHEST)
    return out


def _conv_dw_ref(x, w):
    B, D, C, H, W = x.shape
    xp = jnp.pad(x, ((0, 0), (1, 1), (0, 0), (0, 0), (1, 1)))
    out = 0.0
    for kd in range(3):
        for kw in range(3):
            sl = xp[:, kd:kd + D, :, :, kw:kw + W]
            out = out + jnp.einsum('bdchw,co->bdohw', sl, w[kd, kw],
                                   precision=jax.lax.Precision.HIGHEST)
    return out


def _bn_ref(f, gamma, beta):
    m = jnp.mean(f, axis=(0, 1, 3, 4), keepdims=True)
    v = jnp.mean((f - m) ** 2, axis=(0, 1, 3, 4), keepdims=True)
    g = gamma[None, None, :, None, None]
    b = beta[None, None, :, None, None]
    return (f - m) * jax.lax.rsqrt(v + BN_EPS) * g + b


def res_context_block_ref(x, w1, w1_2, w2, w3,
                          g0, b0, g0_2, b0_2, g1, b1, g2, b2):
    lrelu = lambda t: jnp.where(t >= 0, t, LEAKY_SLOPE * t)
    shortcut = _bn_ref(lrelu(_conv_hw_ref(x, w1)), g0, b0)
    shortcut = _bn_ref(lrelu(_conv_dw_ref(shortcut, w1_2)), g0_2, b0_2)
    resA = _bn_ref(lrelu(_conv_dw_ref(x, w2)), g1, b1)
    resA = _bn_ref(lrelu(_conv_hw_ref(resA, w3)), g2, b2)
    return resA + shortcut


# --------------------------------------------------------------------------
if __name__ == "__main__":
    key = jax.random.PRNGKey(0)
    B, D, H, W = 2, 4, 16, 16          # H*W = 256 -> lane-dense blocks
    C_IN, C_OUT = 16, 32

    keys = jax.random.split(key, 13)
    x = jax.random.normal(keys[0], (B, D, C_IN, H, W), dtype=jnp.float32)

    def wt(k, c_in, c_out):
        return 0.1 * jax.random.normal(k, (3, 3, c_in, c_out), dtype=jnp.float32)

    w1 = wt(keys[1], C_IN, C_OUT)       # conv1   : (1,3,3) over (H, W)
    w1_2 = wt(keys[2], C_OUT, C_OUT)    # conv1_2 : (3,1,3) over (D, W)
    w2 = wt(keys[3], C_IN, C_OUT)       # conv2   : (3,1,3) over (D, W)
    w3 = wt(keys[4], C_OUT, C_OUT)      # conv3   : (1,3,3) over (H, W)

    def bn_params(kg, kb):
        g = 1.0 + 0.05 * jax.random.normal(kg, (C_OUT,), dtype=jnp.float32)
        b = 0.05 * jax.random.normal(kb, (C_OUT,), dtype=jnp.float32)
        return g, b

    g0, b0 = bn_params(keys[5], keys[6])
    g0_2, b0_2 = bn_params(keys[7], keys[8])
    g1, b1 = bn_params(keys[9], keys[10])
    g2, b2 = bn_params(keys[11], keys[12])

    ref = jax.block_until_ready(
        res_context_block_ref(x, w1, w1_2, w2, w3,
                              g0, b0, g0_2, b0_2, g1, b1, g2, b2))

    # f32 intermediates: strict check against the f32 reference.
    out = jax.block_until_ready(
        res_context_block(x, w1, w1_2, w2, w3,
                          g0, b0, g0_2, b0_2, g1, b1, g2, b2))
    assert out.shape == (B, D, C_OUT, H, W)
    max_err = jnp.max(jnp.abs(out - ref))
    assert jnp.allclose(out, ref, rtol=1e-2, atol=1e-2), (
        f"f32 mismatch vs reference, max abs err = {max_err}")

    # bf16 intermediates (halved HBM traffic for y1/y2/z1/z2): sanity check
    # only, since the reference is f32 end-to-end.
    out_bf16 = jax.block_until_ready(
        res_context_block(x, w1, w1_2, w2, w3,
                          g0, b0, g0_2, b0_2, g1, b1, g2, b2,
                          act_dtype=jnp.bfloat16))
    max_err_bf16 = jnp.max(jnp.abs(out_bf16 - ref))
    assert bool(jnp.isfinite(max_err_bf16)) and float(max_err_bf16) < 0.25, (
        f"bf16 mismatch vs reference, max abs err = {max_err_bf16}")

    print("KERNEL_OK")
</pallas_src>

<mosaic_0001>
module attributes {stable_mosaic.version = 11 : i64} {
  func.func @_dual_conv_kernel(%arg0: i32, %arg1: i32, %arg2: memref<1x4x16x256xf32, #tpu.memory_space<vmem>>, %arg3: memref<1x1x16x256xf32, #tpu.memory_space<vmem>>, %arg4: memref<1x1x16x256xf32, #tpu.memory_space<vmem>>, %arg5: memref<32x144xf32, #tpu.memory_space<vmem>>, %arg6: memref<32x144xf32, #tpu.memory_space<vmem>>, %arg7: memref<4x256xf32, #tpu.memory_space<vmem>>, %arg8: memref<1x4x32x256xf32, #tpu.memory_space<vmem>>, %arg9: memref<1x4x32x256xf32, #tpu.memory_space<vmem>>, %arg10: memref<1x1x32x4xf32, #tpu.memory_space<vmem>>) attributes {dimension_semantics = [#tpu.dimension_semantics<parallel>, #tpu.dimension_semantics<parallel>], iteration_bounds = array<i64: 2, 1>, scalar_prefetch = 0 : i64, scratch_operands = 0 : i64, tpu.core_type = #tpu.core_type<tc>, window_params = [{transform_indices = @transform_0, window_bounds = array<i64: 1, 4, 16, 256>}, {transform_indices = @transform_1, window_bounds = array<i64: 1, 1, 16, 256>}, {transform_indices = @transform_2, window_bounds = array<i64: 1, 1, 16, 256>}, {pipeline_mode = #tpu.pipeline_mode<synchronous>, transform_indices = @transform_3, window_bounds = array<i64: 32, 144>}, {pipeline_mode = #tpu.pipeline_mode<synchronous>, transform_indices = @transform_4, window_bounds = array<i64: 32, 144>}, {pipeline_mode = #tpu.pipeline_mode<synchronous>, transform_indices = @transform_5, window_bounds = array<i64: 4, 256>}, {transform_indices = @transform_6, window_bounds = array<i64: 1, 4, 32, 256>}, {transform_indices = @transform_7, window_bounds = array<i64: 1, 4, 32, 256>}, {transform_indices = @transform_8, window_bounds = array<i64: 1, 1, 32, 4>}]} {
    %c0 = arith.constant 0 : index
    %c0_0 = arith.constant 0 : index
    %0 = vector.load %arg7[%c0, %c0_0] : memref<4x256xf32, #tpu.memory_space<vmem>>, vector<1x256xf32>
    %c1 = arith.constant 1 : index
    %c0_1 = arith.constant 0 : index
    %1 = vector.load %arg7[%c1, %c0_1] : memref<4x256xf32, #tpu.memory_space<vmem>>, vector<1x256xf32>
    %c2 = arith.constant 2 : index
    %c0_2 = arith.constant 0 : index
    %2 = vector.load %arg7[%c2, %c0_2] : memref<4x256xf32, #tpu.memory_space<vmem>>, vector<1x256xf32>
    %c3 = arith.constant 3 : index
    %c0_3 = arith.constant 0 : index
    %3 = vector.load %arg7[%c3, %c0_3] : memref<4x256xf32, #tpu.memory_space<vmem>>, vector<1x256xf32>
    %c0_4 = arith.constant 0 : index
    %c0_5 = arith.constant 0 : index
    %4 = vector.load %arg5[%c0_4, %c0_5] : memref<32x144xf32, #tpu.memory_space<vmem>>, vector<32x144xf32>
    %c0_6 = arith.constant 0 : index
    %c0_7 = arith.constant 0 : index
    %5 = vector.load %arg6[%c0_6, %c0_7] : memref<32x144xf32, #tpu.memory_space<vmem>>, vector<32x144xf32>
    %c0_8 = arith.constant 0 : index
    %c0_9 = arith.constant 0 : index
    %c0_10 = arith.constant 0 : index
    %c0_11 = arith.constant 0 : index
    %6 = vector.load %arg2[%c0_8, %c0_9, %c0_10, %c0_11] : memref<1x4x16x256xf32, #tpu.memory_space<vmem>>, vector<1x1x16x256xf32>
    %7 = vector.shape_cast %6 : vector<1x1x16x256xf32> to vector<16x256xf32>
    %c0_12 = arith.constant 0 : index
    %c1_13 = arith.constant 1 : index
    %c0_14 = arith.constant 0 : index
    %c0_15 = arith.constant 0 : index
    %8 = vector.load %arg2[%c0_12, %c1_13, %c0_14, %c0_15] : memref<1x4x16x256xf32, #tpu.memory_space<vmem>>, vector<1x1x16x256xf32>
    %9 = vector.shape_cast %8 : vector<1x1x16x256xf32> to vector<16x256xf32>
    %c0_16 = arith.constant 0 : index
    %c2_17 = arith.constant 2 : index
    %c0_18 = arith.constant 0 : index
    %c0_19 = arith.constant 0 : index
    %10 = vector.load %arg2[%c0_16, %c2_17, %c0_18, %c0_19] : memref<1x4x16x256xf32, #tpu.memory_space<vmem>>, vector<1x1x16x256xf32>
    %11 = vector.shape_cast %10 : vector<1x1x16x256xf32> to vector<16x256xf32>
    %c0_20 = arith.constant 0 : index
    %c3_21 = arith.constant 3 : index
    %c0_22 = arith.constant 0 : index
    %c0_23 = arith.constant 0 : index
    %12 = vector.load %arg2[%c0_20, %c3_21, %c0_22, %c0_23] : memref<1x4x16x256xf32, #tpu.memory_space<vmem>>, vector<1x1x16x256xf32>
    %13 = vector.shape_cast %12 : vector<1x1x16x256xf32> to vector<16x256xf32>
    %c0_i32 = arith.constant 0 : i32
    %14 = arith.cmpi sgt, %arg1, %c0_i32 : i32
    %15 = arith.extui %14 : i1 to i32
    %16 = arith.sitofp %15 : i32 to f32
    %c0_i32_24 = arith.constant 0 : i32
    %17 = arith.cmpi slt, %arg1, %c0_i32_24 : i32
    %18 = arith.extui %17 : i1 to i32
    %19 = arith.sitofp %18 : i32 to f32
    %c0_25 = arith.constant 0 : index
    %c0_26 = arith.constant 0 : index
    %c0_27 = arith.constant 0 : index
    %c0_28 = arith.constant 0 : index
    %20 = vector.load %arg3[%c0_25, %c0_26, %c0_27, %c0_28] : memref<1x1x16x256xf32, #tpu.memory_space<vmem>>, vector<1x1x16x256xf32>
    %21 = vector.shape_cast %20 : vector<1x1x16x256xf32> to vector<16x256xf32>
    %22 = vector.broadcast %16 : f32 to vector<16x256xf32>
    %23 = arith.mulf %21, %22 : vector<16x256xf32>
    %c0_29 = arith.constant 0 : index
    %c0_30 = arith.constant 0 : index
    %c0_31 = arith.constant 0 : index
    %c0_32 = arith.constant 0 : index
    %24 = vector.load %arg4[%c0_29, %c0_30, %c0_31, %c0_32] : memref<1x1x16x256xf32, #tpu.memory_space<vmem>>, vector<1x1x16x256xf32>
    %25 = vector.shape_cast %24 : vector<1x1x16x256xf32> to vector<16x256xf32>
    %26 = vector.broadcast %19 : f32 to vector<16x256xf32>
    %27 = arith.mulf %25, %26 : vector<16x256xf32>
    %cst = arith.constant 0.000000e+00 : f32
    %28 = vector.broadcast %cst : f32 to vector<32x1xf32>
    %cst_33 = arith.constant 0.000000e+00 : f32
    %29 = vector.broadcast %cst_33 : f32 to vector<32x1xf32>
    %cst_34 = arith.constant 0.000000e+00 : f32
    %30 = vector.broadcast %cst_34 : f32 to vector<32x1xf32>
    %cst_35 = arith.constant 0.000000e+00 : f32
    %31 = vector.broadcast %cst_35 : f32 to vector<32x1xf32>
    %c16_i32 = arith.constant 16 : i32
    %32 = tpu.dynamic_rotate %7 by %c16_i32 dim 1 : vector<16x256xf32>, i32 -> vector<16x256xf32>
    %33 = vector.broadcast %3 : vector<1x256xf32> to vector<16x256xf32>
    %34 = arith.mulf %32, %33 : vector<16x256xf32>
    %c240_i32 = arith.constant 240 : i32
    %35 = tpu.dynamic_rotate %7 by %c240_i32 dim 1 : vector<16x256xf32>, i32 -> vector<16x256xf32>
    %36 = vector.broadcast %2 : vector<1x256xf32> to vector<16x256xf32>
    %37 = arith.mulf %35, %36 : vector<16x256xf32>
    %c1_i32 = arith.constant 1 : i32
    %38 = tpu.dynamic_rotate %34 by %c1_i32 dim 1 : vector<16x256xf32>, i32 -> vector<16x256xf32>
    %39 = vector.broadcast %1 : vector<1x256xf32> to vector<16x256xf32>
    %40 = arith.mulf %38, %39 : vector<16x256xf32>
    %c255_i32 = arith.constant 255 : i32
    %41 = tpu.dynamic_rotate %34 by %c255_i32 dim 1 : vector<16x256xf32>, i32 -> vector<16x256xf32>
    %42 = vector.broadcast %0 : vector<1x256xf32> to vector<16x256xf32>
    %43 = arith.mulf %41, %42 : vector<16x256xf32>
    %c1_i32_36 = arith.constant 1 : i32
    %44 = tpu.dynamic_rotate %7 by %c1_i32_36 dim 1 : vector<16x256xf32>, i32 -> vector<16x256xf32>
    %45 = vector.broadcast %1 : vector<1x256xf32> to vector<16x256xf32>
    %46 = arith.mulf %44, %45 : vector<16x256xf32>
    %c255_i32_37 = arith.constant 255 : i32
    %47 = tpu.dynamic_rotate %7 by %c255_i32_37 dim 1 : vector<16x256xf32>, i32 -> vector<16x256xf32>
    %48 = vector.broadcast %0 : vector<1x256xf32> to vector<16x256xf32>
    %49 = arith.mulf %47, %48 : vector<16x256xf32>
    %c1_i32_38 = arith.constant 1 : i32
    %50 = tpu.dynamic_rotate %37 by %c1_i32_38 dim 1 : vector<16x256xf32>, i32 -> vector<16x256xf32>
    %51 = vector.broadcast %1 : vector<1x256xf32> to vector<16x256xf32>
    %52 = arith.mulf %50, %51 : vector<16x256xf32>
    %c255_i32_39 = arith.constant 255 : i32
    %53 = tpu.dynamic_rotate %37 by %c255_i32_39 dim 1 : vector<16x256xf32>, i32 -> vector<16x256xf32>
    %54 = vector.broadcast %0 : vector<1x256xf32> to vector<16x256xf32>
    %55 = arith.mulf %53, %54 : vector<16x256xf32>
    %56 = tpu.concatenate %40, %34, %43, %46, %7, %49, %52, %37, %55 in 0 : vector<16x256xf32>, vector<16x256xf32>, vector<16x256xf32>, vector<16x256xf32>, vector<16x256xf32>, vector<16x256xf32>, vector<16x256xf32>, vector<16x256xf32>, vector<16x256xf32> -> vector<144x256xf32>
    %cst_40 = arith.constant dense<0.000000e+00> : vector<32x256xf32>
    %57 = tpu.matmul %4, %56, %cst_40 {dimension_numbers = #tpu.dot_dimension_numbers<[1], [0], [0], [1], [0, 0, 1, 1], [], []>} : vector<32x144xf32>, vector<144x256xf32>, vector<32x256xf32> -> vector<32x256xf32>
    %cst_41 = arith.constant 0.000000e+00 : f32
    %58 = vector.broadcast %cst_41 : f32 to vector<32x256xf32>
    %59 = arith.cmpf oge, %57, %58 : vector<32x256xf32>
    %cst_42 = arith.constant 0.00999999977 : f32
    %60 = vector.broadcast %cst_42 : f32 to vector<32x256xf32>
    %61 = arith.mulf %60, %57 : vector<32x256xf32>
    %62 = arith.select %59, %57, %61 : vector<32x256xi1>, vector<32x256xf32>
    %c0_43 = arith.constant 0 : index
    %c0_44 = arith.constant 0 : index
    %c0_45 = arith.constant 0 : index
    %c0_46 = arith.constant 0 : index
    %63 = vector.load %arg8[%c0_43, %c0_44, %c0_45, %c0_46] : memref<1x4x32x256xf32, #tpu.memory_space<vmem>>, vector<1x1x32x256xf32>
    %64 = vector.shape_cast %63 : vector<1x1x32x256xf32> to vector<32x256xf32>
    %65 = vector.shape_cast %62 : vector<32x256xf32> to vector<1x1x32x256xf32>
    tpu.vector_store %arg8[%c0_43, %c0_44, %c0_45, %c0_46], %65 {strides = array<i32>} : memref<1x4x32x256xf32, #tpu.memory_space<vmem>>, vector<1x1x32x256xf32>,
    %cst_47 = arith.constant dense<0.000000e+00> : vector<32xf32>
    %66 = vector.multi_reduction <add>, %62, %cst_47 [1] : vector<32x256xf32> to vector<32xf32>
    %67 = vector.shape_cast %66 : vector<32xf32> to vector<32x1xf32>
    %68 = arith.addf %28, %67 : vector<32x1xf32>
    %69 = arith.mulf %62, %62 : vector<32x256xf32>
    %cst_48 = arith.constant dense<0.000000e+00> : vector<32xf32>
    %70 = vector.multi_reduction <add>, %69, %cst_48 [1] : vector<32x256xf32> to vector<32xf32>
    %71 = vector.shape_cast %70 : vector<32xf32> to vector<32x1xf32>
    %72 = arith.addf %29, %71 : vector<32x1xf32>
    %c1_i32_49 = arith.constant 1 : i32
    %73 = tpu.dynamic_rotate %23 by %c1_i32_49 dim 1 : vector<16x256xf32>, i32 -> vector<16x256xf32>
    %74 = vector.broadcast %1 : vector<1x256xf32> to vector<16x256xf32>
    %75 = arith.mulf %73, %74 : vector<16x256xf32>
    %c255_i32_50 = arith.constant 255 : i32
    %76 = tpu.dynamic_rotate %23 by %c255_i32_50 dim 1 : vector<16x256xf32>, i32 -> vector<16x256xf32>
    %77 = vector.broadcast %0 : vector<1x256xf32> to vector<16x256xf32>
    %78 = arith.mulf %76, %77 : vector<16x256xf32>
    %c1_i32_51 = arith.constant 1 : i32
    %79 = tpu.dynamic_rotate %7 by %c1_i32_51 dim 1 : vector<16x256xf32>, i32 -> vector<16x256xf32>
    %80 = vector.broadcast %1 : vector<1x256xf32> to vector<16x256xf32>
    %81 = arith.mulf %79, %80 : vector<16x256xf32>
    %c255_i32_52 = arith.constant 255 : i32
    %82 = tpu.dynamic_rotate %7 by %c255_i32_52 dim 1 : vector<16x256xf32>, i32 -> vector<16x256xf32>
    %83 = vector.broadcast %0 : vector<1x256xf32> to vector<16x256xf32>
    %84 = arith.mulf %82, %83 : vector<16x256xf32>
    %c1_i32_53 = arith.constant 1 : i32
    %85 = tpu.dynamic_rotate %9 by %c1_i32_53 dim 1 : vector<16x256xf32>, i32 -> vector<16x256xf32>
    %86 = vector.broadcast %1 : vector<1x256xf32> to vector<16x256xf32>
    %87 = arith.mulf %85, %86 : vector<16x256xf32>
    %c255_i32_54 = arith.constant 255 : i32
    %88 = tpu.dynamic_rotate %9 by %c255_i32_54 dim 1 : vector<16x256xf32>, i32 -> vector<16x256xf32>
    %89 = vector.broadcast %0 : vector<1x256xf32> to vector<16x256xf32>
    %90 = arith.mulf %88, %89 : vector<16x256xf32>
    %91 = tpu.concatenate %75, %23, %78, %81, %7, %84, %87, %9, %90 in 0 : vector<16x256xf32>, vector<16x256xf32>, vector<16x256xf32>, vector<16x256xf32>, vector<16x256xf32>, vector<16x256xf32>, vector<16x256xf32>, vector<16x256xf32>, vector<16x256xf32> -> vector<144x256xf32>
    %cst_55 = arith.constant dense<0.000000e+00> : vector<32x256xf32>
    %92 = tpu.matmul %5, %91, %cst_55 {dimension_numbers = #tpu.dot_dimension_numbers<[1], [0], [0], [1], [0, 0, 1, 1], [], []>} : vector<32x144xf32>, vector<144x256xf32>, vector<32x256xf32> -> vector<32x256xf32>
    %cst_56 = arith.constant 0.000000e+00 : f32
    %93 = vector.broadcast %cst_56 : f32 to vector<32x256xf32>
    %94 = arith.cmpf oge, %92, %93 : vector<32x256xf32>
    %cst_57 = arith.constant 0.00999999977 : f32
    %95 = vector.broadcast %cst_57 : f32 to vector<32x256xf32>
    %96 = arith.mulf %95, %92 : vector<32x256xf32>
    %97 = arith.select %94, %92, %96 : vector<32x256xi1>, vector<32x256xf32>
    %c0_58 = arith.constant 0 : index
    %c0_59 = arith.constant 0 : index
    %c0_60 = arith.constant 0 : index
    %c0_61 = arith.constant 0 : index
    %98 = vector.load %arg9[%c0_58, %c0_59, %c0_60, %c0_61] : memref<1x4x32x256xf32, #tpu.memory_space<vmem>>, vector<1x1x32x256xf32>
    %99 = vector.shape_cast %98 : vector<1x1x32x256xf32> to vector<32x256xf32>
    %100 = vector.shape_cast %97 : vector<32x256xf32> to vector<1x1x32x256xf32>
    tpu.vector_store %arg9[%c0_58, %c0_59, %c0_60, %c0_61], %100 {strides = array<i32>} : memref<1x4x32x256xf32, #tpu.memory_space<vmem>>, vector<1x1x32x256xf32>,
    %cst_62 = arith.constant dense<0.000000e+00> : vector<32xf32>
    %101 = vector.multi_reduction <add>, %97, %cst_62 [1] : vector<32x256xf32> to vector<32xf32>
    %102 = vector.shape_cast %101 : vector<32xf32> to vector<32x1xf32>
    %103 = arith.addf %30, %102 : vector<32x1xf32>
    %104 = arith.mulf %97, %97 : vector<32x256xf32>
    %cst_63 = arith.constant dense<0.000000e+00> : vector<32xf32>
    %105 = vector.multi_reduction <add>, %104, %cst_63 [1] : vector<32x256xf32> to vector<32xf32>
    %106 = vector.shape_cast %105 : vector<32xf32> to vector<32x1xf32>
    %107 = arith.addf %31, %106 : vector<32x1xf32>
    %c16_i32_64 = arith.constant 16 : i32
    %108 = tpu.dynamic_rotate %9 by %c16_i32_64 dim 1 : vector<16x256xf32>, i32 -> vector<16x256xf32>
    %109 = vector.broadcast %3 : vector<1x256xf32> to vector<16x256xf32>
    %110 = arith.mulf %108, %109 : vector<16x256xf32>
    %c240_i32_65 = arith.constant 240 : i32
    %111 = tpu.dynamic_rotate %9 by %c240_i32_65 dim 1 : vector<16x256xf32>, i32 -> vector<16x256xf32>
    %112 = vector.broadcast %2 : vector<1x256xf32> to vector<16x256xf32>
    %113 = arith.mulf %111, %112 : vector<16x256xf32>
    %c1_i32_66 = arith.constant 1 : i32
    %114 = tpu.dynamic_rotate %110 by %c1_i32_66 dim 1 : vector<16x256xf32>, i32 -> vector<16x256xf32>
    %115 = vector.broadcast %1 : vector<1x256xf32> to vector<16x256xf32>
    %116 = arith.mulf %114, %115 : vector<16x256xf32>
    %c255_i32_67 = arith.constant 255 : i32
    %117 = tpu.dynamic_rotate %110 by %c255_i32_67 dim 1 : vector<16x256xf32>, i32 -> vector<16x256xf32>
    %118 = vector.broadcast %0 : vector<1x256xf32> to vector<16x256xf32>
    %119 = arith.mulf %117, %118 : vector<16x256xf32>
    %c1_i32_68 = arith.constant 1 : i32
    %120 = tpu.dynamic_rotate %9 by %c1_i32_68 dim 1 : vector<16x256xf32>, i32 -> vector<16x256xf32>
    %121 = vector.broadcast %1 : vector<1x256xf32> to vector<16x256xf32>
    %122 = arith.mulf %120, %121 : vector<16x256xf32>
    %c255_i32_69 = arith.constant 255 : i32
    %123 = tpu.dynamic_rotate %9 by %c255_i32_69 dim 1 : vector<16x256xf32>, i32 -> vector<16x256xf32>
    %124 = vector.broadcast %0 : vector<1x256xf32> to vector<16x256xf32>
    %125 = arith.mulf %123, %124 : vector<16x256xf32>
    %c1_i32_70 = arith.constant 1 : i32
    %126 = tpu.dynamic_rotate %113 by %c1_i32_70 dim 1 : vector<16x256xf32>, i32 -> vector<16x256xf32>
    %127 = vector.broadcast %1 : vector<1x256xf32> to vector<16x256xf32>
    %128 = arith.mulf %126, %127 : vector<16x256xf32>
    %c255_i32_71 = arith.constant 255 : i32
    %129 = tpu.dynamic_rotate %113 by %c255_i32_71 dim 1 : vector<16x256xf32>, i32 -> vector<16x256xf32>
    %130 = vector.broadcast %0 : vector<1x256xf32> to vector<16x256xf32>
    %131 = arith.mulf %129, %130 : vector<16x256xf32>
    %132 = tpu.concatenate %116, %110, %119, %122, %9, %125, %128, %113, %131 in 0 : vector<16x256xf32>, vector<16x256xf32>, vector<16x256xf32>, vector<16x256xf32>, vector<16x256xf32>, vector<16x256xf32>, vector<16x256xf32>, vector<16x256xf32>, vector<16x256xf32> -> vector<144x256xf32>
    %cst_72 = arith.constant dense<0.000000e+00> : vector<32x256xf32>
    %133 = tpu.matmul %4, %132, %cst_72 {dimension_numbers = #tpu.dot_dimension_numbers<[1], [0], [0], [1], [0, 0, 1, 1], [], []>} : vector<32x144xf32>, vector<144x256xf32>, vector<32x256xf32> -> vector<32x256xf32>
    %cst_73 = arith.constant 0.000000e+00 : f32
    %134 = vector.broadcast %cst_73 : f32 to vector<32x256xf32>
    %135 = arith.cmpf oge, %133, %134 : vector<32x256xf32>
    %cst_74 = arith.constant 0.00999999977 : f32
    %136 = vector.broadcast %cst_74 : f32 to vector<32x256xf32>
    %137 = arith.mulf %136, %133 : vector<32x256xf32>
    %138 = arith.select %135, %133, %137 : vector<32x256xi1>, vector<32x256xf32>
    %c0_75 = arith.constant 0 : index
    %c1_76 = arith.constant 1 : index
    %c0_77 = arith.constant 0 : index
    %c0_78 = arith.constant 0 : index
    %139 = vector.load %arg8[%c0_75, %c1_76, %c0_77, %c0_78] : memref<1x4x32x256xf32, #tpu.memory_space<vmem>>, vector<1x1x32x256xf32>
    %140 = vector.shape_cast %139 : vector<1x1x32x256xf32> to vector<32x256xf32>
    %141 = vector.shape_cast %138 : vector<32x256xf32> to vector<1x1x32x256xf32>
    tpu.vector_store %arg8[%c0_75, %c1_76, %c0_77, %c0_78], %141 {strides = array<i32>} : memref<1x4x32x256xf32, #tpu.memory_space<vmem>>, vector<1x1x32x256xf32>,
    %cst_79 = arith.constant dense<0.000000e+00> : vector<32xf32>
    %142 = vector.multi_reduction <add>, %138, %cst_79 [1] : vector<32x256xf32> to vector<32xf32>
    %143 = vector.shape_cast %142 : vector<32xf32> to vector<32x1xf32>
    %144 = arith.addf %68, %143 : vector<32x1xf32>
    %145 = arith.mulf %138, %138 : vector<32x256xf32>
    %cst_80 = arith.constant dense<0.000000e+00> : vector<32xf32>
    %146 = vector.multi_reduction <add>, %145, %cst_80 [1] : vector<32x256xf32> to vector<32xf32>
    %147 = vector.shape_cast %146 : vector<32xf32> to vector<32x1xf32>
    %148 = arith.addf %72, %147 : vector<32x1xf32>
    %c1_i32_81 = arith.constant 1 : i32
    %149 = tpu.dynamic_rotate %7 by %c1_i32_81 dim 1 : vector<16x256xf32>, i32 -> vector<16x256xf32>
    %150 = vector.broadcast %1 : vector<1x256xf32> to vector<16x256xf32>
    %151 = arith.mulf %149, %150 : vector<16x256xf32>
    %c255_i32_82 = arith.constant 255 : i32
    %152 = tpu.dynamic_rotate %7 by %c255_i32_82 dim 1 : vector<16x256xf32>, i32 -> vector<16x256xf32>
    %153 = vector.broadcast %0 : vector<1x256xf32> to vector<16x256xf32>
    %154 = arith.mulf %152, %153 : vector<16x256xf32>
    %c1_i32_83 = arith.constant 1 : i32
    %155 = tpu.dynamic_rotate %9 by %c1_i32_83 dim 1 : vector<16x256xf32>, i32 -> vector<16x256xf32>
    %156 = vector.broadcast %1 : vector<1x256xf32> to vector<16x256xf32>
    %157 = arith.mulf %155, %156 : vector<16x256xf32>
    %c255_i32_84 = arith.constant 255 : i32
    %158 = tpu.dynamic_rotate %9 by %c255_i32_84 dim 1 : vector<16x256xf32>, i32 -> vector<16x256xf32>
    %159 = vector.broadcast %0 : vector<1x256xf32> to vector<16x256xf32>
    %160 = arith.mulf %158, %159 : vector<16x256xf32>
    %c1_i32_85 = arith.constant 1 : i32
    %161 = tpu.dynamic_rotate %11 by %c1_i32_85 dim 1 : vector<16x256xf32>, i32 -> vector<16x256xf32>
    %162 = vector.broadcast %1 : vector<1x256xf32> to vector<16x256xf32>
    %163 = arith.mulf %161, %162 : vector<16x256xf32>
    %c255_i32_86 = arith.constant 255 : i32
    %164 = tpu.dynamic_rotate %11 by %c255_i32_86 dim 1 : vector<16x256xf32>, i32 -> vector<16x256xf32>
    %165 = vector.broadcast %0 : vector<1x256xf32> to vector<16x256xf32>
    %166 = arith.mulf %164, %165 : vector<16x256xf32>
    %167 = tpu.concatenate %151, %7, %154, %157, %9, %160, %163, %11, %166 in 0 : vector<16x256xf32>, vector<16x256xf32>, vector<16x256xf32>, vector<16x256xf32>, vector<16x256xf32>, vector<16x256xf32>, vector<16x256xf32>, vector<16x256xf32>, vector<16x256xf32> -> vector<144x256xf32>
    %cst_87 = arith.constant dense<0.000000e+00> : vector<32x256xf32>
    %168 = tpu.matmul %5, %167, %cst_87 {dimension_numbers = #tpu.dot_dimension_numbers<[1], [0], [0], [1], [0, 0, 1, 1], [], []>} : vector<32x144xf32>, vector<144x256xf32>, vector<32x256xf32> -> vector<32x256xf32>
    %cst_88 = arith.constant 0.000000e+00 : f32
    %169 = vector.broadcast %cst_88 : f32 to vector<32x256xf32>
    %170 = arith.cmpf oge, %168, %169 : vector<32x256xf32>
    %cst_89 = arith.constant 0.00999999977 : f32
    %171 = vector.broadcast %cst_89 : f32 to vector<32x256xf32>
    %172 = arith.mulf %171, %168 : vector<32x256xf32>
    %173 = arith.select %170, %168, %172 : vector<32x256xi1>, vector<32x256xf32>
    %c0_90 = arith.constant 0 : index
    %c1_91 = arith.constant 1 : index
    %c0_92 = arith.constant 0 : index
    %c0_93 = arith.constant 0 : index
    %174 = vector.load %arg9[%c0_90, %c1_91, %c0_92, %c0_93] : memref<1x4x32x256xf32, #tpu.memory_space<vmem>>, vector<1x1x32x256xf32>
    %175 = vector.shape_cast %174 : vector<1x1x32x256xf32> to vector<32x256xf32>
    %176 = vector.shape_cast %173 : vector<32x256xf32> to vector<1x1x32x256xf32>
    tpu.vector_store %arg9[%c0_90, %c1_91, %c0_92, %c0_93], %176 {strides = array<i32>} : memref<1x4x32x256xf32, #tpu.memory_space<vmem>>, vector<1x1x32x256xf32>,
    %cst_94 = arith.constant dense<0.000000e+00> : vector<32xf32>
    %177 = vector.multi_reduction <add>, %173, %cst_94 [1] : vector<32x256xf32> to vector<32xf32>
    %178 = vector.shape_cast %177 : vector<32xf32> to vector<32x1xf32>
    %179 = arith.addf %103, %178 : vector<32x1xf32>
    %180 = arith.mulf %173, %173 : vector<32x256xf32>
    %cst_95 = arith.constant dense<0.000000e+00> : vector<32xf32>
    %181 = vector.multi_reduction <add>, %180, %cst_95 [1] : vector<32x256xf32> to vector<32xf32>
    %182 = vector.shape_cast %181 : vector<32xf32> to vector<32x1xf32>
    %183 = arith.addf %107, %182 : vector<32x1xf32>
    %c16_i32_96 = arith.constant 16 : i32
    %184 = tpu.dynamic_rotate %11 by %c16_i32_96 dim 1 : vector<16x256xf32>, i32 -> vector<16x256xf32>
    %185 = vector.broadcast %3 : vector<1x256xf32> to vector<16x256xf32>
    %186 = arith.mulf %184, %185 : vector<16x256xf32>
    %c240_i32_97 = arith.constant 240 : i32
    %187 = tpu.dynamic_rotate %11 by %c240_i32_97 dim 1 : vector<16x256xf32>, i32 -> vector<16x256xf32>
    %188 = vector.broadcast %2 : vector<1x256xf32> to vector<16x256xf32>
    %189 = arith.mulf %187, %188 : vector<16x256xf32>
    %c1_i32_98 = arith.constant 1 : i32
    %190 = tpu.dynamic_rotate %186 by %c1_i32_98 dim 1 : vector<16x256xf32>, i32 -> vector<16x256xf32>
    %191 = vector.broadcast %1 : vector<1x256xf32> to vector<16x256xf32>
    %192 = arith.mulf %190, %191 : vector<16x256xf32>
    %c255_i32_99 = arith.constant 255 : i32
    %193 = tpu.dynamic_rotate %186 by %c255_i32_99 dim 1 : vector<16x256xf32>, i32 -> vector<16x256xf32>
    %194 = vector.broadcast %0 : vector<1x256xf32> to vector<16x256xf32>
    %195 = arith.mulf %193, %194 : vector<16x256xf32>
    %c1_i32_100 = arith.constant 1 : i32
    %196 = tpu.dynamic_rotate %11 by %c1_i32_100 dim 1 : vector<16x256xf32>, i32 -> vector<16x256xf32>
    %197 = vector.broadcast %1 : vector<1x256xf32> to vector<16x256xf32>
    %198 = arith.mulf %196, %197 : vector<16x256xf32>
    %c255_i32_101 = arith.constant 255 : i32
    %199 = tpu.dynamic_rotate %11 by %c255_i32_101 dim 1 : vector<16x256xf32>, i32 -> vector<16x256xf32>
    %200 = vector.broadcast %0 : vector<1x256xf32> to vector<16x256xf32>
    %201 = arith.mulf %199, %200 : vector<16x256xf32>
    %c1_i32_102 = arith.constant 1 : i32
    %202 = tpu.dynamic_rotate %189 by %c1_i32_102 dim 1 : vector<16x256xf32>, i32 -> vector<16x256xf32>
    %203 = vector.broadcast %1 : vector<1x256xf32> to vector<16x256xf32>
    %204 = arith.mulf %202, %203 : vector<16x256xf32>
    %c255_i32_103 = arith.constant 255 : i32
    %205 = tpu.dynamic_rotate %189 by %c255_i32_103 dim 1 : vector<16x256xf32>, i32 -> vector<16x256xf32>
    %206 = vector.broadcast %0 : vector<1x256xf32> to vector<16x256xf32>
    %207 = arith.mulf %205, %206 : vector<16x256xf32>
    %208 = tpu.concatenate %192, %186, %195, %198, %11, %201, %204, %189, %207 in 0 : vector<16x256xf32>, vector<16x256xf32>, vector<16x256xf32>, vector<16x256xf32>, vector<16x256xf32>, vector<16x256xf32>, vector<16x256xf32>, vector<16x256xf32>, vector<16x256xf32> -> vector<144x256xf32>
    %cst_104 = arith.constant dense<0.000000e+00> : vector<32x256xf32>
    %209 = tpu.matmul %4, %208, %cst_104 {dimension_numbers = #tpu.dot_dimension_numbers<[1], [0], [0], [1], [0, 0, 1, 1], [], []>} : vector<32x144xf32>, vector<144x256xf32>, vector<32x256xf32> -> vector<32x256xf32>
    %cst_105 = arith.constant 0.000000e+00 : f32
    %210 = vector.broadcast %cst_105 : f32 to vector<32x256xf32>
    %211 = arith.cmpf oge, %209, %210 : vector<32x256xf32>
    %cst_106 = arith.constant 0.00999999977 : f32
    %212 = vector.broadcast %cst_106 : f32 to vector<32x256xf32>
    %213 = arith.mulf %212, %209 : vector<32x256xf32>
    %214 = arith.select %211, %209, %213 : vector<32x256xi1>, vector<32x256xf32>
    %c0_107 = arith.constant 0 : index
    %c2_108 = arith.constant 2 : index
    %c0_109 = arith.constant 0 : index
    %c0_110 = arith.constant 0 : index
    %215 = vector.load %arg8[%c0_107, %c2_108, %c0_109, %c0_110] : memref<1x4x32x256xf32, #tpu.memory_space<vmem>>, vector<1x1x32x256xf32>
    %216 = vector.shape_cast %215 : vector<1x1x32x256xf32> to vector<32x256xf32>
    %217 = vector.shape_cast %214 : vector<32x256xf32> to vector<1x1x32x256xf32>
    tpu.vector_store %arg8[%c0_107, %c2_108, %c0_109, %c0_110], %217 {strides = array<i32>} : memref<1x4x32x256xf32, #tpu.memory_space<vmem>>, vector<1x1x32x256xf32>,
    %cst_111 = arith.constant dense<0.000000e+00> : vector<32xf32>
    %218 = vector.multi_reduction <add>, %214, %cst_111 [1] : vector<32x256xf32> to vector<32xf32>
    %219 = vector.shape_cast %218 : vector<32xf32> to vector<32x1xf32>
    %220 = arith.addf %144, %219 : vector<32x1xf32>
    %221 = arith.mulf %214, %214 : vector<32x256xf32>
    %cst_112 = arith.constant dense<0.000000e+00> : vector<32xf32>
    %222 = vector.multi_reduction <add>, %221, %cst_112 [1] : vector<32x256xf32> to vector<32xf32>
    %223 = vector.shape_cast %222 : vector<32xf32> to vector<32x1xf32>
    %224 = arith.addf %148, %223 : vector<32x1xf32>
    %c1_i32_113 = arith.constant 1 : i32
    %225 = tpu.dynamic_rotate %9 by %c1_i32_113 dim 1 : vector<16x256xf32>, i32 -> vector<16x256xf32>
    %226 = vector.broadcast %1 : vector<1x256xf32> to vector<16x256xf32>
    %227 = arith.mulf %225, %226 : vector<16x256xf32>
    %c255_i32_114 = arith.constant 255 : i32
    %228 = tpu.dynamic_rotate %9 by %c255_i32_114 dim 1 : vector<16x256xf32>, i32 -> vector<16x256xf32>
    %229 = vector.broadcast %0 : vector<1x256xf32> to vector<16x256xf32>
    %230 = arith.mulf %228, %229 : vector<16x256xf32>
    %c1_i32_115 = arith.constant 1 : i32
    %231 = tpu.dynamic_rotate %11 by %c1_i32_115 dim 1 : vector<16x256xf32>, i32 -> vector<16x256xf32>
    %232 = vector.broadcast %1 : vector<1x256xf32> to vector<16x256xf32>
    %233 = arith.mulf %231, %232 : vector<16x256xf32>
    %c255_i32_116 = arith.constant 255 : i32
    %234 = tpu.dynamic_rotate %11 by %c255_i32_116 dim 1 : vector<16x256xf32>, i32 -> vector<16x256xf32>
    %235 = vector.broadcast %0 : vector<1x256xf32> to vector<16x256xf32>
    %236 = arith.mulf %234, %235 : vector<16x256xf32>
    %c1_i32_117 = arith.constant 1 : i32
    %237 = tpu.dynamic_rotate %13 by %c1_i32_117 dim 1 : vector<16x256xf32>, i32 -> vector<16x256xf32>
    %238 = vector.broadcast %1 : vector<1x256xf32> to vector<16x256xf32>
    %239 = arith.mulf %237, %238 : vector<16x256xf32>
    %c255_i32_118 = arith.constant 255 : i32
    %240 = tpu.dynamic_rotate %13 by %c255_i32_118 dim 1 : vector<16x256xf32>, i32 -> vector<16x256xf32>
    %241 = vector.broadcast %0 : vector<1x256xf32> to vector<16x256xf32>
    %242 = arith.mulf %240, %241 : vector<16x256xf32>
    %243 = tpu.concatenate %227, %9, %230, %233, %11, %236, %239, %13, %242 in 0 : vector<16x256xf32>, vector<16x256xf32>, vector<16x256xf32>, vector<16x256xf32>, vector<16x256xf32>, vector<16x256xf32>, vector<16x256xf32>, vector<16x256xf32>, vector<16x256xf32> -> vector<144x256xf32>
    %cst_119 = arith.constant dense<0.000000e+00> : vector<32x256xf32>
    %244 = tpu.matmul %5, %243, %cst_119 {dimension_numbers = #tpu.dot_dimension_numbers<[1], [0], [0], [1], [0, 0, 1, 1], [], []>} : vector<32x144xf32>, vector<144x256xf32>, vector<32x256xf32> -> vector<32x256xf32>
    %cst_120 = arith.constant 0.000000e+00 : f32
    %245 = vector.broadcast %cst_120 : f32 to vector<32x256xf32>
    %246 = arith.cmpf oge, %244, %245 : vector<32x256xf32>
    %cst_121 = arith.constant 0.00999999977 : f32
    %247 = vector.broadcast %cst_121 : f32 to vector<32x256xf32>
    %248 = arith.mulf %247, %244 : vector<32x256xf32>
    %249 = arith.select %246, %244, %248 : vector<32x256xi1>, vector<32x256xf32>
    %c0_122 = arith.constant 0 : index
    %c2_123 = arith.constant 2 : index
    %c0_124 = arith.constant 0 : index
    %c0_125 = arith.constant 0 : index
    %250 = vector.load %arg9[%c0_122, %c2_123, %c0_124, %c0_125] : memref<1x4x32x256xf32, #tpu.memory_space<vmem>>, vector<1x1x32x256xf32>
    %251 = vector.shape_cast %250 : vector<1x1x32x256xf32> to vector<32x256xf32>
    %252 = vector.shape_cast %249 : vector<32x256xf32> to vector<1x1x32x256xf32>
    tpu.vector_store %arg9[%c0_122, %c2_123, %c0_124, %c0_125], %252 {strides = array<i32>} : memref<1x4x32x256xf32, #tpu.memory_space<vmem>>, vector<1x1x32x256xf32>,
    %cst_126 = arith.constant dense<0.000000e+00> : vector<32xf32>
    %253 = vector.multi_reduction <add>, %249, %cst_126 [1] : vector<32x256xf32> to vector<32xf32>
    %254 = vector.shape_cast %253 : vector<32xf32> to vector<32x1xf32>
    %255 = arith.addf %179, %254 : vector<32x1xf32>
    %256 = arith.mulf %249, %249 : vector<32x256xf32>
    %cst_127 = arith.constant dense<0.000000e+00> : vector<32xf32>
    %257 = vector.multi_reduction <add>, %256, %cst_127 [1] : vector<32x256xf32> to vector<32xf32>
    %258 = vector.shape_cast %257 : vector<32xf32> to vector<32x1xf32>
    %259 = arith.addf %183, %258 : vector<32x1xf32>
    %c16_i32_128 = arith.constant 16 : i32
    %260 = tpu.dynamic_rotate %13 by %c16_i32_128 dim 1 : vector<16x256xf32>, i32 -> vector<16x256xf32>
    %261 = vector.broadcast %3 : vector<1x256xf32> to vector<16x256xf32>
    %262 = arith.mulf %260, %261 : vector<16x256xf32>
    %c240_i32_129 = arith.constant 240 : i32
    %263 = tpu.dynamic_rotate %13 by %c240_i32_129 dim 1 : vector<16x256xf32>, i32 -> vector<16x256xf32>
    %264 = vector.broadcast %2 : vector<1x256xf32> to vector<16x256xf32>
    %265 = arith.mulf %263, %264 : vector<16x256xf32>
    %c1_i32_130 = arith.constant 1 : i32
    %266 = tpu.dynamic_rotate %262 by %c1_i32_130 dim 1 : vector<16x256xf32>, i32 -> vector<16x256xf32>
    %267 = vector.broadcast %1 : vector<1x256xf32> to vector<16x256xf32>
    %268 = arith.mulf %266, %267 : vector<16x256xf32>
    %c255_i32_131 = arith.constant 255 : i32
    %269 = tpu.dynamic_rotate %262 by %c255_i32_131 dim 1 : vector<16x256xf32>, i32 -> vector<16x256xf32>
    %270 = vector.broadcast %0 : vector<1x256xf32> to vector<16x256xf32>
    %271 = arith.mulf %269, %270 : vector<16x256xf32>
    %c1_i32_132 = arith.constant 1 : i32
    %272 = tpu.dynamic_rotate %13 by %c1_i32_132 dim 1 : vector<16x256xf32>, i32 -> vector<16x256xf32>
    %273 = vector.broadcast %1 : vector<1x256xf32> to vector<16x256xf32>
    %274 = arith.mulf %272, %273 : vector<16x256xf32>
    %c255_i32_133 = arith.constant 255 : i32
    %275 = tpu.dynamic_rotate %13 by %c255_i32_133 dim 1 : vector<16x256xf32>, i32 -> vector<16x256xf32>
    %276 = vector.broadcast %0 : vector<1x256xf32> to vector<16x256xf32>
    %277 = arith.mulf %275, %276 : vector<16x256xf32>
    %c1_i32_134 = arith.constant 1 : i32
    %278 = tpu.dynamic_rotate %265 by %c1_i32_134 dim 1 : vector<16x256xf32>, i32 -> vector<16x256xf32>
    %279 = vector.broadcast %1 : vector<1x256xf32> to vector<16x256xf32>
    %280 = arith.mulf %278, %279 : vector<16x256xf32>
    %c255_i32_135 = arith.constant 255 : i32
    %281 = tpu.dynamic_rotate %265 by %c255_i32_135 dim 1 : vector<16x256xf32>, i32 -> vector<16x256xf32>
    %282 = vector.broadcast %0 : vector<1x256xf32> to vector<16x256xf32>
    %283 = arith.mulf %281, %282 : vector<16x256xf32>
    %284 = tpu.concatenate %268, %262, %271, %274, %13, %277, %280, %265, %283 in 0 : vector<16x256xf32>, vector<16x256xf32>, vector<16x256xf32>, vector<16x256xf32>, vector<16x256xf32>, vector<16x256xf32>, vector<16x256xf32>, vector<16x256xf32>, vector<16x256xf32> -> vector<144x256xf32>
    %cst_136 = arith.constant dense<0.000000e+00> : vector<32x256xf32>
    %285 = tpu.matmul %4, %284, %cst_136 {dimension_numbers = #tpu.dot_dimension_numbers<[1], [0], [0], [1], [0, 0, 1, 1], [], []>} : vector<32x144xf32>, vector<144x256xf32>, vector<32x256xf32> -> vector<32x256xf32>
    %cst_137 = arith.constant 0.000000e+00 : f32
    %286 = vector.broadcast %cst_137 : f32 to vector<32x256xf32>
    %287 = arith.cmpf oge, %285, %286 : vector<32x256xf32>
    %cst_138 = arith.constant 0.00999999977 : f32
    %288 = vector.broadcast %cst_138 : f32 to vector<32x256xf32>
    %289 = arith.mulf %288, %285 : vector<32x256xf32>
    %290 = arith.select %287, %285, %289 : vector<32x256xi1>, vector<32x256xf32>
    %c0_139 = arith.constant 0 : index
    %c3_140 = arith.constant 3 : index
    %c0_141 = arith.constant 0 : index
    %c0_142 = arith.constant 0 : index
    %291 = vector.load %arg8[%c0_139, %c3_140, %c0_141, %c0_142] : memref<1x4x32x256xf32, #tpu.memory_space<vmem>>, vector<1x1x32x256xf32>
    %292 = vector.shape_cast %291 : vector<1x1x32x256xf32> to vector<32x256xf32>
    %293 = vector.shape_cast %290 : vector<32x256xf32> to vector<1x1x32x256xf32>
    tpu.vector_store %arg8[%c0_139, %c3_140, %c0_141, %c0_142], %293 {strides = array<i32>} : memref<1x4x32x256xf32, #tpu.memory_space<vmem>>, vector<1x1x32x256xf32>,
    %cst_143 = arith.constant dense<0.000000e+00> : vector<32xf32>
    %294 = vector.multi_reduction <add>, %290, %cst_143 [1] : vector<32x256xf32> to vector<32xf32>
    %295 = vector.shape_cast %294 : vector<32xf32> to vector<32x1xf32>
    %296 = arith.addf %220, %295 : vector<32x1xf32>
    %297 = arith.mulf %290, %290 : vector<32x256xf32>
    %cst_144 = arith.constant dense<0.000000e+00> : vector<32xf32>
    %298 = vector.multi_reduction <add>, %297, %cst_144 [1] : vector<32x256xf32> to vector<32xf32>
    %299 = vector.shape_cast %298 : vector<32xf32> to vector<32x1xf32>
    %300 = arith.addf %224, %299 : vector<32x1xf32>
    %c1_i32_145 = arith.constant 1 : i32
    %301 = tpu.dynamic_rotate %11 by %c1_i32_145 dim 1 : vector<16x256xf32>, i32 -> vector<16x256xf32>
    %302 = vector.broadcast %1 : vector<1x256xf32> to vector<16x256xf32>
    %303 = arith.mulf %301, %302 : vector<16x256xf32>
    %c255_i32_146 = arith.constant 255 : i32
    %304 = tpu.dynamic_rotate %11 by %c255_i32_146 dim 1 : vector<16x256xf32>, i32 -> vector<16x256xf32>
    %305 = vector.broadcast %0 : vector<1x256xf32> to vector<16x256xf32>
    %306 = arith.mulf %304, %305 : vector<16x256xf32>
    %c1_i32_147 = arith.constant 1 : i32
    %307 = tpu.dynamic_rotate %13 by %c1_i32_147 dim 1 : vector<16x256xf32>, i32 -> vector<16x256xf32>
    %308 = vector.broadcast %1 : vector<1x256xf32> to vector<16x256xf32>
    %309 = arith.mulf %307, %308 : vector<16x256xf32>
    %c255_i32_148 = arith.constant 255 : i32
    %310 = tpu.dynamic_rotate %13 by %c255_i32_148 dim 1 : vector<16x256xf32>, i32 -> vector<16x256xf32>
    %311 = vector.broadcast %0 : vector<1x256xf32> to vector<16x256xf32>
    %312 = arith.mulf %310, %311 : vector<16x256xf32>
    %c1_i32_149 = arith.constant 1 : i32
    %313 = tpu.dynamic_rotate %27 by %c1_i32_149 dim 1 : vector<16x256xf32>, i32 -> vector<16x256xf32>
    %314 = vector.broadcast %1 : vector<1x256xf32> to vector<16x256xf32>
    %315 = arith.mulf %313, %314 : vector<16x256xf32>
    %c255_i32_150 = arith.constant 255 : i32
    %316 = tpu.dynamic_rotate %27 by %c255_i32_150 dim 1 : vector<16x256xf32>, i32 -> vector<16x256xf32>
    %317 = vector.broadcast %0 : vector<1x256xf32> to vector<16x256xf32>
    %318 = arith.mulf %316, %317 : vector<16x256xf32>
    %319 = tpu.concatenate %303, %11, %306, %309, %13, %312, %315, %27, %318 in 0 : vector<16x256xf32>, vector<16x256xf32>, vector<16x256xf32>, vector<16x256xf32>, vector<16x256xf32>, vector<16x256xf32>, vector<16x256xf32>, vector<16x256xf32>, vector<16x256xf32> -> vector<144x256xf32>
    %cst_151 = arith.constant dense<0.000000e+00> : vector<32x256xf32>
    %320 = tpu.matmul %5, %319, %cst_151 {dimension_numbers = #tpu.dot_dimension_numbers<[1], [0], [0], [1], [0, 0, 1, 1], [], []>} : vector<32x144xf32>, vector<144x256xf32>, vector<32x256xf32> -> vector<32x256xf32>
    %cst_152 = arith.constant 0.000000e+00 : f32
    %321 = vector.broadcast %cst_152 : f32 to vector<32x256xf32>
    %322 = arith.cmpf oge, %320, %321 : vector<32x256xf32>
    %cst_153 = arith.constant 0.00999999977 : f32
    %323 = vector.broadcast %cst_153 : f32 to vector<32x256xf32>
    %324 = arith.mulf %323, %320 : vector<32x256xf32>
    %325 = arith.select %322, %320, %324 : vector<32x256xi1>, vector<32x256xf32>
    %c0_154 = arith.constant 0 : index
    %c3_155 = arith.constant 3 : index
    %c0_156 = arith.constant 0 : index
    %c0_157 = arith.constant 0 : index
    %326 = vector.load %arg9[%c0_154, %c3_155, %c0_156, %c0_157] : memref<1x4x32x256xf32, #tpu.memory_space<vmem>>, vector<1x1x32x256xf32>
    %327 = vector.shape_cast %326 : vector<1x1x32x256xf32> to vector<32x256xf32>
    %328 = vector.shape_cast %325 : vector<32x256xf32> to vector<1x1x32x256xf32>
    tpu.vector_store %arg9[%c0_154, %c3_155, %c0_156, %c0_157], %328 {strides = array<i32>} : memref<1x4x32x256xf32, #tpu.memory_space<vmem>>, vector<1x1x32x256xf32>,
    %cst_158 = arith.constant dense<0.000000e+00> : vector<32xf32>
    %329 = vector.multi_reduction <add>, %325, %cst_158 [1] : vector<32x256xf32> to vector<32xf32>
    %330 = vector.shape_cast %329 : vector<32xf32> to vector<32x1xf32>
    %331 = arith.addf %255, %330 : vector<32x1xf32>
    %332 = arith.mulf %325, %325 : vector<32x256xf32>
    %cst_159 = arith.constant dense<0.000000e+00> : vector<32xf32>
    %333 = vector.multi_reduction <add>, %332, %cst_159 [1] : vector<32x256xf32> to vector<32xf32>
    %334 = vector.shape_cast %333 : vector<32xf32> to vector<32x1xf32>
    %335 = arith.addf %259, %334 : vector<32x1xf32>
    %336 = tpu.concatenate %296, %300, %331, %335 in 1 : vector<32x1xf32>, vector<32x1xf32>, vector<32x1xf32>, vector<32x1xf32> -> vector<32x4xf32>
    %c0_160 = arith.constant 0 : index
    %c0_161 = arith.constant 0 : index
    %c0_162 = arith.constant 0 : index
    %c0_163 = arith.constant 0 : index
    %337 = vector.load %arg10[%c0_160, %c0_161, %c0_162, %c0_163] : memref<1x1x32x4xf32, #tpu.memory_space<vmem>>, vector<1x1x32x4xf32>
    %338 = vector.shape_cast %337 : vector<1x1x32x4xf32> to vector<32x4xf32>
    %339 = vector.shape_cast %336 : vector<32x4xf32> to vector<1x1x32x4xf32>
    tpu.vector_store %arg10[%c0_160, %c0_161, %c0_162, %c0_163], %339 {strides = array<i32>} : memref<1x1x32x4xf32, #tpu.memory_space<vmem>>, vector<1x1x32x4xf32>,
    return
  }
  func.func @transform_0(%arg0: i32, %arg1: i32) -> (i32, i32, i32, i32) {
    %c0_i32 = arith.constant 0 : i32
    %c0_i32_0 = arith.constant 0 : i32
    %c0_i32_1 = arith.constant 0 : i32
    return %arg0, %arg1, %c0_i32, %c0_i32_0 : i32, i32, i32, i32
  }
  func.func @transform_1(%arg0: i32, %arg1: i32) -> (i32, i32, i32, i32) {
    %c4_i32 = arith.constant 4 : i32
    %0 = arith.muli %arg1, %c4_i32 : i32
    %c1_i32 = arith.constant 1 : i32
    %1 = arith.subi %0, %c1_i32 : i32
    %c0_i32 = arith.constant 0 : i32
    %2 = arith.maxsi %1, %c0_i32 : i32
    %c0_i32_0 = arith.constant 0 : i32
    %c0_i32_1 = arith.constant 0 : i32
    %c0_i32_2 = arith.constant 0 : i32
    return %arg0, %2, %c0_i32_0, %c0_i32_1 : i32, i32, i32, i32
  }
  func.func @transform_2(%arg0: i32, %arg1: i32) -> (i32, i32, i32, i32) {
    %c1_i32 = arith.constant 1 : i32
    %0 = arith.addi %arg1, %c1_i32 : i32
    %c4_i32 = arith.constant 4 : i32
    %1 = arith.muli %0, %c4_i32 : i32
    %c3_i32 = arith.constant 3 : i32
    %2 = arith.minsi %1, %c3_i32 : i32
    %c0_i32 = arith.constant 0 : i32
    %c0_i32_0 = arith.constant 0 : i32
    %c0_i32_1 = arith.constant 0 : i32
    return %arg0, %2, %c0_i32, %c0_i32_0 : i32, i32, i32, i32
  }
  func.func @transform_3(%arg0: i32, %arg1: i32) -> (i32, i32) {
    %c0_i32 = arith.constant 0 : i32
    %c0_i32_0 = arith.constant 0 : i32
    %c0_i32_1 = arith.constant 0 : i32
    return %c0_i32, %c0_i32_0 : i32, i32
  }
  func.func @transform_4(%arg0: i32, %arg1: i32) -> (i32, i32) {
    %c0_i32 = arith.constant 0 : i32
    %c0_i32_0 = arith.constant 0 : i32
    %c0_i32_1 = arith.constant 0 : i32
    return %c0_i32, %c0_i32_0 : i32, i32
  }
  func.func @transform_5(%arg0: i32, %arg1: i32) -> (i32, i32) {
    %c0_i32 = arith.constant 0 : i32
    %c0_i32_0 = arith.constant 0 : i32
    %c0_i32_1 = arith.constant 0 : i32
    return %c0_i32, %c0_i32_0 : i32, i32
  }
  func.func @transform_6(%arg0: i32, %arg1: i32) -> (i32, i32, i32, i32) {
    %c0_i32 = arith.constant 0 : i32
    %c0_i32_0 = arith.constant 0 : i32
    %c0_i32_1 = arith.constant 0 : i32
    return %arg0, %arg1, %c0_i32, %c0_i32_0 : i32, i32, i32, i32
  }
  func.func @transform_7(%arg0: i32, %arg1: i32) -> (i32, i32, i32, i32) {
    %c0_i32 = arith.constant 0 : i32
    %c0_i32_0 = arith.constant 0 : i32
    %c0_i32_1 = arith.constant 0 : i32
    return %arg0, %arg1, %c0_i32, %c0_i32_0 : i32, i32, i32, i32
  }
  func.func @transform_8(%arg0: i32, %arg1: i32) -> (i32, i32, i32, i32) {
    %c0_i32 = arith.constant 0 : i32
    %c0_i32_0 = arith.constant 0 : i32
    %c0_i32_1 = arith.constant 0 : i32
    return %arg0, %arg1, %c0_i32, %c0_i32_0 : i32, i32, i32, i32
  }
}

</mosaic_0001>

<llo_original>
// kernel: tpu_custom_call.1
$region0: #{tpu_custom_call.1}
  #allocation0 [shape = 'u32[]', space=smem, size = 0x4, offset = 0x4, fixed_abs, tag = 'smem constant byte address 0x4 - core index']
  #allocation1 [shape = 'u32[144,128]{1,0:T(1,128)}', space=vmem, size = 0x12000, scoped, tag = 'internal scratch']
  %s0 = inlined_call_operand.hbm [shape: f32[2,4,16,256], index: 0, kind: input, shape index: {}]
  %s1 = inlined_call_operand.hbm [shape: f32[2,4,16,256], index: 1, kind: input, shape index: {}]
  %s2 = inlined_call_operand.hbm [shape: f32[2,4,16,256], index: 2, kind: input, shape index: {}]
  %s3 = inlined_call_operand.hbm [shape: f32[32,144], index: 3, kind: input, shape index: {}]
  %s4 = inlined_call_operand.hbm [shape: f32[32,144], index: 4, kind: input, shape index: {}]
  %s5 = inlined_call_operand.vmem [shape: f32[4,256], index: 5, kind: input, shape index: {}]
  %s6 = inlined_call_operand.hbm [shape: f32[2,4,32,256], index: 6, kind: output, shape index: {0}]
  %s7 = inlined_call_operand.hbm [shape: f32[2,4,32,256], index: 7, kind: output, shape index: {1}]
  %s8 = inlined_call_operand.vmem [shape: f32[2,1,32,4], index: 8, kind: output, shape index: {2}]
  %9 = xla_tuple %s6, %s7, %s8
  %s10 = sld [smem:[#allocation0]]
  $region93: #{tpu_custom_call.1} parent=0
    _
  %s12 = ssub.s32 1, %s10
  %s13 = scalar_select 0, %s12, %s10
  $region1: #{tpu_custom_call.1} parent=0
    #allocation2 [shape = 'u8[131072]{0}', space=vmem, size = 0x20000, scoped, tag = 'input window, operand 0']
    #allocation3 [shape = 's32[2]{0}', space=sflag, size = 0x8, scoped, tag = 'scoped memory for tpu_custom_call.1']
    #allocation4 [shape = 's32[2]{0}', space=sflag, size = 0x8, scoped, tag = 'scoped memory for tpu_custom_call.1']
    #allocation5 [shape = 'u8[32768]{0}', space=vmem, size = 0x8000, scoped, tag = 'input window, operand 1']
    #allocation6 [shape = 's32[2]{0}', space=sflag, size = 0x8, scoped, tag = 'scoped memory for tpu_custom_call.1']
    #allocation7 [shape = 'u8[32768]{0}', space=vmem, size = 0x8000, scoped, tag = 'input window, operand 2']
    #allocation8 [shape = 'u8[32768]{0}', space=vmem, size = 0x8000, scoped, tag = 'input window, operand 3, single buffered']
    #allocation9 [shape = 's32[1]{0}', space=sflag, size = 0x4, scoped, tag = 'scoped memory for tpu_custom_call.1']
    #allocation10 [shape = 'u8[32768]{0}', space=vmem, size = 0x8000, scoped, tag = 'input window, operand 4, single buffered']
    #allocation11 [shape = 'u8[262144]{0}', space=vmem, size = 0x40000, scoped, tag = 'output window, operand 0']
    #allocation12 [shape = 'u8[262144]{0}', space=vmem, size = 0x40000, scoped, tag = 'output window, operand 1']
    #allocation13 [shape = 's32[2]{0}', space=sflag, size = 0x8, scoped, tag = 'scoped memory for tpu_custom_call.1']
    %14 = vsyncpa [#allocation3], 0
    %s15 = scalar_lea.sflag [#allocation3], 1
    %16 = vsyncpa %s15, 0
    %17 = vsyncpa [#allocation6], 0
    %s18 = scalar_lea.sflag [#allocation6], 1
    %19 = vsyncpa %s18, 0
    %20 = vsyncpa [#allocation9], 0
    %21 = vsyncpa [#allocation4], 0
    %s22 = scalar_lea.sflag [#allocation4], 1
    %23 = vsyncpa %s22, 0
    %24 = vsyncpa [#allocation13], 0
    %s25 = scalar_lea.sflag [#allocation13], 1
    %26 = vsyncpa %s25, 0
    loop: start=0, step=1, limit=4
    $region2: #{tpu_custom_call.1} parent=1 // loop_pre_header
      _
    $region3: #{tpu_custom_call.1} parent=1 // loop_header
      %s28 = sphi 0, %s32
      %p29 = scmp.ge.s32.totalorder %s28, 4
      %s35 = sphi 0, %s47
      %s36 = sphi 0, %s43
      %s37 = sphi 0, %s35
      %s38 = sphi 0, %s36
      %s39 = sphi 0, %s37
      %s40 = sphi 0, %s38
      %s52 = sphi 0, %s54
      %s55 = sphi 0, %s52
      %s56 = sphi 0, %s55
      %s72 = sphi 0, %s56
      %s88 = sphi 0, %s90
      %s91 = sphi 0, %s88
      %s92 = sphi 0, %s91
      %s108 = sphi 0, %s92
      %s124 = sphi 0, %s126
      %s127 = sphi 0, %s124
      %s128 = sphi 0, %s127
      %s144 = sphi 0, %s128
      %s148 = sphi 0, %s148
      %s150 = sphi 0, %s148
      %s151 = sphi 0, %s150
      %s165 = sphi 0, %s151
      %s169 = sphi 0, %s169
      %s171 = sphi 0, %s169
      %s172 = sphi 0, %s171
      %s186 = sphi 0, %s172
      %s190 = sphi 0, %s190
      %s192 = sphi 0, %s190
      %s193 = sphi 0, %s192
      %s207 = sphi 0, %s193
      %s215 = sphi 0, %s217
      %s218 = sphi 0, %s215
      %s219 = sphi 0, %s218
      %s235 = sphi 0, %s219
      %s243 = sphi 0, %s245
      %s246 = sphi 0, %s243
      %s247 = sphi 0, %s246
      %s263 = sphi 0, %s247
      %s271 = sphi 0, %s273
      %s274 = sphi 0, %s271
      %s275 = sphi 0, %s274
      %s291 = sphi 0, %s275
    $region4: #{tpu_custom_call.1} parent=1 // loop_header_branch
      %31 = sbr.rel (%p29) target = $region8
    $region5: #{tpu_custom_call.1} parent=1 // loop_body
      %s33 = ssub.s32 %s28, 1
      %s34 = ssub.s32 %s28, 2
      %s41 = sadd.s32 1, %s36
      %p42 = scmp.ge.s32.totalorder %s41, 1
      %s43 = scalar_select %p42, 0, %s41
      %s44 = sadd.s32 1, %s35
      %s45 = scalar_select %p42, %s44, %s35
      %p46 = scmp.ge.s32.totalorder %s45, 2
      %s47 = scalar_select %p46, 0, %s45
      %s48 = ssub.s32 %s35, %s47
      %s49 = ssub.s32 %s36, %s43
      %s50 = sor.u32 %s48, %s49
      %p51 = scmp.eq.s32.totalorder %s50, 0
      %s53 = sadd.s32 %s52, 1
      %s54 = scalar_select %p51, %s52, %s53
      %p57 = pneg %p51
      %p58 = scmp.eq.s32.totalorder %s28, 1
      %p59 = por %p57, %p58
      %p60 = scmp.ne.s32.totalorder %s52, %s55
      %p61 = scmp.eq.s32.totalorder %s28, 0
      %p62 = por %p60, %p61
      %p63 = scmp.ne.s32.totalorder %s52, %s55
      %p64 = scmp.eq.s32.totalorder %s33, 1
      %p65 = por %p63, %p64
      %p66 = scmp.ne.s32.totalorder %s55, %s56
      %p67 = scmp.eq.s32.totalorder %s33, 0
      %p68 = por %p66, %p67
      %p69 = scmp.ne.s32.totalorder %s55, %s56
      %p70 = scmp.eq.s32.totalorder %s34, 1
      %p71 = por %p69, %p70
      %p73 = scmp.ne.s32.totalorder %s56, %s72
      %p74 = scmp.eq.s32.totalorder %s34, 0
      %p75 = por %p73, %p74
      %s76 = smul.u32 %s36, 4
      %s77 = ssub.s32 %s76, 1
      %p78 = scmp.gt.s32.totalorder %s77, 0
      %s79 = scalar_select %p78, %s77, 0
      %s80 = smul.u32 %s43, 4
      %s81 = ssub.s32 %s80, 1
      %p82 = scmp.gt.s32.totalorder %s81, 0
      %s83 = scalar_select %p82, %s81, 0
      %s84 = ssub.s32 %s35, %s47
      %s85 = ssub.s32 %s79, %s83
      %s86 = sor.u32 %s84, %s85
      %p87 = scmp.eq.s32.totalorder %s86, 0
      %s89 = sadd.s32 %s88, 1
      %s90 = scalar_select %p87, %s88, %s89
      %p93 = pneg %p87
      %p94 = scmp.eq.s32.totalorder %s28, 1
      %p95 = por %p93, %p94
      %p96 = scmp.ne.s32.totalorder %s88, %s91
      %p97 = scmp.eq.s32.totalorder %s28, 0
      %p98 = por %p96, %p97
      %p99 = scmp.ne.s32.totalorder %s88, %s91
      %p100 = scmp.eq.s32.totalorder %s33, 1
      %p101 = por %p99, %p100
      %p102 = scmp.ne.s32.totalorder %s91, %s92
      %p103 = scmp.eq.s32.totalorder %s33, 0
      %p104 = por %p102, %p103
      %p105 = scmp.ne.s32.totalorder %s91, %s92
      %p106 = scmp.eq.s32.totalorder %s34, 1
      %p107 = por %p105, %p106
      %p109 = scmp.ne.s32.totalorder %s92, %s108
      %p110 = scmp.eq.s32.totalorder %s34, 0
      %p111 = por %p109, %p110
      %s112 = sadd.s32 %s36, 1
      %s113 = smul.u32 %s112, 4
      %p114 = scmp.lt.s32.totalorder %s113, 3
      %s115 = scalar_select %p114, %s113, 3
      %s116 = sadd.s32 %s43, 1
      %s117 = smul.u32 %s116, 4
      %p118 = scmp.lt.s32.totalorder %s117, 3
      %s119 = scalar_select %p118, %s117, 3
      %s120 = ssub.s32 %s35, %s47
      %s121 = ssub.s32 %s115, %s119
      %s122 = sor.u32 %s120, %s121
      %p123 = scmp.eq.s32.totalorder %s122, 0
      %s125 = sadd.s32 %s124, 1
      %s126 = scalar_select %p123, %s124, %s125
      %p129 = pneg %p123
      %p130 = scmp.eq.s32.totalorder %s28, 1
      %p131 = por %p129, %p130
      %p132 = scmp.ne.s32.totalorder %s124, %s127
      %p133 = scmp.eq.s32.totalorder %s28, 0
      %p134 = por %p132, %p133
      %p135 = scmp.ne.s32.totalorder %s124, %s127
      %p136 = scmp.eq.s32.totalorder %s33, 1
      %p137 = por %p135, %p136
      %p138 = scmp.ne.s32.totalorder %s127, %s128
      %p139 = scmp.eq.s32.totalorder %s33, 0
      %p140 = por %p138, %p139
      %p141 = scmp.ne.s32.totalorder %s127, %s128
      %p142 = scmp.eq.s32.totalorder %s34, 1
      %p143 = por %p141, %p142
      %p145 = scmp.ne.s32.totalorder %s128, %s144
      %p146 = scmp.eq.s32.totalorder %s34, 0
      %p147 = por %p145, %p146
      %s149 = sadd.s32 %s148, 1
      %p152 = scmp.eq.s32.totalorder %s28, 1
      %p153 = scmp.ne.s32.totalorder %s148, %s150
      %p154 = scmp.eq.s32.totalorder %s28, 0
      %p155 = por %p153, %p154
      %p156 = scmp.ne.s32.totalorder %s148, %s150
      %p157 = scmp.eq.s32.totalorder %s33, 1
      %p158 = por %p156, %p157
      %p159 = scmp.ne.s32.totalorder %s150, %s151
      %p160 = scmp.eq.s32.totalorder %s33, 0
      %p161 = por %p159, %p160
      %p162 = scmp.ne.s32.totalorder %s150, %s151
      %p163 = scmp.eq.s32.totalorder %s34, 1
      %p164 = por %p162, %p163
      %p166 = scmp.ne.s32.totalorder %s151, %s165
      %p167 = scmp.eq.s32.totalorder %s34, 0
      %p168 = por %p166, %p167
      %s170 = sadd.s32 %s169, 1
      %p173 = scmp.eq.s32.totalorder %s28, 1
      %p174 = scmp.ne.s32.totalorder %s169, %s171
      %p175 = scmp.eq.s32.totalorder %s28, 0
      %p176 = por %p174, %p175
      %p177 = scmp.ne.s32.totalorder %s169, %s171
      %p178 = scmp.eq.s32.totalorder %s33, 1
      %p179 = por %p177, %p178
      %p180 = scmp.ne.s32.totalorder %s171, %s172
      %p181 = scmp.eq.s32.totalorder %s33, 0
      %p182 = por %p180, %p181
      %p183 = scmp.ne.s32.totalorder %s171, %s172
      %p184 = scmp.eq.s32.totalorder %s34, 1
      %p185 = por %p183, %p184
      %p187 = scmp.ne.s32.totalorder %s172, %s186
      %p188 = scmp.eq.s32.totalorder %s34, 0
      %p189 = por %p187, %p188
      %s191 = sadd.s32 %s190, 1
      %p194 = scmp.eq.s32.totalorder %s28, 1
      %p195 = scmp.ne.s32.totalorder %s190, %s192
      %p196 = scmp.eq.s32.totalorder %s28, 0
      %p197 = por %p195, %p196
      %p198 = scmp.ne.s32.totalorder %s190, %s192
      %p199 = scmp.eq.s32.totalorder %s33, 1
      %p200 = por %p198, %p199
      %p201 = scmp.ne.s32.totalorder %s192, %s193
      %p202 = scmp.eq.s32.totalorder %s33, 0
      %p203 = por %p201, %p202
      %p204 = scmp.ne.s32.totalorder %s192, %s193
      %p205 = scmp.eq.s32.totalorder %s34, 1
      %p206 = por %p204, %p205
      %p208 = scmp.ne.s32.totalorder %s193, %s207
      %p209 = scmp.eq.s32.totalorder %s34, 0
      %p210 = por %p208, %p209
      %s211 = ssub.s32 %s35, %s47
      %s212 = ssub.s32 %s36, %s43
      %s213 = sor.u32 %s211, %s212
      %p214 = scmp.eq.s32.totalorder %s213, 0
      %s216 = sadd.s32 %s215, 1
      %s217 = scalar_select %p214, %s215, %s216
      %p220 = pneg %p214
      %p221 = scmp.eq.s32.totalorder %s28, 1
      %p222 = por %p220, %p221
      %p223 = scmp.ne.s32.totalorder %s215, %s218
      %p224 = scmp.eq.s32.totalorder %s28, 0
      %p225 = por %p223, %p224
      %p226 = scmp.ne.s32.totalorder %s215, %s218
      %p227 = scmp.eq.s32.totalorder %s33, 1
      %p228 = por %p226, %p227
      %p229 = scmp.ne.s32.totalorder %s218, %s219
      %p230 = scmp.eq.s32.totalorder %s33, 0
      %p231 = por %p229, %p230
      %p232 = scmp.ne.s32.totalorder %s218, %s219
      %p233 = scmp.eq.s32.totalorder %s34, 1
      %p234 = por %p232, %p233
      %p236 = scmp.ne.s32.totalorder %s219, %s235
      %p237 = scmp.eq.s32.totalorder %s34, 0
      %p238 = por %p236, %p237
      %s239 = ssub.s32 %s35, %s47
      %s240 = ssub.s32 %s36, %s43
      %s241 = sor.u32 %s239, %s240
      %p242 = scmp.eq.s32.totalorder %s241, 0
      %s244 = sadd.s32 %s243, 1
      %s245 = scalar_select %p242, %s243, %s244
      %p248 = pneg %p242
      %p249 = scmp.eq.s32.totalorder %s28, 1
      %p250 = por %p248, %p249
      %p251 = scmp.ne.s32.totalorder %s243, %s246
      %p252 = scmp.eq.s32.totalorder %s28, 0
      %p253 = por %p251, %p252
      %p254 = scmp.ne.s32.totalorder %s243, %s246
      %p255 = scmp.eq.s32.totalorder %s33, 1
      %p256 = por %p254, %p255
      %p257 = scmp.ne.s32.totalorder %s246, %s247
      %p258 = scmp.eq.s32.totalorder %s33, 0
      %p259 = por %p257, %p258
      %p260 = scmp.ne.s32.totalorder %s246, %s247
      %p261 = scmp.eq.s32.totalorder %s34, 1
      %p262 = por %p260, %p261
      %p264 = scmp.ne.s32.totalorder %s247, %s263
      %p265 = scmp.eq.s32.totalorder %s34, 0
      %p266 = por %p264, %p265
      %s267 = ssub.s32 %s35, %s47
      %s268 = ssub.s32 %s36, %s43
      %s269 = sor.u32 %s267, %s268
      %p270 = scmp.eq.s32.totalorder %s269, 0
      %s272 = sadd.s32 %s271, 1
      %s273 = scalar_select %p270, %s271, %s272
      %p276 = pneg %p270
      %p277 = scmp.eq.s32.totalorder %s28, 1
      %p278 = por %p276, %p277
      %p279 = scmp.ne.s32.totalorder %s271, %s274
      %p280 = scmp.eq.s32.totalorder %s28, 0
      %p281 = por %p279, %p280
      %p282 = scmp.ne.s32.totalorder %s271, %s274
      %p283 = scmp.eq.s32.totalorder %s33, 1
      %p284 = por %p282, %p283
      %p285 = scmp.ne.s32.totalorder %s274, %s275
      %p286 = scmp.eq.s32.totalorder %s33, 0
      %p287 = por %p285, %p286
      %p288 = scmp.ne.s32.totalorder %s274, %s275
      %p289 = scmp.eq.s32.totalorder %s34, 1
      %p290 = por %p288, %p289
      %p292 = scmp.ne.s32.totalorder %s275, %s291
      %p293 = scmp.eq.s32.totalorder %s34, 0
      %p294 = por %p292, %p293
      %p295 = scmp.le.s32.totalorder 1, %s28
      %p296 = scmp.lt.s32.totalorder %s28, 3
      %p297 = pnand %p295, %p296
      %p298 = pneg %p297
      // Predicated region
      $region9: #{tpu_custom_call.1} parent=5 // pred_check
        _
      $region10: #{tpu_custom_call.1} parent=5 // pred_check_branch
        %300 = sbr.rel (%p297) target = $region12
      $region11: #{tpu_custom_call.1} parent=5 // pred_region
        %s301 = ssub.s32 %s28, 1
        // Predicated region
        $region13: #{tpu_custom_call.1} parent=11 // pred_check
          %p302 = pneg %p161
        $region14: #{tpu_custom_call.1} parent=11 // pred_check_branch
          %304 = sbr.rel (%p302) target = $region16
        $region15: #{tpu_custom_call.1} parent=11 // pred_region
          %s306 = ssub.s32 1024, 1024
          %307 = vsyncadd [#allocation9], %s306
          %s308 = sshll.u32 [#allocation8], 4
          %s309 = int_to_ptr.vmem [resolvable:$true] %s308
          %314 = dma.hbm_to_vmem [thread:$0]  %s3, 1024, %s309, [#allocation9], 256, 256, 16
        $region16: #{tpu_custom_call.1} parent=11 // pred_fallthru
          _
        // Predicated region
        $region17: #{tpu_custom_call.1} parent=11 // pred_check
          %p315 = pneg %p182
        $region18: #{tpu_custom_call.1} parent=11 // pred_check_branch
          %317 = sbr.rel (%p315) target = $region20
        $region19: #{tpu_custom_call.1} parent=11 // pred_region
          %s319 = ssub.s32 1024, 1024
          %320 = vsyncadd [#allocation9], %s319
          %s321 = sshll.u32 [#allocation10], 4
          %s322 = int_to_ptr.vmem [resolvable:$true] %s321
          %327 = dma.hbm_to_vmem [thread:$0]  %s4, 1024, %s322, [#allocation9], 256, 256, 16
        $region20: #{tpu_custom_call.1} parent=11 // pred_fallthru
          _
        // Predicated region
        $region21: #{tpu_custom_call.1} parent=11 // pred_check
          %p328 = pneg %p203
        $region22: #{tpu_custom_call.1} parent=11 // pred_check_branch
          %330 = sbr.rel (%p328) target = $region24
        $region23: #{tpu_custom_call.1} parent=11 // pred_region
          _
        $region24: #{tpu_custom_call.1} parent=11 // pred_fallthru
          _
      $region12: #{tpu_custom_call.1} parent=5 // pred_fallthru
        _
      %p331 = scmp.lt.s32.totalorder %s28, 2
      // Predicated region
      $region25: #{tpu_custom_call.1} parent=5 // pred_check
        %p332 = pneg %p331
      $region26: #{tpu_custom_call.1} parent=5 // pred_check_branch
        %334 = sbr.rel (%p332) target = $region28
      $region27: #{tpu_custom_call.1} parent=5 // pred_region
        // Predicated region
        $region29: #{tpu_custom_call.1} parent=27 // pred_check
          %p335 = pneg %p62
        $region30: #{tpu_custom_call.1} parent=27 // pred_check_branch
          %337 = sbr.rel (%p335) target = $region32
        $region31: #{tpu_custom_call.1} parent=27 // pred_region
          %s338 = sand.u32 %s52, 1
          %s339 = scalar_lea.sflag [#allocation3], %s338
          %s340 = sand.u32 %s52, 1
          %s341 = smul.addr %s340, 128
          %s342 = scalar_lea.vmem [#allocation2], %s341
          %s343 = smul.u32 4, %s36
          %s345 = ssub.s32 2048, 2048
          %346 = vsyncadd %s339, %s345
          %s347 = smul.addr %s343, 4
          %s348 = smul.addr %s35, 16
          %s349 = sadd.s32 %s347, %s348
          %s350 = smul.addr %s349, 128
          %s351 = scalar_lea.hbm %s0, %s350
          %s352 = sshll.u32 %s342, 4
          %s353 = int_to_ptr.vmem [resolvable:$true] %s352
          %358 = dma.hbm_to_vmem [thread:$0]  %s351, 2048, %s353, %s339, 256, 256, 16
        $region32: #{tpu_custom_call.1} parent=27 // pred_fallthru
          _
        // Predicated region
        $region33: #{tpu_custom_call.1} parent=27 // pred_check
          %p359 = pneg %p98
        $region34: #{tpu_custom_call.1} parent=27 // pred_check_branch
          %361 = sbr.rel (%p359) target = $region36
        $region35: #{tpu_custom_call.1} parent=27 // pred_region
          %s362 = sand.u32 %s28, 1
          %s363 = scalar_lea.sflag [#allocation6], %s362
          %s364 = sand.u32 %s88, 1
          %s365 = smul.addr %s364, 32
          %s366 = scalar_lea.vmem [#allocation5], %s365
          %s367 = smul.u32 %s36, 4
          %s368 = ssub.s32 %s367, 1
          %p369 = scmp.gt.s32.totalorder %s368, 0
          %s370 = scalar_select %p369, %s368, 0
          %s372 = ssub.s32 512, 512
          %373 = vsyncadd %s363, %s372
          %s374 = smul.addr %s370, 4
          %s375 = smul.addr %s35, 16
          %s376 = sadd.s32 %s374, %s375
          %s377 = smul.addr %s376, 128
          %s378 = scalar_lea.hbm %s1, %s377
          %s379 = sshll.u32 %s366, 4
          %s380 = int_to_ptr.vmem [resolvable:$true] %s379
          %385 = dma.hbm_to_vmem [thread:$0]  %s378, 512, %s380, %s363, 256, 256, 16
        $region36: #{tpu_custom_call.1} parent=27 // pred_fallthru
          _
        // Predicated region
        $region37: #{tpu_custom_call.1} parent=27 // pred_check
          %p386 = pneg %p134
        $region38: #{tpu_custom_call.1} parent=27 // pred_check_branch
          %388 = sbr.rel (%p386) target = $region40
        $region39: #{tpu_custom_call.1} parent=27 // pred_region
          %s389 = sand.u32 %s28, 1
          %s390 = scalar_lea.sflag [#allocation6], %s389
          %s391 = sand.u32 %s124, 1
          %s392 = smul.addr %s391, 32
          %s393 = scalar_lea.vmem [#allocation7], %s392
          %s394 = sadd.s32 %s36, 1
          %s395 = smul.u32 %s394, 4
          %p396 = scmp.lt.s32.totalorder %s395, 3
          %s397 = scalar_select %p396, %s395, 3
          %s399 = ssub.s32 512, 512
          %400 = vsyncadd %s390, %s399
          %s401 = smul.addr %s397, 4
          %s402 = smul.addr %s35, 16
          %s403 = sadd.s32 %s401, %s402
          %s404 = smul.addr %s403, 128
          %s405 = scalar_lea.hbm %s2, %s404
          %s406 = sshll.u32 %s393, 4
          %s407 = int_to_ptr.vmem [resolvable:$true] %s406
          %412 = dma.hbm_to_vmem [thread:$0]  %s405, 512, %s407, %s390, 256, 256, 16
        $region40: #{tpu_custom_call.1} parent=27 // pred_fallthru
          _
      $region28: #{tpu_custom_call.1} parent=5 // pred_fallthru
        _
      %p413 = scmp.le.s32.totalorder 1, %s28
      %p414 = scmp.lt.s32.totalorder %s28, 3
      %p415 = pnand %p413, %p414
      %p416 = pneg %p415
      // Predicated region
      $region41: #{tpu_custom_call.1} parent=5 // pred_check
        _
      $region42: #{tpu_custom_call.1} parent=5 // pred_check_branch
        %418 = sbr.rel (%p415) target = $region44
      $region43: #{tpu_custom_call.1} parent=5 // pred_region
        %s419 = ssub.s32 %s28, 1
        %s420 = sand.u32 %s55, 1
        %s421 = scalar_lea.sflag [#allocation3], %s420
        %s422 = sand.u32 %s55, 1
        %s423 = smul.addr %s422, 128
        %s424 = scalar_lea.vmem [#allocation2], %s423
        // Predicated region
        $region45: #{tpu_custom_call.1} parent=43 // pred_check
          %p425 = pneg %p68
        $region46: #{tpu_custom_call.1} parent=43 // pred_check_branch
          %427 = sbr.rel (%p425) target = $region48
        $region47: #{tpu_custom_call.1} parent=43 // pred_region
          %428 = dma.done %s421, 2048
        $region48: #{tpu_custom_call.1} parent=43 // pred_fallthru
          _
        %s429 = sand.u32 %s33, 1
        %s430 = scalar_lea.sflag [#allocation6], %s429
        %s431 = sand.u32 %s91, 1
        %s432 = smul.addr %s431, 32
        %s433 = scalar_lea.vmem [#allocation5], %s432
        // Predicated region
        $region49: #{tpu_custom_call.1} parent=43 // pred_check
          %p434 = pneg %p104
        $region50: #{tpu_custom_call.1} parent=43 // pred_check_branch
          %436 = sbr.rel (%p434) target = $region52
        $region51: #{tpu_custom_call.1} parent=43 // pred_region
          %437 = dma.done %s430, 512
        $region52: #{tpu_custom_call.1} parent=43 // pred_fallthru
          _
        %s438 = sand.u32 %s33, 1
        %s439 = scalar_lea.sflag [#allocation6], %s438
        %s440 = sand.u32 %s127, 1
        %s441 = smul.addr %s440, 32
        %s442 = scalar_lea.vmem [#allocation7], %s441
        // Predicated region
        $region53: #{tpu_custom_call.1} parent=43 // pred_check
          %p443 = pneg %p140
        $region54: #{tpu_custom_call.1} parent=43 // pred_check_branch
          %445 = sbr.rel (%p443) target = $region56
        $region55: #{tpu_custom_call.1} parent=43 // pred_region
          %446 = dma.done %s439, 512
        $region56: #{tpu_custom_call.1} parent=43 // pred_fallthru
          _
        // Predicated region
        $region57: #{tpu_custom_call.1} parent=43 // pred_check
          %p447 = pneg %p161
        $region58: #{tpu_custom_call.1} parent=43 // pred_check_branch
          %449 = sbr.rel (%p447) target = $region60
        $region59: #{tpu_custom_call.1} parent=43 // pred_region
          %450 = dma.done [#allocation9], 1024
        $region60: #{tpu_custom_call.1} parent=43 // pred_fallthru
          _
        // Predicated region
        $region61: #{tpu_custom_call.1} parent=43 // pred_check
          %p451 = pneg %p182
        $region62: #{tpu_custom_call.1} parent=43 // pred_check_branch
          %453 = sbr.rel (%p451) target = $region64
        $region63: #{tpu_custom_call.1} parent=43 // pred_region
          %454 = dma.done [#allocation9], 1024
        $region64: #{tpu_custom_call.1} parent=43 // pred_fallthru
          _
        %s455 = sand.u32 %s55, 1
        %s456 = scalar_lea.sflag [#allocation3], %s455
        %s457 = sand.u32 %s55, 1
        %s458 = smul.addr %s457, 128
        %s459 = scalar_lea.vmem [#allocation2], %s458
        %p460 = pneg %p68
        %p461 = pneg %p65
        %s462 = sand.u32 %s33, 1
        %s463 = scalar_lea.sflag [#allocation6], %s462
        %s464 = sand.u32 %s91, 1
        %s465 = smul.addr %s464, 32
        %s466 = scalar_lea.vmem [#allocation5], %s465
        %p467 = pneg %p104
        %p468 = pneg %p101
        %s469 = sand.u32 %s33, 1
        %s470 = scalar_lea.sflag [#allocation6], %s469
        %s471 = sand.u32 %s127, 1
        %s472 = smul.addr %s471, 32
        %s473 = scalar_lea.vmem [#allocation7], %s472
        %p474 = pneg %p140
        %p475 = pneg %p137
        %p476 = pneg %p161
        %p477 = pneg %p158
        %p478 = pneg %p182
        %p479 = pneg %p179
        %p480 = pneg %p203
        %p481 = pneg %p200
        %p482 = pneg %p231
        %p483 = pneg %p228
        %s484 = sand.u32 %s218, 1
        %s485 = scalar_lea.sflag [#allocation4], %s484
        %s486 = sand.u32 %s218, 1
        %s487 = smul.addr %s486, 256
        %s488 = scalar_lea.vmem [#allocation11], %s487
        %p489 = pneg %p259
        %p490 = pneg %p256
        %s491 = sand.u32 %s246, 1
        %s492 = scalar_lea.sflag [#allocation13], %s491
        %s493 = sand.u32 %s246, 1
        %s494 = smul.addr %s493, 256
        %s495 = scalar_lea.vmem [#allocation12], %s494
        %p496 = pneg %p287
        %p497 = pneg %p284
        %p498 = scmp.lt.s32.totalorder %s37, 1
        %s499 = scalar_select %p498, %s37, 1
        %p500 = scmp.lt.s32.totalorder %s38, 0
        %s501 = scalar_select %p500, %s38, 0
        %s502 = smul.addr %s501, 4
        %s503 = smul.addr %s499, 4
        %s504 = sadd.s32 %s502, %s503
        %s505 = smul.addr %s504, 8
        %s506 = scalar_lea.vmem %s8, %s505
        %s507 = smul.u32 4, %s38
        %s508 = smul.u32 %s38, 4
        %s509 = ssub.s32 %s508, 1
        %p510 = scmp.gt.s32.totalorder %s509, 0
        %s511 = scalar_select %p510, %s509, 0
        %s512 = sadd.s32 %s38, 1
        %s513 = smul.u32 %s512, 4
        %p514 = scmp.lt.s32.totalorder %s513, 3
        %s515 = scalar_select %p514, %s513, 3
        %s516 = smul.u32 4, %s38
        %s517 = smul.u32 4, %s38
        %p518 = scmp.lt.s32.totalorder %s37, 1
        %s519 = scalar_select %p518, %s37, 1
        %p520 = scmp.lt.s32.totalorder %s38, 0
        %s521 = scalar_select %p520, %s38, 0
        %s522 = smul.addr %s521, 4
        %s523 = smul.addr %s519, 4
        %s524 = sadd.s32 %s522, %s523
        %s525 = smul.addr %s524, 8
        %s526 = scalar_lea.vmem %s8, %s525
        %v527 = vld [vmem:[%s5] ss:$4 sm:$0x3]
        %s528 = scalar_lea.vmem %s5, 1
        %v529 = vld [vmem:[%s528] ss:$4 sm:$0x3]
        %s530 = scalar_lea.vmem %s5, 2
        %v531 = vld [vmem:[%s530] ss:$4 sm:$0x3]
        %s532 = scalar_lea.vmem %s5, 3
        %v533 = vld [vmem:[%s532] ss:$4 sm:$0x3]
        %v534 = vld [vmem:[#allocation8] sm:$0xff]
        %v535 = vld [vmem:[#allocation8 + $0x8] sm:$0xff]
        %v536 = vld [vmem:[#allocation8 + $0x10] sm:$0xff]
        %v537 = vld [vmem:[#allocation8 + $0x18] sm:$0xff]
        %v538 = vld [vmem:[#allocation8 + $0x20] sm:$0xff]
        %v539 = vld [vmem:[#allocation8 + $0x28] sm:$0xff]
        %v540 = vld [vmem:[#allocation8 + $0x30] sm:$0xff]
        %v541 = vld [vmem:[#allocation8 + $0x38] sm:$0xff]
        %v542 = vld [vmem:[#allocation10] sm:$0xff]
        %v543 = vld [vmem:[#allocation10 + $0x8] sm:$0xff]
        %v544 = vld [vmem:[#allocation10 + $0x10] sm:$0xff]
        %v545 = vld [vmem:[#allocation10 + $0x18] sm:$0xff]
        %v546 = vld [vmem:[#allocation10 + $0x20] sm:$0xff]
        %v547 = vld [vmem:[#allocation10 + $0x28] sm:$0xff]
        %v548 = vld [vmem:[#allocation10 + $0x30] sm:$0xff]
        %v549 = vld [vmem:[#allocation10 + $0x38] sm:$0xff]
        %v550 = vld [vmem:[%s424] sm:$0xff]
        %v551 = vld [vmem:[%s424 + $0x8] sm:$0xff]
        %v552 = vld [vmem:[%s424 + $0x10] sm:$0xff]
        %v553 = vld [vmem:[%s424 + $0x18] sm:$0xff]
        %s554 = scalar_lea.vmem %s424, 32 [#allocation2]
        %v555 = vld [vmem:[%s554] sm:$0xff]
        %v556 = vld [vmem:[%s554 + $0x8] sm:$0xff]
        %v557 = vld [vmem:[%s554 + $0x10] sm:$0xff]
        %v558 = vld [vmem:[%s554 + $0x18] sm:$0xff]
        %s559 = scalar_lea.vmem %s424, 64 [#allocation2]
        %v560 = vld [vmem:[%s559] sm:$0xff]
        %v561 = vld [vmem:[%s559 + $0x8] sm:$0xff]
        %v562 = vld [vmem:[%s559 + $0x10] sm:$0xff]
        %v563 = vld [vmem:[%s559 + $0x18] sm:$0xff]
        %s564 = scalar_lea.vmem %s424, 96 [#allocation2]
        %v565 = vld [vmem:[%s564] sm:$0xff]
        %v566 = vld [vmem:[%s564 + $0x8] sm:$0xff]
        %v567 = vld [vmem:[%s564 + $0x10] sm:$0xff]
        %v568 = vld [vmem:[%s564 + $0x18] sm:$0xff]
        %p569 = scmp.gt.s32.totalorder %s38, 0
        %s570 = scalar_select %p569, 1, 0
        %s571 = scvt.s32.f32 %s570
        %p572 = scmp.lt.s32.totalorder %s38, 0
        %s573 = scalar_select %p572, 1, 0
        %s574 = scvt.s32.f32 %s573
        %v575 = vld [vmem:[%s433] sm:$0xff]
        %v576 = vld [vmem:[%s433 + $0x8] sm:$0xff]
        %v577 = vld [vmem:[%s433 + $0x10] sm:$0xff]
        %v578 = vld [vmem:[%s433 + $0x18] sm:$0xff]
        %v579 = vstv %s571
        %v580 = vmul.f32 %v575, %v579
        %v581 = vmul.f32 %v576, %v579
        %v582 = vmul.f32 %v577, %v579
        %v583 = vmul.f32 %v578, %v579
        %v584 = vld [vmem:[%s442] sm:$0xff]
        %v585 = vld [vmem:[%s442 + $0x8] sm:$0xff]
        %v586 = vld [vmem:[%s442 + $0x10] sm:$0xff]
        %v587 = vld [vmem:[%s442 + $0x18] sm:$0xff]
        %v588 = vstv %s574
        %v589 = vmul.f32 %v584, %v588
        %v590 = vmul.f32 %v585, %v588
        %v591 = vmul.f32 %v586, %v588
        %v592 = vmul.f32 %v587, %v588
        %593 = vrot.lane.b32.xlu0 %v550, 16
        %v594 = vpop.permute.xlu0 %593
        %595 = vrot.lane.b32.xlu0 %v552, 16
        %v596 = vpop.permute.xlu0 %595
        %597 = vrot.lane.b32.xlu0 %v551, 16
        %v598 = vpop.permute.xlu0 %597
        %599 = vrot.lane.b32.xlu0 %v553, 16
        %v600 = vpop.permute.xlu0 %599
        %v601 = vlaneseq
        %v602 = vand.u32 %v601, 127
        %vm603 = vcmp.lt.s32.totalorder %v602, 16
        %v604 = vsel %vm603, %v594, %v598
        %v605 = vsel %vm603, %v596, %v600
        %v606 = vsel %vm603, %v598, %v594
        %v607 = vsel %vm603, %v600, %v596
        %v609 = vlaneseq
        %v610 = vshrl.u32 %v609, 7
        %v611 = vsub.s32 0, %v610
        %v612 = vrot.slane %v533, %v611
        %v613 = vlaneseq
        %v614 = vshrl.u32 %v613, 7
        %v615 = vsub.s32 1, %v614
        %v616 = vrot.slane %v533, %v615
        %v619 = vmul.f32 %v606, %v612
        %v620 = vmul.f32 %v604, %v616
        %v621 = vmul.f32 %v607, %v612
        %v622 = vmul.f32 %v605, %v616
        %623 = vrot.lane.b32.xlu0 %v550, 112
        %v624 = vpop.permute.xlu0 %623
        %625 = vrot.lane.b32.xlu0 %v552, 112
        %v626 = vpop.permute.xlu0 %625
        %627 = vrot.lane.b32.xlu0 %v551, 112
        %v628 = vpop.permute.xlu0 %627
        %629 = vrot.lane.b32.xlu0 %v553, 112
        %v630 = vpop.permute.xlu0 %629
        %vm631 = vcmp.lt.s32.totalorder %v602, 112
        %v632 = vsel %vm631, %v624, %v628
        %v633 = vsel %vm631, %v626, %v630
        %v634 = vsel %vm631, %v628, %v624
        %v635 = vsel %vm631, %v630, %v626
        %v637 = vlaneseq
        %v638 = vshrl.u32 %v637, 7
        %v639 = vsub.s32 0, %v638
        %v640 = vrot.slane %v531, %v639
        %v641 = vlaneseq
        %v642 = vshrl.u32 %v641, 7
        %v643 = vsub.s32 1, %v642
        %v644 = vrot.slane %v531, %v643
        %v647 = vmul.f32 %v632, %v640
        %v648 = vmul.f32 %v634, %v644
        %v649 = vmul.f32 %v633, %v640
        %v650 = vmul.f32 %v635, %v644
        %651 = vrot.lane.b32.xlu0 %v619, 1
        %v652 = vpop.permute.xlu0 %651
        %653 = vrot.lane.b32.xlu0 %v621, 1
        %v654 = vpop.permute.xlu0 %653
        %655 = vrot.lane.b32.xlu0 %v620, 1
        %v656 = vpop.permute.xlu0 %655
        %657 = vrot.lane.b32.xlu0 %v622, 1
        %v658 = vpop.permute.xlu0 %657
        %vm659 = vcmp.lt.s32.totalorder %v602, 1
        %v660 = vsel %vm659, %v652, %v656
        %v661 = vsel %vm659, %v654, %v658
        %v662 = vsel %vm659, %v656, %v652
        %v663 = vsel %vm659, %v658, %v654
        %v665 = vlaneseq
        %v666 = vshrl.u32 %v665, 7
        %v667 = vsub.s32 0, %v666
        %v668 = vrot.slane %v529, %v667
        %v669 = vlaneseq
        %v670 = vshrl.u32 %v669, 7
        %v671 = vsub.s32 1, %v670
        %v672 = vrot.slane %v529, %v671
        %v675 = vmul.f32 %v662, %v668
        %v676 = vmul.f32 %v660, %v672
        %v677 = vmul.f32 %v663, %v668
        %v678 = vmul.f32 %v661, %v672
        %679 = vrot.lane.b32.xlu0 %v619, 127
        %v680 = vpop.permute.xlu0 %679
        %681 = vrot.lane.b32.xlu0 %v621, 127
        %v682 = vpop.permute.xlu0 %681
        %683 = vrot.lane.b32.xlu0 %v620, 127
        %v684 = vpop.permute.xlu0 %683
        %685 = vrot.lane.b32.xlu0 %v622, 127
        %v686 = vpop.permute.xlu0 %685
        %vm687 = vcmp.lt.s32.totalorder %v602, 127
        %v688 = vsel %vm687, %v680, %v684
        %v689 = vsel %vm687, %v682, %v686
        %v690 = vsel %vm687, %v684, %v680
        %v691 = vsel %vm687, %v686, %v682
        %v693 = vlaneseq
        %v694 = vshrl.u32 %v693, 7
        %v695 = vsub.s32 0, %v694
        %v696 = vrot.slane %v527, %v695
        %v697 = vlaneseq
        %v698 = vshrl.u32 %v697, 7
        %v699 = vsub.s32 1, %v698
        %v700 = vrot.slane %v527, %v699
        %v703 = vmul.f32 %v688, %v696
        %v704 = vmul.f32 %v690, %v700
        %v705 = vmul.f32 %v689, %v696
        %v706 = vmul.f32 %v691, %v700
        %707 = vrot.lane.b32.xlu0 %v550, 1
        %v708 = vpop.permute.xlu0 %707
        %709 = vrot.lane.b32.xlu0 %v552, 1
        %v710 = vpop.permute.xlu0 %709
        %711 = vrot.lane.b32.xlu0 %v551, 1
        %v712 = vpop.permute.xlu0 %711
        %713 = vrot.lane.b32.xlu0 %v553, 1
        %v714 = vpop.permute.xlu0 %713
        %v715 = vsel %vm659, %v708, %v712
        %v716 = vsel %vm659, %v710, %v714
        %v717 = vsel %vm659, %v712, %v708
        %v718 = vsel %vm659, %v714, %v710
        %v719 = vmul.f32 %v717, %v668
        %v720 = vmul.f32 %v715, %v672
        %v721 = vmul.f32 %v718, %v668
        %v722 = vmul.f32 %v716, %v672
        %723 = vrot.lane.b32.xlu0 %v550, 127
        %v724 = vpop.permute.xlu0 %723
        %725 = vrot.lane.b32.xlu0 %v552, 127
        %v726 = vpop.permute.xlu0 %725
        %727 = vrot.lane.b32.xlu0 %v551, 127
        %v728 = vpop.permute.xlu0 %727
        %729 = vrot.lane.b32.xlu0 %v553, 127
        %v730 = vpop.permute.xlu0 %729
        %v731 = vsel %vm687, %v724, %v728
        %v732 = vsel %vm687, %v726, %v730
        %v733 = vsel %vm687, %v728, %v724
        %v734 = vsel %vm687, %v730, %v726
        %v735 = vmul.f32 %v731, %v696
        %v736 = vmul.f32 %v733, %v700
        %v737 = vmul.f32 %v732, %v696
        %v738 = vmul.f32 %v734, %v700
        %739 = vrot.lane.b32.xlu0 %v647, 1
        %v740 = vpop.permute.xlu0 %739
        %741 = vrot.lane.b32.xlu0 %v649, 1
        %v742 = vpop.permute.xlu0 %741
        %743 = vrot.lane.b32.xlu0 %v648, 1
        %v744 = vpop.permute.xlu0 %743
        %745 = vrot.lane.b32.xlu0 %v650, 1
        %v746 = vpop.permute.xlu0 %745
        %v747 = vsel %vm659, %v740, %v744
        %v748 = vsel %vm659, %v742, %v746
        %v749 = vsel %vm659, %v744, %v740
        %v750 = vsel %vm659, %v746, %v742
        %v751 = vmul.f32 %v749, %v668
        %v752 = vmul.f32 %v747, %v672
        %v753 = vmul.f32 %v750, %v668
        %v754 = vmul.f32 %v748, %v672
        %755 = vrot.lane.b32.xlu0 %v647, 127
        %v756 = vpop.permute.xlu0 %755
        %757 = vrot.lane.b32.xlu0 %v649, 127
        %v758 = vpop.permute.xlu0 %757
        %759 = vrot.lane.b32.xlu0 %v648, 127
        %v760 = vpop.permute.xlu0 %759
        %761 = vrot.lane.b32.xlu0 %v650, 127
        %v762 = vpop.permute.xlu0 %761
        %v763 = vsel %vm687, %v756, %v760
        %v764 = vsel %vm687, %v758, %v762
        %v765 = vsel %vm687, %v760, %v756
        %v766 = vsel %vm687, %v762, %v758
        %v767 = vmul.f32 %v763, %v696
        %v768 = vmul.f32 %v765, %v700
        %v769 = vmul.f32 %v764, %v696
        %v770 = vmul.f32 %v766, %v700
        %vm771 = vcmask 130048
        %v773 = vsel %vm771, %v535, 0
        %v776 = vsel %vm771, %v537, 0
        %v779 = vsel %vm771, %v539, 0
        %v782 = vsel %vm771, %v541, 0
        %784 = vmatprep.subr.mxu0 %v676
        %785 = vmatpush1.msra.mxu0 %v675
        %786 = vmatprep.subr.mxu0 %v678
        %787 = vmatpush1.msra.mxu0 %v677
        %788 = vmatprep.subr.mxu0 %v620
        %789 = vmatpush1.msra.mxu0 %v619
        %790 = vmatprep.subr.mxu0 %v622
        %791 = vmatpush1.msra.mxu0 %v621
        %792 = vmatprep.subr.mxu0 %v704
        %793 = vmatpush1.msra.mxu0 %v703
        %794 = vmatprep.subr.mxu0 %v706
        %795 = vmatpush1.msra.mxu0 %v705
        %796 = vmatprep.subr.mxu0 %v720
        %797 = vmatpush1.msra.mxu0 %v719
        %798 = vmatprep.subr.mxu0 %v722
        %799 = vmatpush1.msra.mxu0 %v721
        %800 = vmatprep.subr.mxu0 %v551
        %801 = vmatpush1.msra.mxu0 %v550
        %802 = vmatprep.subr.mxu0 %v553
        %803 = vmatpush1.msra.mxu0 %v552
        %804 = vmatprep.subr.mxu0 %v736
        %805 = vmatpush1.msra.mxu0 %v735
        %806 = vmatprep.subr.mxu0 %v738
        %807 = vmatpush1.msra.mxu0 %v737
        %808 = vmatprep.subr.mxu0 %v752
        %809 = vmatpush1.msra.mxu0 %v751
        %810 = vmatprep.subr.mxu0 %v754
        %811 = vmatpush1.msra.mxu0 %v753
        %812 = vmatprep.subr.mxu0 %v648
        %813 = vmatpush1.msra.mxu0 %v647
        %814 = vmatprep.subr.mxu0 %v650
        %815 = vmatpush1.msra.mxu0 %v649
        %816 = vmatprep.subr.mxu0 %v768
        %817 = vmatpush1.msra.mxu0 %v767
        %818 = vmatprep.subr.mxu0 %v770
        %819 = vmatpush1.msra.mxu0 %v769
        %820 = vmatprep.subr.mxu0 0.0
        %821 = vmatpush1.msra.mxu0 0.0
        %822 = vmatprep.subr.mxu0 0.0
        %823 = vmatpush1.msra.mxu0 0.0
        %824 = vmatprep.subr.mxu0 0.0
        %825 = vmatpush1.msra.mxu0 0.0
        %826 = vmatprep.subr.mxu0 0.0
        %827 = vmatpush1.msra.mxu0 0.0
        %828 = vmatprep.subr.mxu0 0.0
        %829 = vmatpush1.msra.mxu0 0.0
        %830 = vmatprep.subr.mxu0 0.0
        %831 = vmatpush1.msra.mxu0 0.0
        %832 = vmatprep.subr.mxu0 0.0
        %833 = vmatpush1.msra.mxu0 0.0
        %834 = vmatprep.subr.mxu0 0.0
        %835 = vmatpush1.msra.mxu0 0.0
        %836 = vmatprep.subr.mxu0 0.0
        %837 = vmatpush1.msra.mxu0 0.0
        %838 = vmatprep.subr.mxu0 0.0
        %839 = vmatpush1.msra.mxu0 0.0
        %840 = vmatprep.subr.mxu0 0.0
        %841 = vmatpush1.msra.mxu0 0.0
        %842 = vmatprep.subr.mxu0 0.0
        %843 = vmatpush1.msra.mxu0 0.0
        %844 = vmatprep.subr.mxu0 0.0
        %845 = vmatpush1.msra.mxu0 0.0
        %846 = vmatprep.subr.mxu0 0.0
        %847 = vmatpush1.msra.mxu0 0.0
        %848 = vmatprep.mubr.f32.mxu0 %v773
        %849 = vmatmul.mubr.f32.gmra.mrb[0].mxu0 %v534
        %v850 = vpop.f32.mrb[0].mxu0
        %v851 = vadd.f32 0.0, %v850
        %v852 = vpop.f32.mrb[0].mxu0
        %v853 = vadd.f32 0.0, %v852
        %854 = vmatprep.mubr.f32.mxu0 %v776
        %855 = vmatmul.mubr.f32.gmra.mrb[0].mxu0 %v536
        %v856 = vpop.f32.mrb[0].mxu0
        %v857 = vadd.f32 0.0, %v856
        %v858 = vpop.f32.mrb[0].mxu0
        %v859 = vadd.f32 0.0, %v858
        %860 = vmatprep.mubr.f32.mxu0 %v779
        %861 = vmatmul.mubr.f32.gmra.mrb[0].mxu0 %v538
        %v862 = vpop.f32.mrb[0].mxu0
        %v863 = vadd.f32 0.0, %v862
        %v864 = vpop.f32.mrb[0].mxu0
        %v865 = vadd.f32 0.0, %v864
        %866 = vmatprep.mubr.f32.mxu0 %v782
        %867 = vmatmul.mubr.f32.gmra.mrb[0].mxu0 %v540
        %v868 = vpop.f32.mrb[0].mxu0
        %v869 = vadd.f32 0.0, %v868
        %v870 = vpop.f32.mrb[0].mxu0
        %v871 = vadd.f32 0.0, %v870
        %872 = vdwg.mxu0
        %vm873 = vcmp.ge.f32.partialorder %v851, 0.0
        %vm874 = vcmp.ge.f32.partialorder %v853, 0.0
        %vm875 = vcmp.ge.f32.partialorder %v857, 0.0
        %vm876 = vcmp.ge.f32.partialorder %v859, 0.0
        %vm877 = vcmp.ge.f32.partialorder %v863, 0.0
        %vm878 = vcmp.ge.f32.partialorder %v865, 0.0
        %vm879 = vcmp.ge.f32.partialorder %v869, 0.0
        %vm880 = vcmp.ge.f32.partialorder %v871, 0.0
        %v881 = vmul.f32 %v851, 0.01
        %v882 = vmul.f32 %v853, 0.01
        %v883 = vmul.f32 %v857, 0.01
        %v884 = vmul.f32 %v859, 0.01
        %v885 = vmul.f32 %v863, 0.01
        %v886 = vmul.f32 %v865, 0.01
        %v887 = vmul.f32 %v869, 0.01
        %v888 = vmul.f32 %v871, 0.01
        %v889 = vsel %vm873, %v851, %v881
        %v890 = vsel %vm874, %v853, %v882
        %v891 = vsel %vm875, %v857, %v883
        %v892 = vsel %vm876, %v859, %v884
        %v893 = vsel %vm877, %v863, %v885
        %v894 = vsel %vm878, %v865, %v886
        %v895 = vsel %vm879, %v869, %v887
        %v896 = vsel %vm880, %v871, %v888
        %897 = vst [vmem:[%s488] sm:$0xff] %v889
        %898 = vst [vmem:[%s488 + $0x8] sm:$0xff] %v890
        %899 = vst [vmem:[%s488 + $0x10] sm:$0xff] %v891
        %900 = vst [vmem:[%s488 + $0x18] sm:$0xff] %v892
        %901 = vst [vmem:[%s488 + $0x20] sm:$0xff] %v893
        %902 = vst [vmem:[%s488 + $0x28] sm:$0xff] %v894
        %903 = vst [vmem:[%s488 + $0x30] sm:$0xff] %v895
        %904 = vst [vmem:[%s488 + $0x38] sm:$0xff] %v896
        %v905 = vadd.f32 %v889, %v890
        %906 = vadd.xlane.f32.xlu0 %v905
        %v907 = vpop.xlane.xlu0 %906
        %v908 = vadd.f32 %v891, %v892
        %909 = vadd.xlane.f32.xlu0 %v908
        %v910 = vpop.xlane.xlu0 %909
        %v911 = vadd.f32 %v893, %v894
        %912 = vadd.xlane.f32.xlu0 %v911
        %v913 = vpop.xlane.xlu0 %912
        %v914 = vadd.f32 %v895, %v896
        %915 = vadd.xlane.f32.xlu0 %v914
        %v916 = vpop.xlane.xlu0 %915
        %v917 = vadd.f32 %v907, 0.0
        %v918 = vadd.f32 %v910, 0.0
        %v919 = vadd.f32 %v913, 0.0
        %v920 = vadd.f32 %v916, 0.0
        %v921 = vmul.f32 %v889, %v889
        %v922 = vmul.f32 %v890, %v890
        %v923 = vmul.f32 %v891, %v891
        %v924 = vmul.f32 %v892, %v892
        %v925 = vmul.f32 %v893, %v893
        %v926 = vmul.f32 %v894, %v894
        %v927 = vmul.f32 %v895, %v895
        %v928 = vmul.f32 %v896, %v896
        %v929 = vadd.f32 %v921, %v922
        %930 = vadd.xlane.f32.xlu0 %v929
        %v931 = vpop.xlane.xlu0 %930
        %v932 = vadd.f32 %v923, %v924
        %933 = vadd.xlane.f32.xlu0 %v932
        %v934 = vpop.xlane.xlu0 %933
        %v935 = vadd.f32 %v925, %v926
        %936 = vadd.xlane.f32.xlu0 %v935
        %v937 = vpop.xlane.xlu0 %936
        %v938 = vadd.f32 %v927, %v928
        %939 = vadd.xlane.f32.xlu0 %v938
        %v940 = vpop.xlane.xlu0 %939
        %v941 = vadd.f32 %v931, 0.0
        %v942 = vadd.f32 %v934, 0.0
        %v943 = vadd.f32 %v937, 0.0
        %v944 = vadd.f32 %v940, 0.0
        %945 = vrot.lane.b32.xlu0 %v580, 1
        %v946 = vpop.permute.xlu0 %945
        %947 = vrot.lane.b32.xlu0 %v582, 1
        %v948 = vpop.permute.xlu0 %947
        %949 = vrot.lane.b32.xlu0 %v581, 1
        %v950 = vpop.permute.xlu0 %949
        %951 = vrot.lane.b32.xlu0 %v583, 1
        %v952 = vpop.permute.xlu0 %951
        %v953 = vsel %vm659, %v946, %v950
        %v954 = vsel %vm659, %v948, %v952
        %v955 = vsel %vm659, %v950, %v946
        %v956 = vsel %vm659, %v952, %v948
        %v957 = vmul.f32 %v955, %v668
        %v958 = vmul.f32 %v953, %v672
        %v959 = vmul.f32 %v956, %v668
        %v960 = vmul.f32 %v954, %v672
        %961 = vrot.lane.b32.xlu0 %v580, 127
        %v962 = vpop.permute.xlu0 %961
        %963 = vrot.lane.b32.xlu0 %v582, 127
        %v964 = vpop.permute.xlu0 %963
        %965 = vrot.lane.b32.xlu0 %v581, 127
        %v966 = vpop.permute.xlu0 %965
        %967 = vrot.lane.b32.xlu0 %v583, 127
        %v968 = vpop.permute.xlu0 %967
        %v969 = vsel %vm687, %v962, %v966
        %v970 = vsel %vm687, %v964, %v968
        %v971 = vsel %vm687, %v966, %v962
        %v972 = vsel %vm687, %v968, %v964
        %v973 = vmul.f32 %v969, %v696
        %v974 = vmul.f32 %v971, %v700
        %v975 = vmul.f32 %v970, %v696
        %v976 = vmul.f32 %v972, %v700
        %977 = vrot.lane.b32.xlu0 %v555, 1
        %v978 = vpop.permute.xlu0 %977
        %979 = vrot.lane.b32.xlu0 %v557, 1
        %v980 = vpop.permute.xlu0 %979
        %981 = vrot.lane.b32.xlu0 %v556, 1
        %v982 = vpop.permute.xlu0 %981
        %983 = vrot.lane.b32.xlu0 %v558, 1
        %v984 = vpop.permute.xlu0 %983
        %v985 = vsel %vm659, %v978, %v982
        %v986 = vsel %vm659, %v980, %v984
        %v987 = vsel %vm659, %v982, %v978
        %v988 = vsel %vm659, %v984, %v980
        %v989 = vmul.f32 %v987, %v668
        %v990 = vmul.f32 %v985, %v672
        %v991 = vmul.f32 %v988, %v668
        %v992 = vmul.f32 %v986, %v672
        %993 = vrot.lane.b32.xlu0 %v555, 127
        %v994 = vpop.permute.xlu0 %993
        %995 = vrot.lane.b32.xlu0 %v557, 127
        %v996 = vpop.permute.xlu0 %995
        %997 = vrot.lane.b32.xlu0 %v556, 127
        %v998 = vpop.permute.xlu0 %997
        %999 = vrot.lane.b32.xlu0 %v558, 127
        %v1000 = vpop.permute.xlu0 %999
        %v1001 = vsel %vm687, %v994, %v998
        %v1002 = vsel %vm687, %v996, %v1000
        %v1003 = vsel %vm687, %v998, %v994
        %v1004 = vsel %vm687, %v1000, %v996
        %v1005 = vmul.f32 %v1001, %v696
        %v1006 = vmul.f32 %v1003, %v700
        %v1007 = vmul.f32 %v1002, %v696
        %v1008 = vmul.f32 %v1004, %v700
        %v1010 = vsel %vm771, %v543, 0
        %v1013 = vsel %vm771, %v545, 0
        %v1016 = vsel %vm771, %v547, 0
        %v1019 = vsel %vm771, %v549, 0
        %1021 = vmatprep.subr.mxu0 %v958
        %1022 = vmatpush1.msra.mxu0 %v957
        %1023 = vmatprep.subr.mxu0 %v960
        %1024 = vmatpush1.msra.mxu0 %v959
        %1025 = vmatprep.subr.mxu0 %v581
        %1026 = vmatpush1.msra.mxu0 %v580
        %1027 = vmatprep.subr.mxu0 %v583
        %1028 = vmatpush1.msra.mxu0 %v582
        %1029 = vmatprep.subr.mxu0 %v974
        %1030 = vmatpush1.msra.mxu0 %v973
        %1031 = vmatprep.subr.mxu0 %v976
        %1032 = vmatpush1.msra.mxu0 %v975
        %1033 = vmatprep.subr.mxu0 %v720
        %1034 = vmatpush1.msra.mxu0 %v719
        %1035 = vmatprep.subr.mxu0 %v722
        %1036 = vmatpush1.msra.mxu0 %v721
        %1037 = vmatprep.subr.mxu0 %v551
        %1038 = vmatpush1.msra.mxu0 %v550
        %1039 = vmatprep.subr.mxu0 %v553
        %1040 = vmatpush1.msra.mxu0 %v552
        %1041 = vmatprep.subr.mxu0 %v736
        %1042 = vmatpush1.msra.mxu0 %v735
        %1043 = vmatprep.subr.mxu0 %v738
        %1044 = vmatpush1.msra.mxu0 %v737
        %1045 = vmatprep.subr.mxu0 %v990
        %1046 = vmatpush1.msra.mxu0 %v989
        %1047 = vmatprep.subr.mxu0 %v992
        %1048 = vmatpush1.msra.mxu0 %v991
        %1049 = vmatprep.subr.mxu0 %v556
        %1050 = vmatpush1.msra.mxu0 %v555
        %1051 = vmatprep.subr.mxu0 %v558
        %1052 = vmatpush1.msra.mxu0 %v557
        %1053 = vmatprep.subr.mxu0 %v1006
        %1054 = vmatpush1.msra.mxu0 %v1005
        %1055 = vmatprep.subr.mxu0 %v1008
        %1056 = vmatpush1.msra.mxu0 %v1007
        %1057 = vmatprep.subr.mxu0 0.0
        %1058 = vmatpush1.msra.mxu0 0.0
        %1059 = vmatprep.subr.mxu0 0.0
        %1060 = vmatpush1.msra.mxu0 0.0
        %1061 = vmatprep.subr.mxu0 0.0
        %1062 = vmatpush1.msra.mxu0 0.0
        %1063 = vmatprep.subr.mxu0 0.0
        %1064 = vmatpush1.msra.mxu0 0.0
        %1065 = vmatprep.subr.mxu0 0.0
        %1066 = vmatpush1.msra.mxu0 0.0
        %1067 = vmatprep.subr.mxu0 0.0
        %1068 = vmatpush1.msra.mxu0 0.0
        %1069 = vmatprep.subr.mxu0 0.0
        %1070 = vmatpush1.msra.mxu0 0.0
        %1071 = vmatprep.subr.mxu0 0.0
        %1072 = vmatpush1.msra.mxu0 0.0
        %1073 = vmatprep.subr.mxu0 0.0
        %1074 = vmatpush1.msra.mxu0 0.0
        %1075 = vmatprep.subr.mxu0 0.0
        %1076 = vmatpush1.msra.mxu0 0.0
        %1077 = vmatprep.subr.mxu0 0.0
        %1078 = vmatpush1.msra.mxu0 0.0
        %1079 = vmatprep.subr.mxu0 0.0
        %1080 = vmatpush1.msra.mxu0 0.0
        %1081 = vmatprep.subr.mxu0 0.0
        %1082 = vmatpush1.msra.mxu0 0.0
        %1083 = vmatprep.subr.mxu0 0.0
        %1084 = vmatpush1.msra.mxu0 0.0
        %1085 = vmatprep.mubr.f32.mxu0 %v1010
        %1086 = vmatmul.mubr.f32.gmra.mrb[0].mxu0 %v542
        %v1087 = vpop.f32.mrb[0].mxu0
        %v1088 = vadd.f32 0.0, %v1087
        %v1089 = vpop.f32.mrb[0].mxu0
        %v1090 = vadd.f32 0.0, %v1089
        %1091 = vmatprep.mubr.f32.mxu0 %v1013
        %1092 = vmatmul.mubr.f32.gmra.mrb[0].mxu0 %v544
        %v1093 = vpop.f32.mrb[0].mxu0
        %v1094 = vadd.f32 0.0, %v1093
        %v1095 = vpop.f32.mrb[0].mxu0
        %v1096 = vadd.f32 0.0, %v1095
        %1097 = vmatprep.mubr.f32.mxu0 %v1016
        %1098 = vmatmul.mubr.f32.gmra.mrb[0].mxu0 %v546
        %v1099 = vpop.f32.mrb[0].mxu0
        %v1100 = vadd.f32 0.0, %v1099
        %v1101 = vpop.f32.mrb[0].mxu0
        %v1102 = vadd.f32 0.0, %v1101
        %1103 = vmatprep.mubr.f32.mxu0 %v1019
        %1104 = vmatmul.mubr.f32.gmra.mrb[0].mxu0 %v548
        %v1105 = vpop.f32.mrb[0].mxu0
        %v1106 = vadd.f32 0.0, %v1105
        %v1107 = vpop.f32.mrb[0].mxu0
        %v1108 = vadd.f32 0.0, %v1107
        %1109 = vdwg.mxu0
        %vm1110 = vcmp.ge.f32.partialorder %v1088, 0.0
        %vm1111 = vcmp.ge.f32.partialorder %v1090, 0.0
        %vm1112 = vcmp.ge.f32.partialorder %v1094, 0.0
        %vm1113 = vcmp.ge.f32.partialorder %v1096, 0.0
        %vm1114 = vcmp.ge.f32.partialorder %v1100, 0.0
        %vm1115 = vcmp.ge.f32.partialorder %v1102, 0.0
        %vm1116 = vcmp.ge.f32.partialorder %v1106, 0.0
        %vm1117 = vcmp.ge.f32.partialorder %v1108, 0.0
        %v1118 = vmul.f32 %v1088, 0.01
        %v1119 = vmul.f32 %v1090, 0.01
        %v1120 = vmul.f32 %v1094, 0.01
        %v1121 = vmul.f32 %v1096, 0.01
        %v1122 = vmul.f32 %v1100, 0.01
        %v1123 = vmul.f32 %v1102, 0.01
        %v1124 = vmul.f32 %v1106, 0.01
        %v1125 = vmul.f32 %v1108, 0.01
        %v1126 = vsel %vm1110, %v1088, %v1118
        %v1127 = vsel %vm1111, %v1090, %v1119
        %v1128 = vsel %vm1112, %v1094, %v1120
        %v1129 = vsel %vm1113, %v1096, %v1121
        %v1130 = vsel %vm1114, %v1100, %v1122
        %v1131 = vsel %vm1115, %v1102, %v1123
        %v1132 = vsel %vm1116, %v1106, %v1124
        %v1133 = vsel %vm1117, %v1108, %v1125
        %1134 = vst [vmem:[%s495] sm:$0xff] %v1126
        %1135 = vst [vmem:[%s495 + $0x8] sm:$0xff] %v1127
        %1136 = vst [vmem:[%s495 + $0x10] sm:$0xff] %v1128
        %1137 = vst [vmem:[%s495 + $0x18] sm:$0xff] %v1129
        %1138 = vst [vmem:[%s495 + $0x20] sm:$0xff] %v1130
        %1139 = vst [vmem:[%s495 + $0x28] sm:$0xff] %v1131
        %1140 = vst [vmem:[%s495 + $0x30] sm:$0xff] %v1132
        %1141 = vst [vmem:[%s495 + $0x38] sm:$0xff] %v1133
        %v1142 = vadd.f32 %v1126, %v1127
        %1143 = vadd.xlane.f32.xlu0 %v1142
        %v1144 = vpop.xlane.xlu0 %1143
        %v1145 = vadd.f32 %v1128, %v1129
        %1146 = vadd.xlane.f32.xlu0 %v1145
        %v1147 = vpop.xlane.xlu0 %1146
        %v1148 = vadd.f32 %v1130, %v1131
        %1149 = vadd.xlane.f32.xlu0 %v1148
        %v1150 = vpop.xlane.xlu0 %1149
        %v1151 = vadd.f32 %v1132, %v1133
        %1152 = vadd.xlane.f32.xlu0 %v1151
        %v1153 = vpop.xlane.xlu0 %1152
        %v1154 = vadd.f32 %v1144, 0.0
        %v1155 = vadd.f32 %v1147, 0.0
        %v1156 = vadd.f32 %v1150, 0.0
        %v1157 = vadd.f32 %v1153, 0.0
        %v1158 = vmul.f32 %v1126, %v1126
        %v1159 = vmul.f32 %v1127, %v1127
        %v1160 = vmul.f32 %v1128, %v1128
        %v1161 = vmul.f32 %v1129, %v1129
        %v1162 = vmul.f32 %v1130, %v1130
        %v1163 = vmul.f32 %v1131, %v1131
        %v1164 = vmul.f32 %v1132, %v1132
        %v1165 = vmul.f32 %v1133, %v1133
        %v1166 = vadd.f32 %v1158, %v1159
        %1167 = vadd.xlane.f32.xlu0 %v1166
        %v1168 = vpop.xlane.xlu0 %1167
        %v1169 = vadd.f32 %v1160, %v1161
        %1170 = vadd.xlane.f32.xlu0 %v1169
        %v1171 = vpop.xlane.xlu0 %1170
        %v1172 = vadd.f32 %v1162, %v1163
        %1173 = vadd.xlane.f32.xlu0 %v1172
        %v1174 = vpop.xlane.xlu0 %1173
        %v1175 = vadd.f32 %v1164, %v1165
        %1176 = vadd.xlane.f32.xlu0 %v1175
        %v1177 = vpop.xlane.xlu0 %1176
        %v1178 = vadd.f32 %v1168, 0.0
        %v1179 = vadd.f32 %v1171, 0.0
        %v1180 = vadd.f32 %v1174, 0.0
        %v1181 = vadd.f32 %v1177, 0.0
        %1182 = vrot.lane.b32.xlu0 %v555, 16
        %v1183 = vpop.permute.xlu0 %1182
        %1184 = vrot.lane.b32.xlu0 %v557, 16
        %v1185 = vpop.permute.xlu0 %1184
        %1186 = vrot.lane.b32.xlu0 %v556, 16
        %v1187 = vpop.permute.xlu0 %1186
        %1188 = vrot.lane.b32.xlu0 %v558, 16
        %v1189 = vpop.permute.xlu0 %1188
        %v1190 = vsel %vm603, %v1183, %v1187
        %v1191 = vsel %vm603, %v1185, %v1189
        %v1192 = vsel %vm603, %v1187, %v1183
        %v1193 = vsel %vm603, %v1189, %v1185
        %v1194 = vmul.f32 %v1192, %v612
        %v1195 = vmul.f32 %v1190, %v616
        %v1196 = vmul.f32 %v1193, %v612
        %v1197 = vmul.f32 %v1191, %v616
        %1198 = vrot.lane.b32.xlu0 %v555, 112
        %v1199 = vpop.permute.xlu0 %1198
        %1200 = vrot.lane.b32.xlu0 %v557, 112
        %v1201 = vpop.permute.xlu0 %1200
        %1202 = vrot.lane.b32.xlu0 %v556, 112
        %v1203 = vpop.permute.xlu0 %1202
        %1204 = vrot.lane.b32.xlu0 %v558, 112
        %v1205 = vpop.permute.xlu0 %1204
        %v1206 = vsel %vm631, %v1199, %v1203
        %v1207 = vsel %vm631, %v1201, %v1205
        %v1208 = vsel %vm631, %v1203, %v1199
        %v1209 = vsel %vm631, %v1205, %v1201
        %v1210 = vmul.f32 %v1206, %v640
        %v1211 = vmul.f32 %v1208, %v644
        %v1212 = vmul.f32 %v1207, %v640
        %v1213 = vmul.f32 %v1209, %v644
        %1214 = vrot.lane.b32.xlu0 %v1194, 1
        %v1215 = vpop.permute.xlu0 %1214
        %1216 = vrot.lane.b32.xlu0 %v1196, 1
        %v1217 = vpop.permute.xlu0 %1216
        %1218 = vrot.lane.b32.xlu0 %v1195, 1
        %v1219 = vpop.permute.xlu0 %1218
        %1220 = vrot.lane.b32.xlu0 %v1197, 1
        %v1221 = vpop.permute.xlu0 %1220
        %v1222 = vsel %vm659, %v1215, %v1219
        %v1223 = vsel %vm659, %v1217, %v1221
        %v1224 = vsel %vm659, %v1219, %v1215
        %v1225 = vsel %vm659, %v1221, %v1217
        %v1226 = vmul.f32 %v1224, %v668
        %v1227 = vmul.f32 %v1222, %v672
        %v1228 = vmul.f32 %v1225, %v668
        %v1229 = vmul.f32 %v1223, %v672
        %1230 = vrot.lane.b32.xlu0 %v1194, 127
        %v1231 = vpop.permute.xlu0 %1230
        %1232 = vrot.lane.b32.xlu0 %v1196, 127
        %v1233 = vpop.permute.xlu0 %1232
        %1234 = vrot.lane.b32.xlu0 %v1195, 127
        %v1235 = vpop.permute.xlu0 %1234
        %1236 = vrot.lane.b32.xlu0 %v1197, 127
        %v1237 = vpop.permute.xlu0 %1236
        %v1238 = vsel %vm687, %v1231, %v1235
        %v1239 = vsel %vm687, %v1233, %v1237
        %v1240 = vsel %vm687, %v1235, %v1231
        %v1241 = vsel %vm687, %v1237, %v1233
        %v1242 = vmul.f32 %v1238, %v696
        %v1243 = vmul.f32 %v1240, %v700
        %v1244 = vmul.f32 %v1239, %v696
        %v1245 = vmul.f32 %v1241, %v700
        %1246 = vrot.lane.b32.xlu0 %v1210, 1
        %v1247 = vpop.permute.xlu0 %1246
        %1248 = vrot.lane.b32.xlu0 %v1212, 1
        %v1249 = vpop.permute.xlu0 %1248
        %1250 = vrot.lane.b32.xlu0 %v1211, 1
        %v1251 = vpop.permute.xlu0 %1250
        %1252 = vrot.lane.b32.xlu0 %v1213, 1
        %v1253 = vpop.permute.xlu0 %1252
        %v1254 = vsel %vm659, %v1247, %v1251
        %v1255 = vsel %vm659, %v1249, %v1253
        %v1256 = vsel %vm659, %v1251, %v1247
        %v1257 = vsel %vm659, %v1253, %v1249
        %v1258 = vmul.f32 %v1256, %v668
        %v1259 = vmul.f32 %v1254, %v672
        %v1260 = vmul.f32 %v1257, %v668
        %v1261 = vmul.f32 %v1255, %v672
        %1262 = vrot.lane.b32.xlu0 %v1210, 127
        %v1263 = vpop.permute.xlu0 %1262
        %1264 = vrot.lane.b32.xlu0 %v1212, 127
        %v1265 = vpop.permute.xlu0 %1264
        %1266 = vrot.lane.b32.xlu0 %v1211, 127
        %v1267 = vpop.permute.xlu0 %1266
        %1268 = vrot.lane.b32.xlu0 %v1213, 127
        %v1269 = vpop.permute.xlu0 %1268
        %v1270 = vsel %vm687, %v1263, %v1267
        %v1271 = vsel %vm687, %v1265, %v1269
        %v1272 = vsel %vm687, %v1267, %v1263
        %v1273 = vsel %vm687, %v1269, %v1265
        %v1274 = vmul.f32 %v1270, %v696
        %v1275 = vmul.f32 %v1272, %v700
        %v1276 = vmul.f32 %v1271, %v696
        %v1277 = vmul.f32 %v1273, %v700
        %1278 = vmatprep.subr.mxu0 %v1227
        %1279 = vmatpush1.msra.mxu0 %v1226
        %1280 = vmatprep.subr.mxu0 %v1229
        %1281 = vmatpush1.msra.mxu0 %v1228
        %1282 = vmatprep.subr.mxu0 %v1195
        %1283 = vmatpush1.msra.mxu0 %v1194
        %1284 = vmatprep.subr.mxu0 %v1197
        %1285 = vmatpush1.msra.mxu0 %v1196
        %1286 = vmatprep.subr.mxu0 %v1243
        %1287 = vmatpush1.msra.mxu0 %v1242
        %1288 = vmatprep.subr.mxu0 %v1245
        %1289 = vmatpush1.msra.mxu0 %v1244
        %1290 = vmatprep.subr.mxu0 %v990
        %1291 = vmatpush1.msra.mxu0 %v989
        %1292 = vmatprep.subr.mxu0 %v992
        %1293 = vmatpush1.msra.mxu0 %v991
        %1294 = vmatprep.subr.mxu0 %v556
        %1295 = vmatpush1.msra.mxu0 %v555
        %1296 = vmatprep.subr.mxu0 %v558
        %1297 = vmatpush1.msra.mxu0 %v557
        %1298 = vmatprep.subr.mxu0 %v1006
        %1299 = vmatpush1.msra.mxu0 %v1005
        %1300 = vmatprep.subr.mxu0 %v1008
        %1301 = vmatpush1.msra.mxu0 %v1007
        %1302 = vmatprep.subr.mxu0 %v1259
        %1303 = vmatpush1.msra.mxu0 %v1258
        %1304 = vmatprep.subr.mxu0 %v1261
        %1305 = vmatpush1.msra.mxu0 %v1260
        %1306 = vmatprep.subr.mxu0 %v1211
        %1307 = vmatpush1.msra.mxu0 %v1210
        %1308 = vmatprep.subr.mxu0 %v1213
        %1309 = vmatpush1.msra.mxu0 %v1212
        %1310 = vmatprep.subr.mxu0 %v1275
        %1311 = vmatpush1.msra.mxu0 %v1274
        %1312 = vmatprep.subr.mxu0 %v1277
        %1313 = vmatpush1.msra.mxu0 %v1276
        %1314 = vmatprep.subr.mxu0 0.0
        %1315 = vmatpush1.msra.mxu0 0.0
        %1316 = vmatprep.subr.mxu0 0.0
        %1317 = vmatpush1.msra.mxu0 0.0
        %1318 = vmatprep.subr.mxu0 0.0
        %1319 = vmatpush1.msra.mxu0 0.0
        %1320 = vmatprep.subr.mxu0 0.0
        %1321 = vmatpush1.msra.mxu0 0.0
        %1322 = vmatprep.subr.mxu0 0.0
        %1323 = vmatpush1.msra.mxu0 0.0
        %1324 = vmatprep.subr.mxu0 0.0
        %1325 = vmatpush1.msra.mxu0 0.0
        %1326 = vmatprep.subr.mxu0 0.0
        %1327 = vmatpush1.msra.mxu0 0.0
        %1328 = vmatprep.subr.mxu0 0.0
        %1329 = vmatpush1.msra.mxu0 0.0
        %1330 = vmatprep.subr.mxu0 0.0
        %1331 = vmatpush1.msra.mxu0 0.0
        %1332 = vmatprep.subr.mxu0 0.0
        %1333 = vmatpush1.msra.mxu0 0.0
        %1334 = vmatprep.subr.mxu0 0.0
        %1335 = vmatpush1.msra.mxu0 0.0
        %1336 = vmatprep.subr.mxu0 0.0
        %1337 = vmatpush1.msra.mxu0 0.0
        %1338 = vmatprep.subr.mxu0 0.0
        %1339 = vmatpush1.msra.mxu0 0.0
        %1340 = vmatprep.subr.mxu0 0.0
        %1341 = vmatpush1.msra.mxu0 0.0
        %1342 = vmatprep.mubr.f32.mxu0 %v773
        %1343 = vmatmul.mubr.f32.gmra.mrb[0].mxu0 %v534
        %v1344 = vpop.f32.mrb[0].mxu0
        %v1345 = vadd.f32 0.0, %v1344
        %v1346 = vpop.f32.mrb[0].mxu0
        %v1347 = vadd.f32 0.0, %v1346
        %1348 = vmatprep.mubr.f32.mxu0 %v776
        %1349 = vmatmul.mubr.f32.gmra.mrb[0].mxu0 %v536
        %v1350 = vpop.f32.mrb[0].mxu0
        %v1351 = vadd.f32 0.0, %v1350
        %v1352 = vpop.f32.mrb[0].mxu0
        %v1353 = vadd.f32 0.0, %v1352
        %1354 = vmatprep.mubr.f32.mxu0 %v779
        %1355 = vmatmul.mubr.f32.gmra.mrb[0].mxu0 %v538
        %v1356 = vpop.f32.mrb[0].mxu0
        %v1357 = vadd.f32 0.0, %v1356
        %v1358 = vpop.f32.mrb[0].mxu0
        %v1359 = vadd.f32 0.0, %v1358
        %1360 = vmatprep.mubr.f32.mxu0 %v782
        %1361 = vmatmul.mubr.f32.gmra.mrb[0].mxu0 %v540
        %v1362 = vpop.f32.mrb[0].mxu0
        %v1363 = vadd.f32 0.0, %v1362
        %v1364 = vpop.f32.mrb[0].mxu0
        %v1365 = vadd.f32 0.0, %v1364
        %1366 = vdwg.mxu0
        %vm1367 = vcmp.ge.f32.partialorder %v1345, 0.0
        %vm1368 = vcmp.ge.f32.partialorder %v1347, 0.0
        %vm1369 = vcmp.ge.f32.partialorder %v1351, 0.0
        %vm1370 = vcmp.ge.f32.partialorder %v1353, 0.0
        %vm1371 = vcmp.ge.f32.partialorder %v1357, 0.0
        %vm1372 = vcmp.ge.f32.partialorder %v1359, 0.0
        %vm1373 = vcmp.ge.f32.partialorder %v1363, 0.0
        %vm1374 = vcmp.ge.f32.partialorder %v1365, 0.0
        %v1375 = vmul.f32 %v1345, 0.01
        %v1376 = vmul.f32 %v1347, 0.01
        %v1377 = vmul.f32 %v1351, 0.01
        %v1378 = vmul.f32 %v1353, 0.01
        %v1379 = vmul.f32 %v1357, 0.01
        %v1380 = vmul.f32 %v1359, 0.01
        %v1381 = vmul.f32 %v1363, 0.01
        %v1382 = vmul.f32 %v1365, 0.01
        %v1383 = vsel %vm1367, %v1345, %v1375
        %v1384 = vsel %vm1368, %v1347, %v1376
        %v1385 = vsel %vm1369, %v1351, %v1377
        %v1386 = vsel %vm1370, %v1353, %v1378
        %v1387 = vsel %vm1371, %v1357, %v1379
        %v1388 = vsel %vm1372, %v1359, %v1380
        %v1389 = vsel %vm1373, %v1363, %v1381
        %v1390 = vsel %vm1374, %v1365, %v1382
        %s1391 = scalar_lea.vmem %s488, 64 [#allocation11]
        %1392 = vst [vmem:[%s1391] sm:$0xff] %v1383
        %1393 = vst [vmem:[%s1391 + $0x8] sm:$0xff] %v1384
        %1394 = vst [vmem:[%s1391 + $0x10] sm:$0xff] %v1385
        %1395 = vst [vmem:[%s1391 + $0x18] sm:$0xff] %v1386
        %1396 = vst [vmem:[%s1391 + $0x20] sm:$0xff] %v1387
        %1397 = vst [vmem:[%s1391 + $0x28] sm:$0xff] %v1388
        %1398 = vst [vmem:[%s1391 + $0x30] sm:$0xff] %v1389
        %1399 = vst [vmem:[%s1391 + $0x38] sm:$0xff] %v1390
        %v1400 = vadd.f32 %v1383, %v1384
        %1401 = vadd.xlane.f32.xlu0 %v1400
        %v1402 = vpop.xlane.xlu0 %1401
        %v1403 = vadd.f32 %v1385, %v1386
        %1404 = vadd.xlane.f32.xlu0 %v1403
        %v1405 = vpop.xlane.xlu0 %1404
        %v1406 = vadd.f32 %v1387, %v1388
        %1407 = vadd.xlane.f32.xlu0 %v1406
        %v1408 = vpop.xlane.xlu0 %1407
        %v1409 = vadd.f32 %v1389, %v1390
        %1410 = vadd.xlane.f32.xlu0 %v1409
        %v1411 = vpop.xlane.xlu0 %1410
        %v1412 = vadd.f32 %v917, %v1402
        %v1413 = vadd.f32 %v918, %v1405
        %v1414 = vadd.f32 %v919, %v1408
        %v1415 = vadd.f32 %v920, %v1411
        %v1416 = vmul.f32 %v1383, %v1383
        %v1417 = vmul.f32 %v1384, %v1384
        %v1418 = vmul.f32 %v1385, %v1385
        %v1419 = vmul.f32 %v1386, %v1386
        %v1420 = vmul.f32 %v1387, %v1387
        %v1421 = vmul.f32 %v1388, %v1388
        %v1422 = vmul.f32 %v1389, %v1389
        %v1423 = vmul.f32 %v1390, %v1390
        %v1424 = vadd.f32 %v1416, %v1417
        %1425 = vadd.xlane.f32.xlu0 %v1424
        %v1426 = vpop.xlane.xlu0 %1425
        %v1427 = vadd.f32 %v1418, %v1419
        %1428 = vadd.xlane.f32.xlu0 %v1427
        %v1429 = vpop.xlane.xlu0 %1428
        %v1430 = vadd.f32 %v1420, %v1421
        %1431 = vadd.xlane.f32.xlu0 %v1430
        %v1432 = vpop.xlane.xlu0 %1431
        %v1433 = vadd.f32 %v1422, %v1423
        %1434 = vadd.xlane.f32.xlu0 %v1433
        %v1435 = vpop.xlane.xlu0 %1434
        %v1436 = vadd.f32 %v941, %v1426
        %v1437 = vadd.f32 %v942, %v1429
        %v1438 = vadd.f32 %v943, %v1432
        %v1439 = vadd.f32 %v944, %v1435
        %1440 = vrot.lane.b32.xlu0 %v560, 1
        %v1441 = vpop.permute.xlu0 %1440
        %1442 = vrot.lane.b32.xlu0 %v562, 1
        %v1443 = vpop.permute.xlu0 %1442
        %1444 = vrot.lane.b32.xlu0 %v561, 1
        %v1445 = vpop.permute.xlu0 %1444
        %1446 = vrot.lane.b32.xlu0 %v563, 1
        %v1447 = vpop.permute.xlu0 %1446
        %v1448 = vsel %vm659, %v1441, %v1445
        %v1449 = vsel %vm659, %v1443, %v1447
        %v1450 = vsel %vm659, %v1445, %v1441
        %v1451 = vsel %vm659, %v1447, %v1443
        %v1452 = vmul.f32 %v1450, %v668
        %v1453 = vmul.f32 %v1448, %v672
        %v1454 = vmul.f32 %v1451, %v668
        %v1455 = vmul.f32 %v1449, %v672
        %1456 = vrot.lane.b32.xlu0 %v560, 127
        %v1457 = vpop.permute.xlu0 %1456
        %1458 = vrot.lane.b32.xlu0 %v562, 127
        %v1459 = vpop.permute.xlu0 %1458
        %1460 = vrot.lane.b32.xlu0 %v561, 127
        %v1461 = vpop.permute.xlu0 %1460
        %1462 = vrot.lane.b32.xlu0 %v563, 127
        %v1463 = vpop.permute.xlu0 %1462
        %v1464 = vsel %vm687, %v1457, %v1461
        %v1465 = vsel %vm687, %v1459, %v1463
        %v1466 = vsel %vm687, %v1461, %v1457
        %v1467 = vsel %vm687, %v1463, %v1459
        %v1468 = vmul.f32 %v1464, %v696
        %v1469 = vmul.f32 %v1466, %v700
        %v1470 = vmul.f32 %v1465, %v696
        %v1471 = vmul.f32 %v1467, %v700
        %1472 = vmatprep.subr.mxu0 %v720
        %1473 = vmatpush1.msra.mxu0 %v719
        %1474 = vmatprep.subr.mxu0 %v722
        %1475 = vmatpush1.msra.mxu0 %v721
        %1476 = vmatprep.subr.mxu0 %v551
        %1477 = vmatpush1.msra.mxu0 %v550
        %1478 = vmatprep.subr.mxu0 %v553
        %1479 = vmatpush1.msra.mxu0 %v552
        %1480 = vmatprep.subr.mxu0 %v736
        %1481 = vmatpush1.msra.mxu0 %v735
        %1482 = vmatprep.subr.mxu0 %v738
        %1483 = vmatpush1.msra.mxu0 %v737
        %1484 = vmatprep.subr.mxu0 %v990
        %1485 = vmatpush1.msra.mxu0 %v989
        %1486 = vmatprep.subr.mxu0 %v992
        %1487 = vmatpush1.msra.mxu0 %v991
        %1488 = vmatprep.subr.mxu0 %v556
        %1489 = vmatpush1.msra.mxu0 %v555
        %1490 = vmatprep.subr.mxu0 %v558
        %1491 = vmatpush1.msra.mxu0 %v557
        %1492 = vmatprep.subr.mxu0 %v1006
        %1493 = vmatpush1.msra.mxu0 %v1005
        %1494 = vmatprep.subr.mxu0 %v1008
        %1495 = vmatpush1.msra.mxu0 %v1007
        %1496 = vmatprep.subr.mxu0 %v1453
        %1497 = vmatpush1.msra.mxu0 %v1452
        %1498 = vmatprep.subr.mxu0 %v1455
        %1499 = vmatpush1.msra.mxu0 %v1454
        %1500 = vmatprep.subr.mxu0 %v561
        %1501 = vmatpush1.msra.mxu0 %v560
        %1502 = vmatprep.subr.mxu0 %v563
        %1503 = vmatpush1.msra.mxu0 %v562
        %1504 = vmatprep.subr.mxu0 %v1469
        %1505 = vmatpush1.msra.mxu0 %v1468
        %1506 = vmatprep.subr.mxu0 %v1471
        %1507 = vmatpush1.msra.mxu0 %v1470
        %1508 = vmatprep.subr.mxu0 0.0
        %1509 = vmatpush1.msra.mxu0 0.0
        %1510 = vmatprep.subr.mxu0 0.0
        %1511 = vmatpush1.msra.mxu0 0.0
        %1512 = vmatprep.subr.mxu0 0.0
        %1513 = vmatpush1.msra.mxu0 0.0
        %1514 = vmatprep.subr.mxu0 0.0
        %1515 = vmatpush1.msra.mxu0 0.0
        %1516 = vmatprep.subr.mxu0 0.0
        %1517 = vmatpush1.msra.mxu0 0.0
        %1518 = vmatprep.subr.mxu0 0.0
        %1519 = vmatpush1.msra.mxu0 0.0
        %1520 = vmatprep.subr.mxu0 0.0
        %1521 = vmatpush1.msra.mxu0 0.0
        %1522 = vmatprep.subr.mxu0 0.0
        %1523 = vmatpush1.msra.mxu0 0.0
        %1524 = vmatprep.subr.mxu0 0.0
        %1525 = vmatpush1.msra.mxu0 0.0
        %1526 = vmatprep.subr.mxu0 0.0
        %1527 = vmatpush1.msra.mxu0 0.0
        %1528 = vmatprep.subr.mxu0 0.0
        %1529 = vmatpush1.msra.mxu0 0.0
        %1530 = vmatprep.subr.mxu0 0.0
        %1531 = vmatpush1.msra.mxu0 0.0
        %1532 = vmatprep.subr.mxu0 0.0
        %1533 = vmatpush1.msra.mxu0 0.0
        %1534 = vmatprep.subr.mxu0 0.0
        %1535 = vmatpush1.msra.mxu0 0.0
        %1536 = vmatprep.mubr.f32.mxu0 %v1010
        %1537 = vmatmul.mubr.f32.gmra.mrb[0].mxu0 %v542
        %v1538 = vpop.f32.mrb[0].mxu0
        %v1539 = vadd.f32 0.0, %v1538
        %v1540 = vpop.f32.mrb[0].mxu0
        %v1541 = vadd.f32 0.0, %v1540
        %1542 = vmatprep.mubr.f32.mxu0 %v1013
        %1543 = vmatmul.mubr.f32.gmra.mrb[0].mxu0 %v544
        %v1544 = vpop.f32.mrb[0].mxu0
        %v1545 = vadd.f32 0.0, %v1544
        %v1546 = vpop.f32.mrb[0].mxu0
        %v1547 = vadd.f32 0.0, %v1546
        %1548 = vmatprep.mubr.f32.mxu0 %v1016
        %1549 = vmatmul.mubr.f32.gmra.mrb[0].mxu0 %v546
        %v1550 = vpop.f32.mrb[0].mxu0
        %v1551 = vadd.f32 0.0, %v1550
        %v1552 = vpop.f32.mrb[0].mxu0
        %v1553 = vadd.f32 0.0, %v1552
        %1554 = vmatprep.mubr.f32.mxu0 %v1019
        %1555 = vmatmul.mubr.f32.gmra.mrb[0].mxu0 %v548
        %v1556 = vpop.f32.mrb[0].mxu0
        %v1557 = vadd.f32 0.0, %v1556
        %v1558 = vpop.f32.mrb[0].mxu0
        %v1559 = vadd.f32 0.0, %v1558
        %1560 = vdwg.mxu0
        %vm1561 = vcmp.ge.f32.partialorder %v1539, 0.0
        %vm1562 = vcmp.ge.f32.partialorder %v1541, 0.0
        %vm1563 = vcmp.ge.f32.partialorder %v1545, 0.0
        %vm1564 = vcmp.ge.f32.partialorder %v1547, 0.0
        %vm1565 = vcmp.ge.f32.partialorder %v1551, 0.0
        %vm1566 = vcmp.ge.f32.partialorder %v1553, 0.0
        %vm1567 = vcmp.ge.f32.partialorder %v1557, 0.0
        %vm1568 = vcmp.ge.f32.partialorder %v1559, 0.0
        %v1569 = vmul.f32 %v1539, 0.01
        %v1570 = vmul.f32 %v1541, 0.01
        %v1571 = vmul.f32 %v1545, 0.01
        %v1572 = vmul.f32 %v1547, 0.01
        %v1573 = vmul.f32 %v1551, 0.01
        %v1574 = vmul.f32 %v1553, 0.01
        %v1575 = vmul.f32 %v1557, 0.01
        %v1576 = vmul.f32 %v1559, 0.01
        %v1577 = vsel %vm1561, %v1539, %v1569
        %v1578 = vsel %vm1562, %v1541, %v1570
        %v1579 = vsel %vm1563, %v1545, %v1571
        %v1580 = vsel %vm1564, %v1547, %v1572
        %v1581 = vsel %vm1565, %v1551, %v1573
        %v1582 = vsel %vm1566, %v1553, %v1574
        %v1583 = vsel %vm1567, %v1557, %v1575
        %v1584 = vsel %vm1568, %v1559, %v1576
        %s1585 = scalar_lea.vmem %s495, 64 [#allocation12]
        %1586 = vst [vmem:[%s1585] sm:$0xff] %v1577
        %1587 = vst [vmem:[%s1585 + $0x8] sm:$0xff] %v1578
        %1588 = vst [vmem:[%s1585 + $0x10] sm:$0xff] %v1579
        %1589 = vst [vmem:[%s1585 + $0x18] sm:$0xff] %v1580
        %1590 = vst [vmem:[%s1585 + $0x20] sm:$0xff] %v1581
        %1591 = vst [vmem:[%s1585 + $0x28] sm:$0xff] %v1582
        %1592 = vst [vmem:[%s1585 + $0x30] sm:$0xff] %v1583
        %1593 = vst [vmem:[%s1585 + $0x38] sm:$0xff] %v1584
        %v1594 = vadd.f32 %v1577, %v1578
        %1595 = vadd.xlane.f32.xlu0 %v1594
        %v1596 = vpop.xlane.xlu0 %1595
        %v1597 = vadd.f32 %v1579, %v1580
        %1598 = vadd.xlane.f32.xlu0 %v1597
        %v1599 = vpop.xlane.xlu0 %1598
        %v1600 = vadd.f32 %v1581, %v1582
        %1601 = vadd.xlane.f32.xlu0 %v1600
        %v1602 = vpop.xlane.xlu0 %1601
        %v1603 = vadd.f32 %v1583, %v1584
        %1604 = vadd.xlane.f32.xlu0 %v1603
        %v1605 = vpop.xlane.xlu0 %1604
        %v1606 = vadd.f32 %v1154, %v1596
        %v1607 = vadd.f32 %v1155, %v1599
        %v1608 = vadd.f32 %v1156, %v1602
        %v1609 = vadd.f32 %v1157, %v1605
        %v1610 = vmul.f32 %v1577, %v1577
        %v1611 = vmul.f32 %v1578, %v1578
        %v1612 = vmul.f32 %v1579, %v1579
        %v1613 = vmul.f32 %v1580, %v1580
        %v1614 = vmul.f32 %v1581, %v1581
        %v1615 = vmul.f32 %v1582, %v1582
        %v1616 = vmul.f32 %v1583, %v1583
        %v1617 = vmul.f32 %v1584, %v1584
        %v1618 = vadd.f32 %v1610, %v1611
        %1619 = vadd.xlane.f32.xlu0 %v1618
        %v1620 = vpop.xlane.xlu0 %1619
        %v1621 = vadd.f32 %v1612, %v1613
        %1622 = vadd.xlane.f32.xlu0 %v1621
        %v1623 = vpop.xlane.xlu0 %1622
        %v1624 = vadd.f32 %v1614, %v1615
        %1625 = vadd.xlane.f32.xlu0 %v1624
        %v1626 = vpop.xlane.xlu0 %1625
        %v1627 = vadd.f32 %v1616, %v1617
        %1628 = vadd.xlane.f32.xlu0 %v1627
        %v1629 = vpop.xlane.xlu0 %1628
        %v1630 = vadd.f32 %v1178, %v1620
        %v1631 = vadd.f32 %v1179, %v1623
        %v1632 = vadd.f32 %v1180, %v1626
        %v1633 = vadd.f32 %v1181, %v1629
        %1634 = vrot.lane.b32.xlu0 %v560, 16
        %v1635 = vpop.permute.xlu0 %1634
        %1636 = vrot.lane.b32.xlu0 %v562, 16
        %v1637 = vpop.permute.xlu0 %1636
        %1638 = vrot.lane.b32.xlu0 %v561, 16
        %v1639 = vpop.permute.xlu0 %1638
        %1640 = vrot.lane.b32.xlu0 %v563, 16
        %v1641 = vpop.permute.xlu0 %1640
        %v1642 = vsel %vm603, %v1635, %v1639
        %v1643 = vsel %vm603, %v1637, %v1641
        %v1644 = vsel %vm603, %v1639, %v1635
        %v1645 = vsel %vm603, %v1641, %v1637
        %v1646 = vmul.f32 %v1644, %v612
        %v1647 = vmul.f32 %v1642, %v616
        %v1648 = vmul.f32 %v1645, %v612
        %v1649 = vmul.f32 %v1643, %v616
        %1650 = vrot.lane.b32.xlu0 %v560, 112
        %v1651 = vpop.permute.xlu0 %1650
        %1652 = vrot.lane.b32.xlu0 %v562, 112
        %v1653 = vpop.permute.xlu0 %1652
        %1654 = vrot.lane.b32.xlu0 %v561, 112
        %v1655 = vpop.permute.xlu0 %1654
        %1656 = vrot.lane.b32.xlu0 %v563, 112
        %v1657 = vpop.permute.xlu0 %1656
        %v1658 = vsel %vm631, %v1651, %v1655
        %v1659 = vsel %vm631, %v1653, %v1657
        %v1660 = vsel %vm631, %v1655, %v1651
        %v1661 = vsel %vm631, %v1657, %v1653
        %v1662 = vmul.f32 %v1658, %v640
        %v1663 = vmul.f32 %v1660, %v644
        %v1664 = vmul.f32 %v1659, %v640
        %v1665 = vmul.f32 %v1661, %v644
        %1666 = vrot.lane.b32.xlu0 %v1646, 1
        %v1667 = vpop.permute.xlu0 %1666
        %1668 = vrot.lane.b32.xlu0 %v1648, 1
        %v1669 = vpop.permute.xlu0 %1668
        %1670 = vrot.lane.b32.xlu0 %v1647, 1
        %v1671 = vpop.permute.xlu0 %1670
        %1672 = vrot.lane.b32.xlu0 %v1649, 1
        %v1673 = vpop.permute.xlu0 %1672
        %v1674 = vsel %vm659, %v1667, %v1671
        %v1675 = vsel %vm659, %v1669, %v1673
        %v1676 = vsel %vm659, %v1671, %v1667
        %v1677 = vsel %vm659, %v1673, %v1669
        %v1678 = vmul.f32 %v1676, %v668
        %v1679 = vmul.f32 %v1674, %v672
        %v1680 = vmul.f32 %v1677, %v668
        %v1681 = vmul.f32 %v1675, %v672
        %1682 = vrot.lane.b32.xlu0 %v1646, 127
        %v1683 = vpop.permute.xlu0 %1682
        %1684 = vrot.lane.b32.xlu0 %v1648, 127
        %v1685 = vpop.permute.xlu0 %1684
        %1686 = vrot.lane.b32.xlu0 %v1647, 127
        %v1687 = vpop.permute.xlu0 %1686
        %1688 = vrot.lane.b32.xlu0 %v1649, 127
        %v1689 = vpop.permute.xlu0 %1688
        %v1690 = vsel %vm687, %v1683, %v1687
        %v1691 = vsel %vm687, %v1685, %v1689
        %v1692 = vsel %vm687, %v1687, %v1683
        %v1693 = vsel %vm687, %v1689, %v1685
        %v1694 = vmul.f32 %v1690, %v696
        %v1695 = vmul.f32 %v1692, %v700
        %v1696 = vmul.f32 %v1691, %v696
        %v1697 = vmul.f32 %v1693, %v700
        %1698 = vrot.lane.b32.xlu0 %v1662, 1
        %v1699 = vpop.permute.xlu0 %1698
        %1700 = vrot.lane.b32.xlu0 %v1664, 1
        %v1701 = vpop.permute.xlu0 %1700
        %1702 = vrot.lane.b32.xlu0 %v1663, 1
        %v1703 = vpop.permute.xlu0 %1702
        %1704 = vrot.lane.b32.xlu0 %v1665, 1
        %v1705 = vpop.permute.xlu0 %1704
        %v1706 = vsel %vm659, %v1699, %v1703
        %v1707 = vsel %vm659, %v1701, %v1705
        %v1708 = vsel %vm659, %v1703, %v1699
        %v1709 = vsel %vm659, %v1705, %v1701
        %v1710 = vmul.f32 %v1708, %v668
        %v1711 = vmul.f32 %v1706, %v672
        %v1712 = vmul.f32 %v1709, %v668
        %v1713 = vmul.f32 %v1707, %v672
        %1714 = vrot.lane.b32.xlu0 %v1662, 127
        %v1715 = vpop.permute.xlu0 %1714
        %1716 = vrot.lane.b32.xlu0 %v1664, 127
        %v1717 = vpop.permute.xlu0 %1716
        %1718 = vrot.lane.b32.xlu0 %v1663, 127
        %v1719 = vpop.permute.xlu0 %1718
        %1720 = vrot.lane.b32.xlu0 %v1665, 127
        %v1721 = vpop.permute.xlu0 %1720
        %v1722 = vsel %vm687, %v1715, %v1719
        %v1723 = vsel %vm687, %v1717, %v1721
        %v1724 = vsel %vm687, %v1719, %v1715
        %v1725 = vsel %vm687, %v1721, %v1717
        %v1726 = vmul.f32 %v1722, %v696
        %v1727 = vmul.f32 %v1724, %v700
        %v1728 = vmul.f32 %v1723, %v696
        %v1729 = vmul.f32 %v1725, %v700
        %1730 = vmatprep.subr.mxu0 %v1679
        %1731 = vmatpush1.msra.mxu0 %v1678
        %1732 = vmatprep.subr.mxu0 %v1681
        %1733 = vmatpush1.msra.mxu0 %v1680
        %1734 = vmatprep.subr.mxu0 %v1647
        %1735 = vmatpush1.msra.mxu0 %v1646
        %1736 = vmatprep.subr.mxu0 %v1649
        %1737 = vmatpush1.msra.mxu0 %v1648
        %1738 = vmatprep.subr.mxu0 %v1695
        %1739 = vmatpush1.msra.mxu0 %v1694
        %1740 = vmatprep.subr.mxu0 %v1697
        %1741 = vmatpush1.msra.mxu0 %v1696
        %1742 = vmatprep.subr.mxu0 %v1453
        %1743 = vmatpush1.msra.mxu0 %v1452
        %1744 = vmatprep.subr.mxu0 %v1455
        %1745 = vmatpush1.msra.mxu0 %v1454
        %1746 = vmatprep.subr.mxu0 %v561
        %1747 = vmatpush1.msra.mxu0 %v560
        %1748 = vmatprep.subr.mxu0 %v563
        %1749 = vmatpush1.msra.mxu0 %v562
        %1750 = vmatprep.subr.mxu0 %v1469
        %1751 = vmatpush1.msra.mxu0 %v1468
        %1752 = vmatprep.subr.mxu0 %v1471
        %1753 = vmatpush1.msra.mxu0 %v1470
        %1754 = vmatprep.subr.mxu0 %v1711
        %1755 = vmatpush1.msra.mxu0 %v1710
        %1756 = vmatprep.subr.mxu0 %v1713
        %1757 = vmatpush1.msra.mxu0 %v1712
        %1758 = vmatprep.subr.mxu0 %v1663
        %1759 = vmatpush1.msra.mxu0 %v1662
        %1760 = vmatprep.subr.mxu0 %v1665
        %1761 = vmatpush1.msra.mxu0 %v1664
        %1762 = vmatprep.subr.mxu0 %v1727
        %1763 = vmatpush1.msra.mxu0 %v1726
        %1764 = vmatprep.subr.mxu0 %v1729
        %1765 = vmatpush1.msra.mxu0 %v1728
        %1766 = vmatprep.subr.mxu0 0.0
        %1767 = vmatpush1.msra.mxu0 0.0
        %1768 = vmatprep.subr.mxu0 0.0
        %1769 = vmatpush1.msra.mxu0 0.0
        %1770 = vmatprep.subr.mxu0 0.0
        %1771 = vmatpush1.msra.mxu0 0.0
        %1772 = vmatprep.subr.mxu0 0.0
        %1773 = vmatpush1.msra.mxu0 0.0
        %1774 = vmatprep.subr.mxu0 0.0
        %1775 = vmatpush1.msra.mxu0 0.0
        %1776 = vmatprep.subr.mxu0 0.0
        %1777 = vmatpush1.msra.mxu0 0.0
        %1778 = vmatprep.subr.mxu0 0.0
        %1779 = vmatpush1.msra.mxu0 0.0
        %1780 = vmatprep.subr.mxu0 0.0
        %1781 = vmatpush1.msra.mxu0 0.0
        %1782 = vmatprep.subr.mxu0 0.0
        %1783 = vmatpush1.msra.mxu0 0.0
        %1784 = vmatprep.subr.mxu0 0.0
        %1785 = vmatpush1.msra.mxu0 0.0
        %1786 = vmatprep.subr.mxu0 0.0
        %1787 = vmatpush1.msra.mxu0 0.0
        %1788 = vmatprep.subr.mxu0 0.0
        %1789 = vmatpush1.msra.mxu0 0.0
        %1790 = vmatprep.subr.mxu0 0.0
        %1791 = vmatpush1.msra.mxu0 0.0
        %1792 = vmatprep.subr.mxu0 0.0
        %1793 = vmatpush1.msra.mxu0 0.0
        %1794 = vmatprep.mubr.f32.mxu0 %v773
        %1795 = vmatmul.mubr.f32.gmra.mrb[0].mxu0 %v534
        %v1796 = vpop.f32.mrb[0].mxu0
        %v1797 = vadd.f32 0.0, %v1796
        %v1798 = vpop.f32.mrb[0].mxu0
        %v1799 = vadd.f32 0.0, %v1798
        %1800 = vmatprep.mubr.f32.mxu0 %v776
        %1801 = vmatmul.mubr.f32.gmra.mrb[0].mxu0 %v536
        %v1802 = vpop.f32.mrb[0].mxu0
        %v1803 = vadd.f32 0.0, %v1802
        %v1804 = vpop.f32.mrb[0].mxu0
        %v1805 = vadd.f32 0.0, %v1804
        %1806 = vmatprep.mubr.f32.mxu0 %v779
        %1807 = vmatmul.mubr.f32.gmra.mrb[0].mxu0 %v538
        %v1808 = vpop.f32.mrb[0].mxu0
        %v1809 = vadd.f32 0.0, %v1808
        %v1810 = vpop.f32.mrb[0].mxu0
        %v1811 = vadd.f32 0.0, %v1810
        %1812 = vmatprep.mubr.f32.mxu0 %v782
        %1813 = vmatmul.mubr.f32.gmra.mrb[0].mxu0 %v540
        %v1814 = vpop.f32.mrb[0].mxu0
        %v1815 = vadd.f32 0.0, %v1814
        %v1816 = vpop.f32.mrb[0].mxu0
        %v1817 = vadd.f32 0.0, %v1816
        %1818 = vdwg.mxu0
        %vm1819 = vcmp.ge.f32.partialorder %v1797, 0.0
        %vm1820 = vcmp.ge.f32.partialorder %v1799, 0.0
        %vm1821 = vcmp.ge.f32.partialorder %v1803, 0.0
        %vm1822 = vcmp.ge.f32.partialorder %v1805, 0.0
        %vm1823 = vcmp.ge.f32.partialorder %v1809, 0.0
        %vm1824 = vcmp.ge.f32.partialorder %v1811, 0.0
        %vm1825 = vcmp.ge.f32.partialorder %v1815, 0.0
        %vm1826 = vcmp.ge.f32.partialorder %v1817, 0.0
        %v1827 = vmul.f32 %v1797, 0.01
        %v1828 = vmul.f32 %v1799, 0.01
        %v1829 = vmul.f32 %v1803, 0.01
        %v1830 = vmul.f32 %v1805, 0.01
        %v1831 = vmul.f32 %v1809, 0.01
        %v1832 = vmul.f32 %v1811, 0.01
        %v1833 = vmul.f32 %v1815, 0.01
        %v1834 = vmul.f32 %v1817, 0.01
        %v1835 = vsel %vm1819, %v1797, %v1827
        %v1836 = vsel %vm1820, %v1799, %v1828
        %v1837 = vsel %vm1821, %v1803, %v1829
        %v1838 = vsel %vm1822, %v1805, %v1830
        %v1839 = vsel %vm1823, %v1809, %v1831
        %v1840 = vsel %vm1824, %v1811, %v1832
        %v1841 = vsel %vm1825, %v1815, %v1833
        %v1842 = vsel %vm1826, %v1817, %v1834
        %s1843 = scalar_lea.vmem %s488, 128 [#allocation11]
        %1844 = vst [vmem:[%s1843] sm:$0xff] %v1835
        %1845 = vst [vmem:[%s1843 + $0x8] sm:$0xff] %v1836
        %1846 = vst [vmem:[%s1843 + $0x10] sm:$0xff] %v1837
        %1847 = vst [vmem:[%s1843 + $0x18] sm:$0xff] %v1838
        %1848 = vst [vmem:[%s1843 + $0x20] sm:$0xff] %v1839
        %1849 = vst [vmem:[%s1843 + $0x28] sm:$0xff] %v1840
        %1850 = vst [vmem:[%s1843 + $0x30] sm:$0xff] %v1841
        %1851 = vst [vmem:[%s1843 + $0x38] sm:$0xff] %v1842
        %v1852 = vadd.f32 %v1835, %v1836
        %1853 = vadd.xlane.f32.xlu0 %v1852
        %v1854 = vpop.xlane.xlu0 %1853
        %v1855 = vadd.f32 %v1837, %v1838
        %1856 = vadd.xlane.f32.xlu0 %v1855
        %v1857 = vpop.xlane.xlu0 %1856
        %v1858 = vadd.f32 %v1839, %v1840
        %1859 = vadd.xlane.f32.xlu0 %v1858
        %v1860 = vpop.xlane.xlu0 %1859
        %v1861 = vadd.f32 %v1841, %v1842
        %1862 = vadd.xlane.f32.xlu0 %v1861
        %v1863 = vpop.xlane.xlu0 %1862
        %v1864 = vadd.f32 %v1412, %v1854
        %v1865 = vadd.f32 %v1413, %v1857
        %v1866 = vadd.f32 %v1414, %v1860
        %v1867 = vadd.f32 %v1415, %v1863
        %v1868 = vmul.f32 %v1835, %v1835
        %v1869 = vmul.f32 %v1836, %v1836
        %v1870 = vmul.f32 %v1837, %v1837
        %v1871 = vmul.f32 %v1838, %v1838
        %v1872 = vmul.f32 %v1839, %v1839
        %v1873 = vmul.f32 %v1840, %v1840
        %v1874 = vmul.f32 %v1841, %v1841
        %v1875 = vmul.f32 %v1842, %v1842
        %v1876 = vadd.f32 %v1868, %v1869
        %1877 = vadd.xlane.f32.xlu0 %v1876
        %v1878 = vpop.xlane.xlu0 %1877
        %v1879 = vadd.f32 %v1870, %v1871
        %1880 = vadd.xlane.f32.xlu0 %v1879
        %v1881 = vpop.xlane.xlu0 %1880
        %v1882 = vadd.f32 %v1872, %v1873
        %1883 = vadd.xlane.f32.xlu0 %v1882
        %v1884 = vpop.xlane.xlu0 %1883
        %v1885 = vadd.f32 %v1874, %v1875
        %1886 = vadd.xlane.f32.xlu0 %v1885
        %v1887 = vpop.xlane.xlu0 %1886
        %v1888 = vadd.f32 %v1436, %v1878
        %v1889 = vadd.f32 %v1437, %v1881
        %v1890 = vadd.f32 %v1438, %v1884
        %v1891 = vadd.f32 %v1439, %v1887
        %1892 = vrot.lane.b32.xlu0 %v565, 1
        %v1893 = vpop.permute.xlu0 %1892
        %1894 = vrot.lane.b32.xlu0 %v567, 1
        %v1895 = vpop.permute.xlu0 %1894
        %1896 = vrot.lane.b32.xlu0 %v566, 1
        %v1897 = vpop.permute.xlu0 %1896
        %1898 = vrot.lane.b32.xlu0 %v568, 1
        %v1899 = vpop.permute.xlu0 %1898
        %v1900 = vsel %vm659, %v1893, %v1897
        %v1901 = vsel %vm659, %v1895, %v1899
        %v1902 = vsel %vm659, %v1897, %v1893
        %v1903 = vsel %vm659, %v1899, %v1895
        %v1904 = vmul.f32 %v1902, %v668
        %v1905 = vmul.f32 %v1900, %v672
        %v1906 = vmul.f32 %v1903, %v668
        %v1907 = vmul.f32 %v1901, %v672
        %1908 = vrot.lane.b32.xlu0 %v565, 127
        %v1909 = vpop.permute.xlu0 %1908
        %1910 = vrot.lane.b32.xlu0 %v567, 127
        %v1911 = vpop.permute.xlu0 %1910
        %1912 = vrot.lane.b32.xlu0 %v566, 127
        %v1913 = vpop.permute.xlu0 %1912
        %1914 = vrot.lane.b32.xlu0 %v568, 127
        %v1915 = vpop.permute.xlu0 %1914
        %v1916 = vsel %vm687, %v1909, %v1913
        %v1917 = vsel %vm687, %v1911, %v1915
        %v1918 = vsel %vm687, %v1913, %v1909
        %v1919 = vsel %vm687, %v1915, %v1911
        %v1920 = vmul.f32 %v1916, %v696
        %v1921 = vmul.f32 %v1918, %v700
        %v1922 = vmul.f32 %v1917, %v696
        %v1923 = vmul.f32 %v1919, %v700
        %1924 = vmatprep.subr.mxu0 %v990
        %1925 = vmatpush1.msra.mxu0 %v989
        %1926 = vmatprep.subr.mxu0 %v992
        %1927 = vmatpush1.msra.mxu0 %v991
        %1928 = vmatprep.subr.mxu0 %v556
        %1929 = vmatpush1.msra.mxu0 %v555
        %1930 = vmatprep.subr.mxu0 %v558
        %1931 = vmatpush1.msra.mxu0 %v557
        %1932 = vmatprep.subr.mxu0 %v1006
        %1933 = vmatpush1.msra.mxu0 %v1005
        %1934 = vmatprep.subr.mxu0 %v1008
        %1935 = vmatpush1.msra.mxu0 %v1007
        %1936 = vmatprep.subr.mxu0 %v1453
        %1937 = vmatpush1.msra.mxu0 %v1452
        %1938 = vmatprep.subr.mxu0 %v1455
        %1939 = vmatpush1.msra.mxu0 %v1454
        %1940 = vmatprep.subr.mxu0 %v561
        %1941 = vmatpush1.msra.mxu0 %v560
        %1942 = vmatprep.subr.mxu0 %v563
        %1943 = vmatpush1.msra.mxu0 %v562
        %1944 = vmatprep.subr.mxu0 %v1469
        %1945 = vmatpush1.msra.mxu0 %v1468
        %1946 = vmatprep.subr.mxu0 %v1471
        %1947 = vmatpush1.msra.mxu0 %v1470
        %1948 = vmatprep.subr.mxu0 %v1905
        %1949 = vmatpush1.msra.mxu0 %v1904
        %1950 = vmatprep.subr.mxu0 %v1907
        %1951 = vmatpush1.msra.mxu0 %v1906
        %1952 = vmatprep.subr.mxu0 %v566
        %1953 = vmatpush1.msra.mxu0 %v565
        %1954 = vmatprep.subr.mxu0 %v568
        %1955 = vmatpush1.msra.mxu0 %v567
        %1956 = vmatprep.subr.mxu0 %v1921
        %1957 = vmatpush1.msra.mxu0 %v1920
        %1958 = vmatprep.subr.mxu0 %v1923
        %1959 = vmatpush1.msra.mxu0 %v1922
        %1960 = vmatprep.subr.mxu0 0.0
        %1961 = vmatpush1.msra.mxu0 0.0
        %1962 = vmatprep.subr.mxu0 0.0
        %1963 = vmatpush1.msra.mxu0 0.0
        %1964 = vmatprep.subr.mxu0 0.0
        %1965 = vmatpush1.msra.mxu0 0.0
        %1966 = vmatprep.subr.mxu0 0.0
        %1967 = vmatpush1.msra.mxu0 0.0
        %1968 = vmatprep.subr.mxu0 0.0
        %1969 = vmatpush1.msra.mxu0 0.0
        %1970 = vmatprep.subr.mxu0 0.0
        %1971 = vmatpush1.msra.mxu0 0.0
        %1972 = vmatprep.subr.mxu0 0.0
        %1973 = vmatpush1.msra.mxu0 0.0
        %1974 = vmatprep.subr.mxu0 0.0
        %1975 = vmatpush1.msra.mxu0 0.0
        %1976 = vmatprep.subr.mxu0 0.0
        %1977 = vmatpush1.msra.mxu0 0.0
        %1978 = vmatprep.subr.mxu0 0.0
        %1979 = vmatpush1.msra.mxu0 0.0
        %1980 = vmatprep.subr.mxu0 0.0
        %1981 = vmatpush1.msra.mxu0 0.0
        %1982 = vmatprep.subr.mxu0 0.0
        %1983 = vmatpush1.msra.mxu0 0.0
        %1984 = vmatprep.subr.mxu0 0.0
        %1985 = vmatpush1.msra.mxu0 0.0
        %1986 = vmatprep.subr.mxu0 0.0
        %1987 = vmatpush1.msra.mxu0 0.0
        %1988 = vmatprep.mubr.f32.mxu0 %v1010
        %1989 = vmatmul.mubr.f32.gmra.mrb[0].mxu0 %v542
        %v1990 = vpop.f32.mrb[0].mxu0
        %v1991 = vadd.f32 0.0, %v1990
        %v1992 = vpop.f32.mrb[0].mxu0
        %v1993 = vadd.f32 0.0, %v1992
        %1994 = vmatprep.mubr.f32.mxu0 %v1013
        %1995 = vmatmul.mubr.f32.gmra.mrb[0].mxu0 %v544
        %v1996 = vpop.f32.mrb[0].mxu0
        %v1997 = vadd.f32 0.0, %v1996
        %v1998 = vpop.f32.mrb[0].mxu0
        %v1999 = vadd.f32 0.0, %v1998
        %2000 = vmatprep.mubr.f32.mxu0 %v1016
        %2001 = vmatmul.mubr.f32.gmra.mrb[0].mxu0 %v546
        %v2002 = vpop.f32.mrb[0].mxu0
        %v2003 = vadd.f32 0.0, %v2002
        %v2004 = vpop.f32.mrb[0].mxu0
        %v2005 = vadd.f32 0.0, %v2004
        %2006 = vmatprep.mubr.f32.mxu0 %v1019
        %2007 = vmatmul.mubr.f32.gmra.mrb[0].mxu0 %v548
        %v2008 = vpop.f32.mrb[0].mxu0
        %v2009 = vadd.f32 0.0, %v2008
        %v2010 = vpop.f32.mrb[0].mxu0
        %v2011 = vadd.f32 0.0, %v2010
        %2012 = vdwg.mxu0
        %vm2013 = vcmp.ge.f32.partialorder %v1991, 0.0
        %vm2014 = vcmp.ge.f32.partialorder %v1993, 0.0
        %vm2015 = vcmp.ge.f32.partialorder %v1997, 0.0
        %vm2016 = vcmp.ge.f32.partialorder %v1999, 0.0
        %vm2017 = vcmp.ge.f32.partialorder %v2003, 0.0
        %vm2018 = vcmp.ge.f32.partialorder %v2005, 0.0
        %vm2019 = vcmp.ge.f32.partialorder %v2009, 0.0
        %vm2020 = vcmp.ge.f32.partialorder %v2011, 0.0
        %v2021 = vmul.f32 %v1991, 0.01
        %v2022 = vmul.f32 %v1993, 0.01
        %v2023 = vmul.f32 %v1997, 0.01
        %v2024 = vmul.f32 %v1999, 0.01
        %v2025 = vmul.f32 %v2003, 0.01
        %v2026 = vmul.f32 %v2005, 0.01
        %v2027 = vmul.f32 %v2009, 0.01
        %v2028 = vmul.f32 %v2011, 0.01
        %v2029 = vsel %vm2013, %v1991, %v2021
        %v2030 = vsel %vm2014, %v1993, %v2022
        %v2031 = vsel %vm2015, %v1997, %v2023
        %v2032 = vsel %vm2016, %v1999, %v2024
        %v2033 = vsel %vm2017, %v2003, %v2025
        %v2034 = vsel %vm2018, %v2005, %v2026
        %v2035 = vsel %vm2019, %v2009, %v2027
        %v2036 = vsel %vm2020, %v2011, %v2028
        %s2037 = scalar_lea.vmem %s495, 128 [#allocation12]
        %2038 = vst [vmem:[%s2037] sm:$0xff] %v2029
        %2039 = vst [vmem:[%s2037 + $0x8] sm:$0xff] %v2030
        %2040 = vst [vmem:[%s2037 + $0x10] sm:$0xff] %v2031
        %2041 = vst [vmem:[%s2037 + $0x18] sm:$0xff] %v2032
        %2042 = vst [vmem:[%s2037 + $0x20] sm:$0xff] %v2033
        %2043 = vst [vmem:[%s2037 + $0x28] sm:$0xff] %v2034
        %2044 = vst [vmem:[%s2037 + $0x30] sm:$0xff] %v2035
        %2045 = vst [vmem:[%s2037 + $0x38] sm:$0xff] %v2036
        %v2046 = vadd.f32 %v2029, %v2030
        %2047 = vadd.xlane.f32.xlu0 %v2046
        %v2048 = vpop.xlane.xlu0 %2047
        %v2049 = vadd.f32 %v2031, %v2032
        %2050 = vadd.xlane.f32.xlu0 %v2049
        %v2051 = vpop.xlane.xlu0 %2050
        %v2052 = vadd.f32 %v2033, %v2034
        %2053 = vadd.xlane.f32.xlu0 %v2052
        %v2054 = vpop.xlane.xlu0 %2053
        %v2055 = vadd.f32 %v2035, %v2036
        %2056 = vadd.xlane.f32.xlu0 %v2055
        %v2057 = vpop.xlane.xlu0 %2056
        %v2058 = vadd.f32 %v1606, %v2048
        %v2059 = vadd.f32 %v1607, %v2051
        %v2060 = vadd.f32 %v1608, %v2054
        %v2061 = vadd.f32 %v1609, %v2057
        %v2062 = vmul.f32 %v2029, %v2029
        %v2063 = vmul.f32 %v2030, %v2030
        %v2064 = vmul.f32 %v2031, %v2031
        %v2065 = vmul.f32 %v2032, %v2032
        %v2066 = vmul.f32 %v2033, %v2033
        %v2067 = vmul.f32 %v2034, %v2034
        %v2068 = vmul.f32 %v2035, %v2035
        %v2069 = vmul.f32 %v2036, %v2036
        %v2070 = vadd.f32 %v2062, %v2063
        %2071 = vadd.xlane.f32.xlu0 %v2070
        %v2072 = vpop.xlane.xlu0 %2071
        %v2073 = vadd.f32 %v2064, %v2065
        %2074 = vadd.xlane.f32.xlu0 %v2073
        %v2075 = vpop.xlane.xlu0 %2074
        %v2076 = vadd.f32 %v2066, %v2067
        %2077 = vadd.xlane.f32.xlu0 %v2076
        %v2078 = vpop.xlane.xlu0 %2077
        %v2079 = vadd.f32 %v2068, %v2069
        %2080 = vadd.xlane.f32.xlu0 %v2079
        %v2081 = vpop.xlane.xlu0 %2080
        %v2082 = vadd.f32 %v1630, %v2072
        %v2083 = vadd.f32 %v1631, %v2075
        %v2084 = vadd.f32 %v1632, %v2078
        %v2085 = vadd.f32 %v1633, %v2081
        %2086 = vrot.lane.b32.xlu0 %v565, 16
        %v2087 = vpop.permute.xlu0 %2086
        %2088 = vrot.lane.b32.xlu0 %v567, 16
        %v2089 = vpop.permute.xlu0 %2088
        %2090 = vrot.lane.b32.xlu0 %v566, 16
        %v2091 = vpop.permute.xlu0 %2090
        %2092 = vrot.lane.b32.xlu0 %v568, 16
        %v2093 = vpop.permute.xlu0 %2092
        %v2094 = vsel %vm603, %v2087, %v2091
        %v2095 = vsel %vm603, %v2089, %v2093
        %v2096 = vsel %vm603, %v2091, %v2087
        %v2097 = vsel %vm603, %v2093, %v2089
        %v2098 = vmul.f32 %v2096, %v612
        %v2099 = vmul.f32 %v2094, %v616
        %v2100 = vmul.f32 %v2097, %v612
        %v2101 = vmul.f32 %v2095, %v616
        %2102 = vrot.lane.b32.xlu0 %v565, 112
        %v2103 = vpop.permute.xlu0 %2102
        %2104 = vrot.lane.b32.xlu0 %v567, 112
        %v2105 = vpop.permute.xlu0 %2104
        %2106 = vrot.lane.b32.xlu0 %v566, 112
        %v2107 = vpop.permute.xlu0 %2106
        %2108 = vrot.lane.b32.xlu0 %v568, 112
        %v2109 = vpop.permute.xlu0 %2108
        %v2110 = vsel %vm631, %v2103, %v2107
        %v2111 = vsel %vm631, %v2105, %v2109
        %v2112 = vsel %vm631, %v2107, %v2103
        %v2113 = vsel %vm631, %v2109, %v2105
        %v2114 = vmul.f32 %v2110, %v640
        %v2115 = vmul.f32 %v2112, %v644
        %v2116 = vmul.f32 %v2111, %v640
        %v2117 = vmul.f32 %v2113, %v644
        %2118 = vrot.lane.b32.xlu0 %v2098, 1
        %v2119 = vpop.permute.xlu0 %2118
        %2120 = vrot.lane.b32.xlu0 %v2100, 1
        %v2121 = vpop.permute.xlu0 %2120
        %2122 = vrot.lane.b32.xlu0 %v2099, 1
        %v2123 = vpop.permute.xlu0 %2122
        %2124 = vrot.lane.b32.xlu0 %v2101, 1
        %v2125 = vpop.permute.xlu0 %2124
        %v2126 = vsel %vm659, %v2119, %v2123
        %v2127 = vsel %vm659, %v2121, %v2125
        %v2128 = vsel %vm659, %v2123, %v2119
        %v2129 = vsel %vm659, %v2125, %v2121
        %v2130 = vmul.f32 %v2128, %v668
        %v2131 = vmul.f32 %v2126, %v672
        %v2132 = vmul.f32 %v2129, %v668
        %v2133 = vmul.f32 %v2127, %v672
        %2134 = vrot.lane.b32.xlu0 %v2098, 127
        %v2135 = vpop.permute.xlu0 %2134
        %2136 = vrot.lane.b32.xlu0 %v2100, 127
        %v2137 = vpop.permute.xlu0 %2136
        %2138 = vrot.lane.b32.xlu0 %v2099, 127
        %v2139 = vpop.permute.xlu0 %2138
        %2140 = vrot.lane.b32.xlu0 %v2101, 127
        %v2141 = vpop.permute.xlu0 %2140
        %v2142 = vsel %vm687, %v2135, %v2139
        %v2143 = vsel %vm687, %v2137, %v2141
        %v2144 = vsel %vm687, %v2139, %v2135
        %v2145 = vsel %vm687, %v2141, %v2137
        %v2146 = vmul.f32 %v2142, %v696
        %v2147 = vmul.f32 %v2144, %v700
        %v2148 = vmul.f32 %v2143, %v696
        %v2149 = vmul.f32 %v2145, %v700
        %2150 = vrot.lane.b32.xlu0 %v2114, 1
        %v2151 = vpop.permute.xlu0 %2150
        %2152 = vrot.lane.b32.xlu0 %v2116, 1
        %v2153 = vpop.permute.xlu0 %2152
        %2154 = vrot.lane.b32.xlu0 %v2115, 1
        %v2155 = vpop.permute.xlu0 %2154
        %2156 = vrot.lane.b32.xlu0 %v2117, 1
        %v2157 = vpop.permute.xlu0 %2156
        %v2158 = vsel %vm659, %v2151, %v2155
        %v2159 = vsel %vm659, %v2153, %v2157
        %v2160 = vsel %vm659, %v2155, %v2151
        %v2161 = vsel %vm659, %v2157, %v2153
        %v2162 = vmul.f32 %v2160, %v668
        %v2163 = vmul.f32 %v2158, %v672
        %v2164 = vmul.f32 %v2161, %v668
        %v2165 = vmul.f32 %v2159, %v672
        %2166 = vrot.lane.b32.xlu0 %v2114, 127
        %v2167 = vpop.permute.xlu0 %2166
        %2168 = vrot.lane.b32.xlu0 %v2116, 127
        %v2169 = vpop.permute.xlu0 %2168
        %2170 = vrot.lane.b32.xlu0 %v2115, 127
        %v2171 = vpop.permute.xlu0 %2170
        %2172 = vrot.lane.b32.xlu0 %v2117, 127
        %v2173 = vpop.permute.xlu0 %2172
        %v2174 = vsel %vm687, %v2167, %v2171
        %v2175 = vsel %vm687, %v2169, %v2173
        %v2176 = vsel %vm687, %v2171, %v2167
        %v2177 = vsel %vm687, %v2173, %v2169
        %v2178 = vmul.f32 %v2174, %v696
        %v2179 = vmul.f32 %v2176, %v700
        %v2180 = vmul.f32 %v2175, %v696
        %v2181 = vmul.f32 %v2177, %v700
        %2182 = vmatprep.subr.mxu0 %v2131
        %2183 = vmatpush1.msra.mxu0 %v2130
        %2184 = vmatprep.subr.mxu0 %v2133
        %2185 = vmatpush1.msra.mxu0 %v2132
        %2186 = vmatprep.subr.mxu0 %v2099
        %2187 = vmatpush1.msra.mxu0 %v2098
        %2188 = vmatprep.subr.mxu0 %v2101
        %2189 = vmatpush1.msra.mxu0 %v2100
        %2190 = vmatprep.subr.mxu0 %v2147
        %2191 = vmatpush1.msra.mxu0 %v2146
        %2192 = vmatprep.subr.mxu0 %v2149
        %2193 = vmatpush1.msra.mxu0 %v2148
        %2194 = vmatprep.subr.mxu0 %v1905
        %2195 = vmatpush1.msra.mxu0 %v1904
        %2196 = vmatprep.subr.mxu0 %v1907
        %2197 = vmatpush1.msra.mxu0 %v1906
        %2198 = vmatprep.subr.mxu0 %v566
        %2199 = vmatpush1.msra.mxu0 %v565
        %2200 = vmatprep.subr.mxu0 %v568
        %2201 = vmatpush1.msra.mxu0 %v567
        %2202 = vmatprep.subr.mxu0 %v1921
        %2203 = vmatpush1.msra.mxu0 %v1920
        %2204 = vmatprep.subr.mxu0 %v1923
        %2205 = vmatpush1.msra.mxu0 %v1922
        %2206 = vmatprep.subr.mxu0 %v2163
        %2207 = vmatpush1.msra.mxu0 %v2162
        %2208 = vmatprep.subr.mxu0 %v2165
        %2209 = vmatpush1.msra.mxu0 %v2164
        %2210 = vmatprep.subr.mxu0 %v2115
        %2211 = vmatpush1.msra.mxu0 %v2114
        %2212 = vmatprep.subr.mxu0 %v2117
        %2213 = vmatpush1.msra.mxu0 %v2116
        %2214 = vmatprep.subr.mxu0 %v2179
        %2215 = vmatpush1.msra.mxu0 %v2178
        %2216 = vmatprep.subr.mxu0 %v2181
        %2217 = vmatpush1.msra.mxu0 %v2180
        %2218 = vmatprep.subr.mxu0 0.0
        %2219 = vmatpush1.msra.mxu0 0.0
        %2220 = vmatprep.subr.mxu0 0.0
        %2221 = vmatpush1.msra.mxu0 0.0
        %2222 = vmatprep.subr.mxu0 0.0
        %2223 = vmatpush1.msra.mxu0 0.0
        %2224 = vmatprep.subr.mxu0 0.0
        %2225 = vmatpush1.msra.mxu0 0.0
        %2226 = vmatprep.subr.mxu0 0.0
        %2227 = vmatpush1.msra.mxu0 0.0
        %2228 = vmatprep.subr.mxu0 0.0
        %2229 = vmatpush1.msra.mxu0 0.0
        %2230 = vmatprep.subr.mxu0 0.0
        %2231 = vmatpush1.msra.mxu0 0.0
        %2232 = vmatprep.subr.mxu0 0.0
        %2233 = vmatpush1.msra.mxu0 0.0
        %2234 = vmatprep.subr.mxu0 0.0
        %2235 = vmatpush1.msra.mxu0 0.0
        %2236 = vmatprep.subr.mxu0 0.0
        %2237 = vmatpush1.msra.mxu0 0.0
        %2238 = vmatprep.subr.mxu0 0.0
        %2239 = vmatpush1.msra.mxu0 0.0
        %2240 = vmatprep.subr.mxu0 0.0
        %2241 = vmatpush1.msra.mxu0 0.0
        %2242 = vmatprep.subr.mxu0 0.0
        %2243 = vmatpush1.msra.mxu0 0.0
        %2244 = vmatprep.subr.mxu0 0.0
        %2245 = vmatpush1.msra.mxu0 0.0
        %2246 = vmatprep.mubr.f32.mxu0 %v773
        %2247 = vmatmul.mubr.f32.gmra.mrb[0].mxu0 %v534
        %v2248 = vpop.f32.mrb[0].mxu0
        %v2249 = vadd.f32 0.0, %v2248
        %v2250 = vpop.f32.mrb[0].mxu0
        %v2251 = vadd.f32 0.0, %v2250
        %2252 = vmatprep.mubr.f32.mxu0 %v776
        %2253 = vmatmul.mubr.f32.gmra.mrb[0].mxu0 %v536
        %v2254 = vpop.f32.mrb[0].mxu0
        %v2255 = vadd.f32 0.0, %v2254
        %v2256 = vpop.f32.mrb[0].mxu0
        %v2257 = vadd.f32 0.0, %v2256
        %2258 = vmatprep.mubr.f32.mxu0 %v779
        %2259 = vmatmul.mubr.f32.gmra.mrb[0].mxu0 %v538
        %v2260 = vpop.f32.mrb[0].mxu0
        %v2261 = vadd.f32 0.0, %v2260
        %v2262 = vpop.f32.mrb[0].mxu0
        %v2263 = vadd.f32 0.0, %v2262
        %2264 = vmatprep.mubr.f32.mxu0 %v782
        %2265 = vmatmul.mubr.f32.gmra.mrb[0].mxu0 %v540
        %v2266 = vpop.f32.mrb[0].mxu0
        %v2267 = vadd.f32 0.0, %v2266
        %v2268 = vpop.f32.mrb[0].mxu0
        %v2269 = vadd.f32 0.0, %v2268
        %2270 = vdwg.mxu0
        %vm2271 = vcmp.ge.f32.partialorder %v2249, 0.0
        %vm2272 = vcmp.ge.f32.partialorder %v2251, 0.0
        %vm2273 = vcmp.ge.f32.partialorder %v2255, 0.0
        %vm2274 = vcmp.ge.f32.partialorder %v2257, 0.0
        %vm2275 = vcmp.ge.f32.partialorder %v2261, 0.0
        %vm2276 = vcmp.ge.f32.partialorder %v2263, 0.0
        %vm2277 = vcmp.ge.f32.partialorder %v2267, 0.0
        %vm2278 = vcmp.ge.f32.partialorder %v2269, 0.0
        %v2279 = vmul.f32 %v2249, 0.01
        %v2280 = vmul.f32 %v2251, 0.01
        %v2281 = vmul.f32 %v2255, 0.01
        %v2282 = vmul.f32 %v2257, 0.01
        %v2283 = vmul.f32 %v2261, 0.01
        %v2284 = vmul.f32 %v2263, 0.01
        %v2285 = vmul.f32 %v2267, 0.01
        %v2286 = vmul.f32 %v2269, 0.01
        %v2287 = vsel %vm2271, %v2249, %v2279
        %v2288 = vsel %vm2272, %v2251, %v2280
        %v2289 = vsel %vm2273, %v2255, %v2281
        %v2290 = vsel %vm2274, %v2257, %v2282
        %v2291 = vsel %vm2275, %v2261, %v2283
        %v2292 = vsel %vm2276, %v2263, %v2284
        %v2293 = vsel %vm2277, %v2267, %v2285
        %v2294 = vsel %vm2278, %v2269, %v2286
        %s2295 = scalar_lea.vmem %s488, 192 [#allocation11]
        %2296 = vst [vmem:[%s2295] sm:$0xff] %v2287
        %2297 = vst [vmem:[%s2295 + $0x8] sm:$0xff] %v2288
        %2298 = vst [vmem:[%s2295 + $0x10] sm:$0xff] %v2289
        %2299 = vst [vmem:[%s2295 + $0x18] sm:$0xff] %v2290
        %2300 = vst [vmem:[%s2295 + $0x20] sm:$0xff] %v2291
        %2301 = vst [vmem:[%s2295 + $0x28] sm:$0xff] %v2292
        %2302 = vst [vmem:[%s2295 + $0x30] sm:$0xff] %v2293
        %2303 = vst [vmem:[%s2295 + $0x38] sm:$0xff] %v2294
        %v2304 = vadd.f32 %v2287, %v2288
        %2305 = vadd.xlane.f32.xlu0 %v2304
        %v2306 = vpop.xlane.xlu0 %2305
        %v2307 = vadd.f32 %v2289, %v2290
        %2308 = vadd.xlane.f32.xlu0 %v2307
        %v2309 = vpop.xlane.xlu0 %2308
        %v2310 = vadd.f32 %v2291, %v2292
        %2311 = vadd.xlane.f32.xlu0 %v2310
        %v2312 = vpop.xlane.xlu0 %2311
        %v2313 = vadd.f32 %v2293, %v2294
        %2314 = vadd.xlane.f32.xlu0 %v2313
        %v2315 = vpop.xlane.xlu0 %2314
        %v2316 = vadd.f32 %v1864, %v2306
        %v2317 = vadd.f32 %v1865, %v2309
        %v2318 = vadd.f32 %v1866, %v2312
        %v2319 = vadd.f32 %v1867, %v2315
        %v2320 = vmul.f32 %v2287, %v2287
        %v2321 = vmul.f32 %v2288, %v2288
        %v2322 = vmul.f32 %v2289, %v2289
        %v2323 = vmul.f32 %v2290, %v2290
        %v2324 = vmul.f32 %v2291, %v2291
        %v2325 = vmul.f32 %v2292, %v2292
        %v2326 = vmul.f32 %v2293, %v2293
        %v2327 = vmul.f32 %v2294, %v2294
        %v2328 = vadd.f32 %v2320, %v2321
        %2329 = vadd.xlane.f32.xlu0 %v2328
        %v2330 = vpop.xlane.xlu0 %2329
        %v2331 = vadd.f32 %v2322, %v2323
        %2332 = vadd.xlane.f32.xlu0 %v2331
        %v2333 = vpop.xlane.xlu0 %2332
        %v2334 = vadd.f32 %v2324, %v2325
        %2335 = vadd.xlane.f32.xlu0 %v2334
        %v2336 = vpop.xlane.xlu0 %2335
        %v2337 = vadd.f32 %v2326, %v2327
        %2338 = vadd.xlane.f32.xlu0 %v2337
        %v2339 = vpop.xlane.xlu0 %2338
        %v2340 = vadd.f32 %v1888, %v2330
        %v2341 = vadd.f32 %v1889, %v2333
        %v2342 = vadd.f32 %v1890, %v2336
        %v2343 = vadd.f32 %v1891, %v2339
        %2344 = vrot.lane.b32.xlu0 %v589, 1
        %v2345 = vpop.permute.xlu0 %2344
        %2346 = vrot.lane.b32.xlu0 %v591, 1
        %v2347 = vpop.permute.xlu0 %2346
        %2348 = vrot.lane.b32.xlu0 %v590, 1
        %v2349 = vpop.permute.xlu0 %2348
        %2350 = vrot.lane.b32.xlu0 %v592, 1
        %v2351 = vpop.permute.xlu0 %2350
        %v2352 = vsel %vm659, %v2345, %v2349
        %v2353 = vsel %vm659, %v2347, %v2351
        %v2354 = vsel %vm659, %v2349, %v2345
        %v2355 = vsel %vm659, %v2351, %v2347
        %v2356 = vmul.f32 %v2354, %v668
        %v2357 = vmul.f32 %v2352, %v672
        %v2358 = vmul.f32 %v2355, %v668
        %v2359 = vmul.f32 %v2353, %v672
        %2360 = vrot.lane.b32.xlu0 %v589, 127
        %v2361 = vpop.permute.xlu0 %2360
        %2362 = vrot.lane.b32.xlu0 %v591, 127
        %v2363 = vpop.permute.xlu0 %2362
        %2364 = vrot.lane.b32.xlu0 %v590, 127
        %v2365 = vpop.permute.xlu0 %2364
        %2366 = vrot.lane.b32.xlu0 %v592, 127
        %v2367 = vpop.permute.xlu0 %2366
        %v2368 = vsel %vm687, %v2361, %v2365
        %v2369 = vsel %vm687, %v2363, %v2367
        %v2370 = vsel %vm687, %v2365, %v2361
        %v2371 = vsel %vm687, %v2367, %v2363
        %v2372 = vmul.f32 %v2368, %v696
        %v2373 = vmul.f32 %v2370, %v700
        %v2374 = vmul.f32 %v2369, %v696
        %v2375 = vmul.f32 %v2371, %v700
        %2376 = vmatprep.subr.mxu0 %v1453
        %2377 = vmatpush1.msra.mxu0 %v1452
        %2378 = vmatprep.subr.mxu0 %v1455
        %2379 = vmatpush1.msra.mxu0 %v1454
        %2380 = vmatprep.subr.mxu0 %v561
        %2381 = vmatpush1.msra.mxu0 %v560
        %2382 = vmatprep.subr.mxu0 %v563
        %2383 = vmatpush1.msra.mxu0 %v562
        %2384 = vmatprep.subr.mxu0 %v1469
        %2385 = vmatpush1.msra.mxu0 %v1468
        %2386 = vmatprep.subr.mxu0 %v1471
        %2387 = vmatpush1.msra.mxu0 %v1470
        %2388 = vmatprep.subr.mxu0 %v1905
        %2389 = vmatpush1.msra.mxu0 %v1904
        %2390 = vmatprep.subr.mxu0 %v1907
        %2391 = vmatpush1.msra.mxu0 %v1906
        %2392 = vmatprep.subr.mxu0 %v566
        %2393 = vmatpush1.msra.mxu0 %v565
        %2394 = vmatprep.subr.mxu0 %v568
        %2395 = vmatpush1.msra.mxu0 %v567
        %2396 = vmatprep.subr.mxu0 %v1921
        %2397 = vmatpush1.msra.mxu0 %v1920
        %2398 = vmatprep.subr.mxu0 %v1923
        %2399 = vmatpush1.msra.mxu0 %v1922
        %2400 = vmatprep.subr.mxu0 %v2357
        %2401 = vmatpush1.msra.mxu0 %v2356
        %2402 = vmatprep.subr.mxu0 %v2359
        %2403 = vmatpush1.msra.mxu0 %v2358
        %2404 = vmatprep.subr.mxu0 %v590
        %2405 = vmatpush1.msra.mxu0 %v589
        %2406 = vmatprep.subr.mxu0 %v592
        %2407 = vmatpush1.msra.mxu0 %v591
        %2408 = vmatprep.subr.mxu0 %v2373
        %2409 = vmatpush1.msra.mxu0 %v2372
        %2410 = vmatprep.subr.mxu0 %v2375
        %2411 = vmatpush1.msra.mxu0 %v2374
        %2412 = vmatprep.subr.mxu0 0.0
        %2413 = vmatpush1.msra.mxu0 0.0
        %2414 = vmatprep.subr.mxu0 0.0
        %2415 = vmatpush1.msra.mxu0 0.0
        %2416 = vmatprep.subr.mxu0 0.0
        %2417 = vmatpush1.msra.mxu0 0.0
        %2418 = vmatprep.subr.mxu0 0.0
        %2419 = vmatpush1.msra.mxu0 0.0
        %2420 = vmatprep.subr.mxu0 0.0
        %2421 = vmatpush1.msra.mxu0 0.0
        %2422 = vmatprep.subr.mxu0 0.0
        %2423 = vmatpush1.msra.mxu0 0.0
        %2424 = vmatprep.subr.mxu0 0.0
        %2425 = vmatpush1.msra.mxu0 0.0
        %2426 = vmatprep.subr.mxu0 0.0
        %2427 = vmatpush1.msra.mxu0 0.0
        %2428 = vmatprep.subr.mxu0 0.0
        %2429 = vmatpush1.msra.mxu0 0.0
        %2430 = vmatprep.subr.mxu0 0.0
        %2431 = vmatpush1.msra.mxu0 0.0
        %2432 = vmatprep.subr.mxu0 0.0
        %2433 = vmatpush1.msra.mxu0 0.0
        %2434 = vmatprep.subr.mxu0 0.0
        %2435 = vmatpush1.msra.mxu0 0.0
        %2436 = vmatprep.subr.mxu0 0.0
        %2437 = vmatpush1.msra.mxu0 0.0
        %2438 = vmatprep.subr.mxu0 0.0
        %2439 = vmatpush1.msra.mxu0 0.0
        %2440 = vmatprep.mubr.f32.mxu0 %v1010
        %2441 = vmatmul.mubr.f32.gmra.mrb[0].mxu0 %v542
        %v2442 = vpop.f32.mrb[0].mxu0
        %v2443 = vadd.f32 0.0, %v2442
        %v2444 = vpop.f32.mrb[0].mxu0
        %v2445 = vadd.f32 0.0, %v2444
        %2446 = vmatprep.mubr.f32.mxu0 %v1013
        %2447 = vmatmul.mubr.f32.gmra.mrb[0].mxu0 %v544
        %v2448 = vpop.f32.mrb[0].mxu0
        %v2449 = vadd.f32 0.0, %v2448
        %v2450 = vpop.f32.mrb[0].mxu0
        %v2451 = vadd.f32 0.0, %v2450
        %2452 = vmatprep.mubr.f32.mxu0 %v1016
        %2453 = vmatmul.mubr.f32.gmra.mrb[0].mxu0 %v546
        %v2454 = vpop.f32.mrb[0].mxu0
        %v2455 = vadd.f32 0.0, %v2454
        %v2456 = vpop.f32.mrb[0].mxu0
        %v2457 = vadd.f32 0.0, %v2456
        %2458 = vmatprep.mubr.f32.mxu0 %v1019
        %2459 = vmatmul.mubr.f32.gmra.mrb[0].mxu0 %v548
        %v2460 = vpop.f32.mrb[0].mxu0
        %v2461 = vadd.f32 0.0, %v2460
        %v2462 = vpop.f32.mrb[0].mxu0
        %v2463 = vadd.f32 0.0, %v2462
        %2464 = vdwg.mxu0
        %vm2465 = vcmp.ge.f32.partialorder %v2443, 0.0
        %vm2466 = vcmp.ge.f32.partialorder %v2445, 0.0
        %vm2467 = vcmp.ge.f32.partialorder %v2449, 0.0
        %vm2468 = vcmp.ge.f32.partialorder %v2451, 0.0
        %vm2469 = vcmp.ge.f32.partialorder %v2455, 0.0
        %vm2470 = vcmp.ge.f32.partialorder %v2457, 0.0
        %vm2471 = vcmp.ge.f32.partialorder %v2461, 0.0
        %vm2472 = vcmp.ge.f32.partialorder %v2463, 0.0
        %v2473 = vmul.f32 %v2443, 0.01
        %v2474 = vmul.f32 %v2445, 0.01
        %v2475 = vmul.f32 %v2449, 0.01
        %v2476 = vmul.f32 %v2451, 0.01
        %v2477 = vmul.f32 %v2455, 0.01
        %v2478 = vmul.f32 %v2457, 0.01
        %v2479 = vmul.f32 %v2461, 0.01
        %v2480 = vmul.f32 %v2463, 0.01
        %v2481 = vsel %vm2465, %v2443, %v2473
        %v2482 = vsel %vm2466, %v2445, %v2474
        %v2483 = vsel %vm2467, %v2449, %v2475
        %v2484 = vsel %vm2468, %v2451, %v2476
        %v2485 = vsel %vm2469, %v2455, %v2477
        %v2486 = vsel %vm2470, %v2457, %v2478
        %v2487 = vsel %vm2471, %v2461, %v2479
        %v2488 = vsel %vm2472, %v2463, %v2480
        %s2489 = scalar_lea.vmem %s495, 192 [#allocation12]
        %2490 = vst [vmem:[%s2489] sm:$0xff] %v2481
        %2491 = vst [vmem:[%s2489 + $0x8] sm:$0xff] %v2482
        %2492 = vst [vmem:[%s2489 + $0x10] sm:$0xff] %v2483
        %2493 = vst [vmem:[%s2489 + $0x18] sm:$0xff] %v2484
        %2494 = vst [vmem:[%s2489 + $0x20] sm:$0xff] %v2485
        %2495 = vst [vmem:[%s2489 + $0x28] sm:$0xff] %v2486
        %2496 = vst [vmem:[%s2489 + $0x30] sm:$0xff] %v2487
        %2497 = vst [vmem:[%s2489 + $0x38] sm:$0xff] %v2488
        %v2498 = vadd.f32 %v2481, %v2482
        %2499 = vadd.xlane.f32.xlu0 %v2498
        %v2500 = vpop.xlane.xlu0 %2499
        %v2501 = vadd.f32 %v2483, %v2484
        %2502 = vadd.xlane.f32.xlu0 %v2501
        %v2503 = vpop.xlane.xlu0 %2502
        %v2504 = vadd.f32 %v2485, %v2486
        %2505 = vadd.xlane.f32.xlu0 %v2504
        %v2506 = vpop.xlane.xlu0 %2505
        %v2507 = vadd.f32 %v2487, %v2488
        %2508 = vadd.xlane.f32.xlu0 %v2507
        %v2509 = vpop.xlane.xlu0 %2508
        %v2510 = vadd.f32 %v2058, %v2500
        %v2511 = vadd.f32 %v2059, %v2503
        %v2512 = vadd.f32 %v2060, %v2506
        %v2513 = vadd.f32 %v2061, %v2509
        %v2514 = vmul.f32 %v2481, %v2481
        %v2515 = vmul.f32 %v2482, %v2482
        %v2516 = vmul.f32 %v2483, %v2483
        %v2517 = vmul.f32 %v2484, %v2484
        %v2518 = vmul.f32 %v2485, %v2485
        %v2519 = vmul.f32 %v2486, %v2486
        %v2520 = vmul.f32 %v2487, %v2487
        %v2521 = vmul.f32 %v2488, %v2488
        %v2522 = vadd.f32 %v2514, %v2515
        %2523 = vadd.xlane.f32.xlu0 %v2522
        %v2524 = vpop.xlane.xlu0 %2523
        %v2525 = vadd.f32 %v2516, %v2517
        %2526 = vadd.xlane.f32.xlu0 %v2525
        %v2527 = vpop.xlane.xlu0 %2526
        %v2528 = vadd.f32 %v2518, %v2519
        %2529 = vadd.xlane.f32.xlu0 %v2528
        %v2530 = vpop.xlane.xlu0 %2529
        %v2531 = vadd.f32 %v2520, %v2521
        %2532 = vadd.xlane.f32.xlu0 %v2531
        %v2533 = vpop.xlane.xlu0 %2532
        %v2534 = vadd.f32 %v2082, %v2524
        %v2535 = vadd.f32 %v2083, %v2527
        %v2536 = vadd.f32 %v2084, %v2530
        %v2537 = vadd.f32 %v2085, %v2533
        %vm2538 = vcmask 7168
        %v2539 = vsel %vm2538, %v2316, %v2340
        %v2540 = vsel %vm2538, %v2317, %v2341
        %v2541 = vsel %vm2538, %v2318, %v2342
        %v2542 = vsel %vm2538, %v2319, %v2343
        %vm2543 = vcmask 15360
        %v2544 = vsel %vm2543, %v2539, %v2510
        %v2545 = vsel %vm2543, %v2540, %v2511
        %v2546 = vsel %vm2543, %v2541, %v2512
        %v2547 = vsel %vm2543, %v2542, %v2513
        %vm2548 = vcmask 23552
        %v2549 = vsel %vm2548, %v2544, %v2534
        %v2550 = vsel %vm2548, %v2545, %v2535
        %v2551 = vsel %vm2548, %v2546, %v2536
        %v2552 = vsel %vm2548, %v2547, %v2537
        %vm2553 = vcmask 31744
        %2554 = vst.msk [vmem:[%s526] sm:$0xff] %vm2553, %v2549
        %2555 = vst.msk [vmem:[%s526 + $0x8] sm:$0xff] %vm2553, %v2550
        %2556 = vst.msk [vmem:[%s526 + $0x10] sm:$0xff] %vm2553, %v2551
        %2557 = vst.msk [vmem:[%s526 + $0x18] sm:$0xff] %vm2553, %v2552
        %s2558 = sand.u32 %s218, 1
        %s2559 = scalar_lea.sflag [#allocation4], %s2558
        %s2560 = sand.u32 %s218, 1
        %s2561 = smul.addr %s2560, 256
        %s2562 = scalar_lea.vmem [#allocation11], %s2561
        %s2563 = sand.u32 %s246, 1
        %s2564 = scalar_lea.sflag [#allocation13], %s2563
        %s2565 = sand.u32 %s246, 1
        %s2566 = smul.addr %s2565, 256
        %s2567 = scalar_lea.vmem [#allocation12], %s2566
        %p2568 = scmp.lt.s32.totalorder %s37, 1
        %s2569 = scalar_select %p2568, %s37, 1
        %p2570 = scmp.lt.s32.totalorder %s38, 0
        %s2571 = scalar_select %p2570, %s38, 0
        %s2572 = smul.addr %s2571, 4
        %s2573 = smul.addr %s2569, 4
        %s2574 = sadd.s32 %s2572, %s2573
        %s2575 = smul.addr %s2574, 8
        %s2576 = scalar_lea.vmem %s8, %s2575
        // Predicated region
        $region65: #{tpu_custom_call.1} parent=43 // pred_check
          %p2577 = pneg %p228
        $region66: #{tpu_custom_call.1} parent=43 // pred_check_branch
          %2579 = sbr.rel (%p2577) target = $region68
        $region67: #{tpu_custom_call.1} parent=43 // pred_region
          %s2580 = smul.u32 4, %s38
          %s2582 = ssub.s32 4096, 4096
          %2583 = vsyncadd %s2559, %s2582
          %s2584 = smul.addr %s2580, 8
          %s2585 = smul.addr %s37, 32
          %s2586 = sadd.s32 %s2584, %s2585
          %s2587 = smul.addr %s2586, 128
          %s2588 = scalar_lea.hbm %s6, %s2587
          %s2589 = sshll.u32 %s2562, 4
          %s2590 = int_to_ptr.vmem [resolvable:$true] %s2589
          %2595 = dma.vmem_to_hbm [thread:$0]  %s2590, 4096, %s2588, %s2559, 256, 256, 16
        $region68: #{tpu_custom_call.1} parent=43 // pred_fallthru
          _
        // Predicated region
        $region69: #{tpu_custom_call.1} parent=43 // pred_check
          %p2596 = pneg %p256
        $region70: #{tpu_custom_call.1} parent=43 // pred_check_branch
          %2598 = sbr.rel (%p2596) target = $region72
        $region71: #{tpu_custom_call.1} parent=43 // pred_region
          %s2599 = smul.u32 4, %s38
          %s2601 = ssub.s32 4096, 4096
          %2602 = vsyncadd %s2564, %s2601
          %s2603 = smul.addr %s2599, 8
          %s2604 = smul.addr %s37, 32
          %s2605 = sadd.s32 %s2603, %s2604
          %s2606 = smul.addr %s2605, 128
          %s2607 = scalar_lea.hbm %s7, %s2606
          %s2608 = sshll.u32 %s2567, 4
          %s2609 = int_to_ptr.vmem [resolvable:$true] %s2608
          %2614 = dma.vmem_to_hbm [thread:$0]  %s2609, 4096, %s2607, %s2564, 256, 256, 16
        $region72: #{tpu_custom_call.1} parent=43 // pred_fallthru
          _
        // Predicated region
        $region73: #{tpu_custom_call.1} parent=43 // pred_check
          %p2615 = pneg %p284
        $region74: #{tpu_custom_call.1} parent=43 // pred_check_branch
          %2617 = sbr.rel (%p2615) target = $region76
        $region75: #{tpu_custom_call.1} parent=43 // pred_region
          _
        $region76: #{tpu_custom_call.1} parent=43 // pred_fallthru
          _
      $region44: #{tpu_custom_call.1} parent=5 // pred_fallthru
        _
      %p2618 = scmp.le.s32.totalorder 2, %s28
      // Predicated region
      $region77: #{tpu_custom_call.1} parent=5 // pred_check
        %p2619 = pneg %p2618
      $region78: #{tpu_custom_call.1} parent=5 // pred_check_branch
        %2621 = sbr.rel (%p2619) target = $region80
      $region79: #{tpu_custom_call.1} parent=5 // pred_region
        %s2622 = ssub.s32 %s28, 2
        // Predicated region
        $region81: #{tpu_custom_call.1} parent=79 // pred_check
          %p2623 = pneg %p234
        $region82: #{tpu_custom_call.1} parent=79 // pred_check_branch
          %2625 = sbr.rel (%p2623) target = $region84
        $region83: #{tpu_custom_call.1} parent=79 // pred_region
          %s2626 = sand.u32 %s219, 1
          %s2627 = scalar_lea.sflag [#allocation4], %s2626
          %s2628 = sand.u32 %s219, 1
          %s2629 = smul.addr %s2628, 256
          %s2630 = scalar_lea.vmem [#allocation11], %s2629
          %2631 = dma.done %s2627, 4096
        $region84: #{tpu_custom_call.1} parent=79 // pred_fallthru
          _
        // Predicated region
        $region85: #{tpu_custom_call.1} parent=79 // pred_check
          %p2632 = pneg %p262
        $region86: #{tpu_custom_call.1} parent=79 // pred_check_branch
          %2634 = sbr.rel (%p2632) target = $region88
        $region87: #{tpu_custom_call.1} parent=79 // pred_region
          %s2635 = sand.u32 %s247, 1
          %s2636 = scalar_lea.sflag [#allocation13], %s2635
          %s2637 = sand.u32 %s247, 1
          %s2638 = smul.addr %s2637, 256
          %s2639 = scalar_lea.vmem [#allocation12], %s2638
          %2640 = dma.done %s2636, 4096
        $region88: #{tpu_custom_call.1} parent=79 // pred_fallthru
          _
        // Predicated region
        $region89: #{tpu_custom_call.1} parent=79 // pred_check
          %p2641 = pneg %p290
        $region90: #{tpu_custom_call.1} parent=79 // pred_check_branch
          %2643 = sbr.rel (%p2641) target = $region92
        $region91: #{tpu_custom_call.1} parent=79 // pred_region
          %p2644 = scmp.lt.s32.totalorder %s39, 1
          %s2645 = scalar_select %p2644, %s39, 1
          %p2646 = scmp.lt.s32.totalorder %s40, 0
          %s2647 = scalar_select %p2646, %s40, 0
          %s2648 = smul.addr %s2647, 4
          %s2649 = smul.addr %s2645, 4
          %s2650 = sadd.s32 %s2648, %s2649
          %s2651 = smul.addr %s2650, 8
          %s2652 = scalar_lea.vmem %s8, %s2651
        $region92: #{tpu_custom_call.1} parent=79 // pred_fallthru
          _
      $region80: #{tpu_custom_call.1} parent=5 // pred_fallthru
        _
    $region6: #{tpu_custom_call.1} parent=1 // loop_footer
      %s32 = sadd.s32 1, %s28
    $region7: #{tpu_custom_call.1} parent=1 // loop_footer_branch
      %27 = sbr.rel target = $region3
    $region8: #{tpu_custom_call.1} parent=1 // loop_exit
      _
    %2653 = vsyncpa [#allocation3], 1
    %s2654 = scalar_lea.sflag [#allocation3], 1
    %2655 = vsyncpa %s2654, 1
    %2656 = vsyncpa [#allocation6], 1
    %s2657 = scalar_lea.sflag [#allocation6], 1
    %2658 = vsyncpa %s2657, 1
    %2659 = vsyncpa [#allocation9], 1
    %2660 = vsyncpa [#allocation4], 1
    %s2661 = scalar_lea.sflag [#allocation4], 1
    %2662 = vsyncpa %s2661, 1
    %2663 = vsyncpa [#allocation13], 1
    %s2664 = scalar_lea.sflag [#allocation13], 1
    %2665 = vsyncpa %s2664, 1

</llo_original>
